<compile_context>
chip_gen: v5e
topology: v5e:2x2
jax: 0.10.0
libtpu: 0.0.40
codegen_flags: <defaults>
</compile_context>

<pallas_src>
import jax
import jax.numpy as jnp
from jax.experimental import pallas as pl
from jax.experimental.pallas import tpu as pltpu

D_COND = 1536          # condition features per row
D_NOISE = 768          # noise features
H1 = 256               # fc1 out, zero-padded from 200 to a lane multiple
H2 = 512               # fc2 out, zero-padded from 400
D_OUT = 768            # fc3 out (already a lane multiple)


def _round_up(x, m):
    return (x + m - 1) // m * m


def decoder_mlp_kernel(cond_ref, bias1_ref, w1c_ref, w2_ref, b2_ref,
                       w3_ref, b3_ref, o_ref):
    # fc1: only the condition columns hit the MXU; the z/noise contribution is
    # already folded into the per-row effective bias (bias1, bf16).
    # All matmuls use bf16 operands with f32 accumulation.
    h1 = jnp.dot(cond_ref[...].astype(jnp.bfloat16), w1c_ref[...],
                 preferred_element_type=jnp.float32)
    h1 = jnp.maximum(h1 + bias1_ref[...].astype(jnp.float32), 0.0)
    # fc2 + ReLU
    h2 = jnp.dot(h1.astype(jnp.bfloat16), w2_ref[...],
                 preferred_element_type=jnp.float32) + b2_ref[...]
    h2 = jnp.maximum(h2, 0.0)
    # fc3 + sigmoid
    logits = jnp.dot(h2.astype(jnp.bfloat16), w3_ref[...],
                     preferred_element_type=jnp.float32) + b3_ref[...]
    o_ref[...] = jax.nn.sigmoid(logits)


def decoder_mlp_pallas(cond2d, bias1_rows, w1c_bf, w2_bf, b2, w3_bf, b3, *,
                       tm=1024):
    """cond2d: (M, 1536) f32, bias1_rows: (M, H1) bf16 -> (M, 768) f32."""
    M = cond2d.shape[0]
    # Row-tile size: multiple of 16 (bf16 sublane packing of bias1).  For
    # small M, split into >=2 tiles when possible so both TensorCores of a
    # v7x chip get work; otherwise take the whole array as one tile.
    if M <= tm:
        half = _round_up(pl.cdiv(M, 2), 16)
        TM = half if half < M else M
    else:
        TM = tm
    grid = (pl.cdiv(M, TM),)   # ragged last tile: OOB reads unused, writes masked

    flops = 2 * M * (D_COND * H1 + H1 * H2 + H2 * D_OUT)
    bytes_accessed = (4 * M * (D_COND + D_OUT) + 2 * M * H1
                      + 2 * (D_COND * H1 + H1 * H2 + H2 * D_OUT)
                      + 4 * (H2 + D_OUT))
    cost = pl.CostEstimate(flops=flops,
                           transcendentals=M * D_OUT,
                           bytes_accessed=bytes_accessed)

    return pl.pallas_call(
        decoder_mlp_kernel,
        out_shape=jax.ShapeDtypeStruct((M, D_OUT), jnp.float32),
        grid_spec=pltpu.PrefetchScalarGridSpec(
            num_scalar_prefetch=0,
            grid=grid,
            in_specs=[
                # row-tiled, double-buffered streams
                pl.BlockSpec((TM, D_COND), lambda i: (i, 0)),
                pl.BlockSpec((TM, H1), lambda i: (i, 0)),
                # weights / biases: constant index_map -> stay VMEM-resident
                pl.BlockSpec((D_COND, H1), lambda i: (0, 0)),
                pl.BlockSpec((H1, H2), lambda i: (0, 0)),
                pl.BlockSpec((1, H2), lambda i: (0, 0)),
                pl.BlockSpec((H2, D_OUT), lambda i: (0, 0)),
                pl.BlockSpec((1, D_OUT), lambda i: (0, 0)),
            ],
            out_specs=pl.BlockSpec((TM, D_OUT), lambda i: (i, 0)),
        ),
        compiler_params=pltpu.CompilerParams(
            dimension_semantics=("parallel",),
            vmem_limit_bytes=48 << 20),
        cost_estimate=cost,
    )(cond2d, bias1_rows, w1c_bf, w2_bf, b2, w3_bf, b3)


class DecoderPallas:
    """JAX/Pallas port of the PyTorch Decoder module."""

    def __init__(self, latent_dim=100, length=50, key=None):
        self.latent_dim = latent_dim
        self.length = length
        d_in = latent_dim + D_COND + D_NOISE
        if key is None:
            key = jax.random.PRNGKey(0)

        def linear(k, fan_in, fan_out, pad_in, pad_out):
            kw, kb = jax.random.split(k)
            bound = 1.0 / jnp.sqrt(fan_in)  # nn.Linear default init scale
            w = jax.random.uniform(kw, (fan_in, fan_out), jnp.float32,
                                   -bound, bound)
            b = jax.random.uniform(kb, (1, fan_out), jnp.float32,
                                   -bound, bound)
            # Zero-pad to lane-friendly shapes; mathematically a no-op:
            # padded bias cols are 0, ReLU keeps them 0, padded weight rows
            # of the next layer are 0.
            w = jnp.pad(w, ((0, pad_in - fan_in), (0, pad_out - fan_out)))
            b = jnp.pad(b, ((0, 0), (0, pad_out - fan_out)))
            return w, b

        key, k1, k2, k3 = jax.random.split(key, 4)
        self.w1, self.b1 = linear(k1, d_in, 200, d_in, H1)
        self.w2, self.b2 = linear(k2, 200, 400, H1, H2)
        self.w3, self.b3 = linear(k3, 400, 768, H2, D_OUT)

        # Split fc1 weight by input block; z/noise are constant along the
        # length axis, so their fc1 contribution becomes a per-batch bias.
        # MXU weights are cast to bf16 once here (f32 copies kept for ref).
        ld = latent_dim
        self.w1_z = self.w1[:ld]
        self.w1_n = self.w1[ld + D_COND:]
        self.w1c_bf = self.w1[ld:ld + D_COND].astype(jnp.bfloat16)
        self.w2_bf = self.w2.astype(jnp.bfloat16)
        self.w3_bf = self.w3.astype(jnp.bfloat16)

    def __call__(self, z, condition, noise):
        # z: (B, latent_dim), condition: (B, 1, L, 1536), noise: (B, 768)
        B = z.shape[0]
        L = self.length
        # Effective fc1 bias per batch row (f32 compute, stored bf16).
        bias1 = z @ self.w1_z + noise @ self.w1_n + self.b1        # (B, H1)
        bias1_rows = jnp.broadcast_to(
            bias1.astype(jnp.bfloat16)[:, None, :],
            (B, L, H1)).reshape(B * L, H1)                         # (M, H1) bf16
        cond2d = condition.reshape(B * L, D_COND)                  # (M, 1536) f32
        out2d = decoder_mlp_pallas(cond2d, bias1_rows, self.w1c_bf,
                                   self.w2_bf, self.b2, self.w3_bf, self.b3)
        return out2d.reshape(-1, 1, L, D_OUT)

    def reference(self, z, condition, noise):
        # Pure-JAX f32 reference with the original concat form (PyTorch semantics).
        B = z.shape[0]
        L = self.length
        z_rep = jnp.broadcast_to(z[:, None, None, :], (B, 1, L, z.shape[-1]))
        n_rep = jnp.broadcast_to(noise[:, None, None, :],
                                 (B, 1, L, noise.shape[-1]))
        x = jnp.concatenate([z_rep, condition, n_rep], axis=-1)
        h1 = jax.nn.relu(x @ self.w1 + self.b1)
        h2 = jax.nn.relu(h1 @ self.w2 + self.b2)
        return jax.nn.sigmoid(h2 @ self.w3 + self.b3).reshape(-1, 1, L, D_OUT)


if __name__ == "__main__":
    import numpy as np

    latent_dim = 10
    length = 12          # M = B*L = 24 -> grid of 2 with a ragged last tile
    B = 2

    key = jax.random.PRNGKey(0)
    k_params, kz, kc, kn = jax.random.split(key, 4)

    dec = DecoderPallas(latent_dim=latent_dim, length=length, key=k_params)

    z = jax.random.normal(kz, (B, latent_dim), jnp.float32)
    condition = jax.random.normal(kc, (B, 1, length, 1536), jnp.float32)
    noise = jax.random.normal(kn, (B, 768), jnp.float32)

    out = jax.block_until_ready(dec(z, condition, noise))
    assert out.shape == (B, 1, length, 768), out.shape

    ref = jax.block_until_ready(dec.reference(z, condition, noise))
    # bf16 MXU operands (f32 accumulation) + split fc1 partial sums:
    # tolerance loosened accordingly (output is sigmoid-bounded in (0,1)).
    np.testing.assert_allclose(np.asarray(out), np.asarray(ref),
                               rtol=2e-2, atol=2e-2)

    print("KERNEL_OK")
</pallas_src>

<mosaic_0001>
module attributes {stable_mosaic.version = 11 : i64} {
  func.func @decoder_mlp_kernel(%arg0: i32, %arg1: memref<16x1536xf32, #tpu.memory_space<vmem>>, %arg2: memref<16x256xbf16, #tpu.memory_space<vmem>>, %arg3: memref<1536x256xbf16, #tpu.memory_space<vmem>>, %arg4: memref<256x512xbf16, #tpu.memory_space<vmem>>, %arg5: memref<1x512xf32, #tpu.memory_space<vmem>>, %arg6: memref<512x768xbf16, #tpu.memory_space<vmem>>, %arg7: memref<1x768xf32, #tpu.memory_space<vmem>>, %arg8: memref<16x768xf32, #tpu.memory_space<vmem>>) attributes {dimension_semantics = [#tpu.dimension_semantics<parallel>], iteration_bounds = array<i64: 2>, scalar_prefetch = 0 : i64, scratch_operands = 0 : i64, tpu.core_type = #tpu.core_type<tc>, window_params = [{transform_indices = @transform_0, window_bounds = array<i64: 16, 1536>}, {transform_indices = @transform_1, window_bounds = array<i64: 16, 256>}, {pipeline_mode = #tpu.pipeline_mode<synchronous>, transform_indices = @transform_2, window_bounds = array<i64: 1536, 256>}, {pipeline_mode = #tpu.pipeline_mode<synchronous>, transform_indices = @transform_3, window_bounds = array<i64: 256, 512>}, {pipeline_mode = #tpu.pipeline_mode<synchronous>, transform_indices = @transform_4, window_bounds = array<i64: 1, 512>}, {pipeline_mode = #tpu.pipeline_mode<synchronous>, transform_indices = @transform_5, window_bounds = array<i64: 512, 768>}, {pipeline_mode = #tpu.pipeline_mode<synchronous>, transform_indices = @transform_6, window_bounds = array<i64: 1, 768>}, {transform_indices = @transform_7, window_bounds = array<i64: 16, 768>}]} {
    %c0 = arith.constant 0 : index
    %c0_0 = arith.constant 0 : index
    %0 = vector.load %arg1[%c0, %c0_0] : memref<16x1536xf32, #tpu.memory_space<vmem>>, vector<16x1536xf32>
    %1 = arith.truncf %0 : vector<16x1536xf32> to vector<16x1536xbf16>
    %c0_1 = arith.constant 0 : index
    %c0_2 = arith.constant 0 : index
    %2 = vector.load %arg3[%c0_1, %c0_2] : memref<1536x256xbf16, #tpu.memory_space<vmem>>, vector<1536x256xbf16>
    %cst = arith.constant dense<0.000000e+00> : vector<16x256xf32>
    %3 = tpu.matmul %1, %2, %cst {dimension_numbers = #tpu.dot_dimension_numbers<[1], [0], [0], [1], [0, 0, 1, 1], [], []>} : vector<16x1536xbf16>, vector<1536x256xbf16>, vector<16x256xf32> -> vector<16x256xf32>
    %c0_3 = arith.constant 0 : index
    %c0_4 = arith.constant 0 : index
    %4 = vector.load %arg2[%c0_3, %c0_4] : memref<16x256xbf16, #tpu.memory_space<vmem>>, vector<16x256xbf16>
    %5 = arith.extf %4 : vector<16x256xbf16> to vector<16x256xf32>
    %6 = arith.addf %3, %5 : vector<16x256xf32>
    %cst_5 = arith.constant 0.000000e+00 : f32
    %7 = vector.broadcast %cst_5 : f32 to vector<16x256xf32>
    %8 = arith.maximumf %6, %7 : vector<16x256xf32>
    %9 = arith.truncf %8 : vector<16x256xf32> to vector<16x256xbf16>
    %c0_6 = arith.constant 0 : index
    %c0_7 = arith.constant 0 : index
    %10 = vector.load %arg4[%c0_6, %c0_7] : memref<256x512xbf16, #tpu.memory_space<vmem>>, vector<256x512xbf16>
    %cst_8 = arith.constant dense<0.000000e+00> : vector<16x512xf32>
    %11 = tpu.matmul %9, %10, %cst_8 {dimension_numbers = #tpu.dot_dimension_numbers<[1], [0], [0], [1], [0, 0, 1, 1], [], []>} : vector<16x256xbf16>, vector<256x512xbf16>, vector<16x512xf32> -> vector<16x512xf32>
    %c0_9 = arith.constant 0 : index
    %c0_10 = arith.constant 0 : index
    %12 = vector.load %arg5[%c0_9, %c0_10] : memref<1x512xf32, #tpu.memory_space<vmem>>, vector<1x512xf32>
    %13 = vector.broadcast %12 : vector<1x512xf32> to vector<16x512xf32>
    %14 = arith.addf %11, %13 : vector<16x512xf32>
    %cst_11 = arith.constant 0.000000e+00 : f32
    %15 = vector.broadcast %cst_11 : f32 to vector<16x512xf32>
    %16 = arith.maximumf %14, %15 : vector<16x512xf32>
    %17 = arith.truncf %16 : vector<16x512xf32> to vector<16x512xbf16>
    %c0_12 = arith.constant 0 : index
    %c0_13 = arith.constant 0 : index
    %18 = vector.load %arg6[%c0_12, %c0_13] : memref<512x768xbf16, #tpu.memory_space<vmem>>, vector<512x768xbf16>
    %cst_14 = arith.constant dense<0.000000e+00> : vector<16x768xf32>
    %19 = tpu.matmul %17, %18, %cst_14 {dimension_numbers = #tpu.dot_dimension_numbers<[1], [0], [0], [1], [0, 0, 1, 1], [], []>} : vector<16x512xbf16>, vector<512x768xbf16>, vector<16x768xf32> -> vector<16x768xf32>
    %c0_15 = arith.constant 0 : index
    %c0_16 = arith.constant 0 : index
    %20 = vector.load %arg7[%c0_15, %c0_16] : memref<1x768xf32, #tpu.memory_space<vmem>>, vector<1x768xf32>
    %21 = vector.broadcast %20 : vector<1x768xf32> to vector<16x768xf32>
    %22 = arith.addf %19, %21 : vector<16x768xf32>
    %23 = arith.negf %22 : vector<16x768xf32>
    %24 = math.exp %23 : vector<16x768xf32>
    %cst_17 = arith.constant 1.000000e+00 : f32
    %25 = vector.broadcast %cst_17 : f32 to vector<16x768xf32>
    %26 = arith.addf %25, %24 : vector<16x768xf32>
    %27 = arith.divf %25, %26 : vector<16x768xf32>
    %c0_18 = arith.constant 0 : index
    %c0_19 = arith.constant 0 : index
    %28 = vector.load %arg8[%c0_18, %c0_19] : memref<16x768xf32, #tpu.memory_space<vmem>>, vector<16x768xf32>
    tpu.vector_store %arg8[%c0_18, %c0_19], %27 {strides = array<i32>} : memref<16x768xf32, #tpu.memory_space<vmem>>, vector<16x768xf32>,
    return
  }
  func.func @transform_0(%arg0: i32) -> (i32, i32) {
    %c0_i32 = arith.constant 0 : i32
    %c0_i32_0 = arith.constant 0 : i32
    return %arg0, %c0_i32 : i32, i32
  }
  func.func @transform_1(%arg0: i32) -> (i32, i32) {
    %c0_i32 = arith.constant 0 : i32
    %c0_i32_0 = arith.constant 0 : i32
    return %arg0, %c0_i32 : i32, i32
  }
  func.func @transform_2(%arg0: i32) -> (i32, i32) {
    %c0_i32 = arith.constant 0 : i32
    %c0_i32_0 = arith.constant 0 : i32
    %c0_i32_1 = arith.constant 0 : i32
    return %c0_i32, %c0_i32_0 : i32, i32
  }
  func.func @transform_3(%arg0: i32) -> (i32, i32) {
    %c0_i32 = arith.constant 0 : i32
    %c0_i32_0 = arith.constant 0 : i32
    %c0_i32_1 = arith.constant 0 : i32
    return %c0_i32, %c0_i32_0 : i32, i32
  }
  func.func @transform_4(%arg0: i32) -> (i32, i32) {
    %c0_i32 = arith.constant 0 : i32
    %c0_i32_0 = arith.constant 0 : i32
    %c0_i32_1 = arith.constant 0 : i32
    return %c0_i32, %c0_i32_0 : i32, i32
  }
  func.func @transform_5(%arg0: i32) -> (i32, i32) {
    %c0_i32 = arith.constant 0 : i32
    %c0_i32_0 = arith.constant 0 : i32
    %c0_i32_1 = arith.constant 0 : i32
    return %c0_i32, %c0_i32_0 : i32, i32
  }
  func.func @transform_6(%arg0: i32) -> (i32, i32) {
    %c0_i32 = arith.constant 0 : i32
    %c0_i32_0 = arith.constant 0 : i32
    %c0_i32_1 = arith.constant 0 : i32
    return %c0_i32, %c0_i32_0 : i32, i32
  }
  func.func @transform_7(%arg0: i32) -> (i32, i32) {
    %c0_i32 = arith.constant 0 : i32
    %c0_i32_0 = arith.constant 0 : i32
    return %arg0, %c0_i32 : i32, i32
  }
}

</mosaic_0001>

<llo_original>
// kernel: tpu_custom_call.1
$region0: #{tpu_custom_call.1}
  #allocation0 [shape = 'u32[]', space=smem, size = 0x4, offset = 0x4, fixed_abs, tag = 'smem constant byte address 0x4 - core index']
  #allocation1 [shape = 'u32[72,128]{1,0:T(1,128)}', space=vmem, size = 0x9000, scoped, tag = 'internal scratch']
  %s0 = inlined_call_operand.hbm [shape: f32[24,1536], index: 0, kind: input, shape index: {}]
  %s1 = inlined_call_operand.hbm [shape: bf16[24,256], index: 1, kind: input, shape index: {}]
  %s2 = inlined_call_operand.hbm [shape: bf16[1536,256], index: 2, kind: input, shape index: {}]
  %s3 = inlined_call_operand.hbm [shape: bf16[256,512], index: 3, kind: input, shape index: {}]
  %s4 = inlined_call_operand.hbm [shape: f32[1,512], index: 4, kind: input, shape index: {}]
  %s5 = inlined_call_operand.hbm [shape: bf16[512,768], index: 5, kind: input, shape index: {}]
  %s6 = inlined_call_operand.hbm [shape: f32[1,768], index: 6, kind: input, shape index: {}]
  %s7 = inlined_call_operand.hbm [shape: f32[24,768], index: 7, kind: output, shape index: {}]
  %s8 = sld [smem:[#allocation0]]
  $region89: #{tpu_custom_call.1} parent=0
    _
  %s10 = ssub.s32 1, %s8
  %s11 = scalar_select 0, %s10, %s8
  $region1: #{tpu_custom_call.1} parent=0
    #allocation2 [shape = 'u8[196608]{0}', space=vmem, size = 0x30000, scoped, tag = 'input window, operand 0']
    #allocation3 [shape = 's32[2]{0}', space=sflag, size = 0x8, scoped, tag = 'scoped memory for tpu_custom_call.1']
    #allocation4 [shape = 's32[2]{0}', space=sflag, size = 0x8, scoped, tag = 'scoped memory for tpu_custom_call.1']
    #allocation5 [shape = 'u8[16384]{0}', space=vmem, size = 0x4000, scoped, tag = 'input window, operand 1']
    #allocation6 [shape = 's32[2]{0}', space=sflag, size = 0x8, scoped, tag = 'scoped memory for tpu_custom_call.1']
    #allocation7 [shape = 'u8[786432]{0}', space=vmem, size = 0xc0000, scoped, tag = 'input window, operand 2, single buffered']
    #allocation8 [shape = 'u8[262144]{0}', space=vmem, size = 0x40000, scoped, tag = 'input window, operand 3, single buffered']
    #allocation9 [shape = 's32[1]{0}', space=sflag, size = 0x4, scoped, tag = 'scoped memory for tpu_custom_call.1']
    #allocation10 [shape = 'u8[2048]{0}', space=vmem, size = 0x800, scoped, tag = 'input window, operand 4, single buffered']
    #allocation11 [shape = 'u8[786432]{0}', space=vmem, size = 0xc0000, scoped, tag = 'input window, operand 5, single buffered']
    #allocation12 [shape = 's32[1]{0}', space=sflag, size = 0x4, scoped, tag = 'scoped memory for tpu_custom_call.1']
    #allocation13 [shape = 'u8[3072]{0}', space=vmem, size = 0xc00, scoped, tag = 'input window, operand 6, single buffered']
    #allocation14 [shape = 'u8[98304]{0}', space=vmem, size = 0x18000, scoped, tag = 'output window, operand 0']
    %12 = vsyncpa [#allocation3], 0
    %s13 = scalar_lea.sflag [#allocation3], 1
    %14 = vsyncpa %s13, 0
    %15 = vsyncpa [#allocation6], 0
    %s16 = scalar_lea.sflag [#allocation6], 1
    %17 = vsyncpa %s16, 0
    %18 = vsyncpa [#allocation9], 0
    %19 = vsyncpa [#allocation12], 0
    %20 = vsyncpa [#allocation4], 0
    %s21 = scalar_lea.sflag [#allocation4], 1
    %22 = vsyncpa %s21, 0
    loop: start=0, step=1, limit=4
    $region2: #{tpu_custom_call.1} parent=1 // loop_pre_header
      _
    $region3: #{tpu_custom_call.1} parent=1 // loop_header
      %s24 = sphi 0, %s28
      %p25 = scmp.ge.s32.totalorder %s24, 4
      %s34 = sphi 0, %s36
      %s37 = sphi 0, %s34
      %s38 = sphi 0, %s37
      %s54 = sphi 0, %s38
      %s60 = sphi 0, %s62
      %s63 = sphi 0, %s60
      %s64 = sphi 0, %s63
      %s80 = sphi 0, %s64
      %s84 = sphi 0, %s84
      %s86 = sphi 0, %s84
      %s87 = sphi 0, %s86
      %s101 = sphi 0, %s87
      %s105 = sphi 0, %s105
      %s107 = sphi 0, %s105
      %s108 = sphi 0, %s107
      %s122 = sphi 0, %s108
      %s126 = sphi 0, %s126
      %s128 = sphi 0, %s126
      %s129 = sphi 0, %s128
      %s143 = sphi 0, %s129
      %s147 = sphi 0, %s147
      %s149 = sphi 0, %s147
      %s150 = sphi 0, %s149
      %s164 = sphi 0, %s150
      %s168 = sphi 0, %s168
      %s170 = sphi 0, %s168
      %s171 = sphi 0, %s170
      %s185 = sphi 0, %s171
      %s191 = sphi 0, %s193
      %s194 = sphi 0, %s191
      %s195 = sphi 0, %s194
      %s211 = sphi 0, %s195
    $region4: #{tpu_custom_call.1} parent=1 // loop_header_branch
      %27 = sbr.rel (%p25) target = $region8
    $region5: #{tpu_custom_call.1} parent=1 // loop_body
      %s29 = ssub.s32 %s24, 1
      %s30 = ssub.s32 %s24, 2
      %s31 = sadd.s32 %s24, 1
      %s32 = ssub.s32 %s24, %s31
      %p33 = scmp.eq.s32.totalorder %s32, 0
      %s35 = sadd.s32 %s34, 1
      %s36 = scalar_select %p33, %s34, %s35
      %p39 = pneg %p33
      %p40 = scmp.eq.s32.totalorder %s24, 1
      %p41 = por %p39, %p40
      %p42 = scmp.ne.s32.totalorder %s34, %s37
      %p43 = scmp.eq.s32.totalorder %s24, 0
      %p44 = por %p42, %p43
      %p45 = scmp.ne.s32.totalorder %s34, %s37
      %p46 = scmp.eq.s32.totalorder %s29, 1
      %p47 = por %p45, %p46
      %p48 = scmp.ne.s32.totalorder %s37, %s38
      %p49 = scmp.eq.s32.totalorder %s29, 0
      %p50 = por %p48, %p49
      %p51 = scmp.ne.s32.totalorder %s37, %s38
      %p52 = scmp.eq.s32.totalorder %s30, 1
      %p53 = por %p51, %p52
      %p55 = scmp.ne.s32.totalorder %s38, %s54
      %p56 = scmp.eq.s32.totalorder %s30, 0
      %p57 = por %p55, %p56
      %s58 = ssub.s32 %s24, %s31
      %p59 = scmp.eq.s32.totalorder %s58, 0
      %s61 = sadd.s32 %s60, 1
      %s62 = scalar_select %p59, %s60, %s61
      %p65 = pneg %p59
      %p66 = scmp.eq.s32.totalorder %s24, 1
      %p67 = por %p65, %p66
      %p68 = scmp.ne.s32.totalorder %s60, %s63
      %p69 = scmp.eq.s32.totalorder %s24, 0
      %p70 = por %p68, %p69
      %p71 = scmp.ne.s32.totalorder %s60, %s63
      %p72 = scmp.eq.s32.totalorder %s29, 1
      %p73 = por %p71, %p72
      %p74 = scmp.ne.s32.totalorder %s63, %s64
      %p75 = scmp.eq.s32.totalorder %s29, 0
      %p76 = por %p74, %p75
      %p77 = scmp.ne.s32.totalorder %s63, %s64
      %p78 = scmp.eq.s32.totalorder %s30, 1
      %p79 = por %p77, %p78
      %p81 = scmp.ne.s32.totalorder %s64, %s80
      %p82 = scmp.eq.s32.totalorder %s30, 0
      %p83 = por %p81, %p82
      %s85 = sadd.s32 %s84, 1
      %p88 = scmp.eq.s32.totalorder %s24, 1
      %p89 = scmp.ne.s32.totalorder %s84, %s86
      %p90 = scmp.eq.s32.totalorder %s24, 0
      %p91 = por %p89, %p90
      %p92 = scmp.ne.s32.totalorder %s84, %s86
      %p93 = scmp.eq.s32.totalorder %s29, 1
      %p94 = por %p92, %p93
      %p95 = scmp.ne.s32.totalorder %s86, %s87
      %p96 = scmp.eq.s32.totalorder %s29, 0
      %p97 = por %p95, %p96
      %p98 = scmp.ne.s32.totalorder %s86, %s87
      %p99 = scmp.eq.s32.totalorder %s30, 1
      %p100 = por %p98, %p99
      %p102 = scmp.ne.s32.totalorder %s87, %s101
      %p103 = scmp.eq.s32.totalorder %s30, 0
      %p104 = por %p102, %p103
      %s106 = sadd.s32 %s105, 1
      %p109 = scmp.eq.s32.totalorder %s24, 1
      %p110 = scmp.ne.s32.totalorder %s105, %s107
      %p111 = scmp.eq.s32.totalorder %s24, 0
      %p112 = por %p110, %p111
      %p113 = scmp.ne.s32.totalorder %s105, %s107
      %p114 = scmp.eq.s32.totalorder %s29, 1
      %p115 = por %p113, %p114
      %p116 = scmp.ne.s32.totalorder %s107, %s108
      %p117 = scmp.eq.s32.totalorder %s29, 0
      %p118 = por %p116, %p117
      %p119 = scmp.ne.s32.totalorder %s107, %s108
      %p120 = scmp.eq.s32.totalorder %s30, 1
      %p121 = por %p119, %p120
      %p123 = scmp.ne.s32.totalorder %s108, %s122
      %p124 = scmp.eq.s32.totalorder %s30, 0
      %p125 = por %p123, %p124
      %s127 = sadd.s32 %s126, 1
      %p130 = scmp.eq.s32.totalorder %s24, 1
      %p131 = scmp.ne.s32.totalorder %s126, %s128
      %p132 = scmp.eq.s32.totalorder %s24, 0
      %p133 = por %p131, %p132
      %p134 = scmp.ne.s32.totalorder %s126, %s128
      %p135 = scmp.eq.s32.totalorder %s29, 1
      %p136 = por %p134, %p135
      %p137 = scmp.ne.s32.totalorder %s128, %s129
      %p138 = scmp.eq.s32.totalorder %s29, 0
      %p139 = por %p137, %p138
      %p140 = scmp.ne.s32.totalorder %s128, %s129
      %p141 = scmp.eq.s32.totalorder %s30, 1
      %p142 = por %p140, %p141
      %p144 = scmp.ne.s32.totalorder %s129, %s143
      %p145 = scmp.eq.s32.totalorder %s30, 0
      %p146 = por %p144, %p145
      %s148 = sadd.s32 %s147, 1
      %p151 = scmp.eq.s32.totalorder %s24, 1
      %p152 = scmp.ne.s32.totalorder %s147, %s149
      %p153 = scmp.eq.s32.totalorder %s24, 0
      %p154 = por %p152, %p153
      %p155 = scmp.ne.s32.totalorder %s147, %s149
      %p156 = scmp.eq.s32.totalorder %s29, 1
      %p157 = por %p155, %p156
      %p158 = scmp.ne.s32.totalorder %s149, %s150
      %p159 = scmp.eq.s32.totalorder %s29, 0
      %p160 = por %p158, %p159
      %p161 = scmp.ne.s32.totalorder %s149, %s150
      %p162 = scmp.eq.s32.totalorder %s30, 1
      %p163 = por %p161, %p162
      %p165 = scmp.ne.s32.totalorder %s150, %s164
      %p166 = scmp.eq.s32.totalorder %s30, 0
      %p167 = por %p165, %p166
      %s169 = sadd.s32 %s168, 1
      %p172 = scmp.eq.s32.totalorder %s24, 1
      %p173 = scmp.ne.s32.totalorder %s168, %s170
      %p174 = scmp.eq.s32.totalorder %s24, 0
      %p175 = por %p173, %p174
      %p176 = scmp.ne.s32.totalorder %s168, %s170
      %p177 = scmp.eq.s32.totalorder %s29, 1
      %p178 = por %p176, %p177
      %p179 = scmp.ne.s32.totalorder %s170, %s171
      %p180 = scmp.eq.s32.totalorder %s29, 0
      %p181 = por %p179, %p180
      %p182 = scmp.ne.s32.totalorder %s170, %s171
      %p183 = scmp.eq.s32.totalorder %s30, 1
      %p184 = por %p182, %p183
      %p186 = scmp.ne.s32.totalorder %s171, %s185
      %p187 = scmp.eq.s32.totalorder %s30, 0
      %p188 = por %p186, %p187
      %s189 = ssub.s32 %s24, %s31
      %p190 = scmp.eq.s32.totalorder %s189, 0
      %s192 = sadd.s32 %s191, 1
      %s193 = scalar_select %p190, %s191, %s192
      %p196 = pneg %p190
      %p197 = scmp.eq.s32.totalorder %s24, 1
      %p198 = por %p196, %p197
      %p199 = scmp.ne.s32.totalorder %s191, %s194
      %p200 = scmp.eq.s32.totalorder %s24, 0
      %p201 = por %p199, %p200
      %p202 = scmp.ne.s32.totalorder %s191, %s194
      %p203 = scmp.eq.s32.totalorder %s29, 1
      %p204 = por %p202, %p203
      %p205 = scmp.ne.s32.totalorder %s194, %s195
      %p206 = scmp.eq.s32.totalorder %s29, 0
      %p207 = por %p205, %p206
      %p208 = scmp.ne.s32.totalorder %s194, %s195
      %p209 = scmp.eq.s32.totalorder %s30, 1
      %p210 = por %p208, %p209
      %p212 = scmp.ne.s32.totalorder %s195, %s211
      %p213 = scmp.eq.s32.totalorder %s30, 0
      %p214 = por %p212, %p213
      %p215 = scmp.le.s32.totalorder 1, %s24
      %p216 = scmp.lt.s32.totalorder %s24, 3
      %p217 = pnand %p215, %p216
      %p218 = pneg %p217
      // Predicated region
      $region9: #{tpu_custom_call.1} parent=5 // pred_check
        _
      $region10: #{tpu_custom_call.1} parent=5 // pred_check_branch
        %220 = sbr.rel (%p217) target = $region12
      $region11: #{tpu_custom_call.1} parent=5 // pred_region
        %s221 = ssub.s32 %s24, 1
        // Predicated region
        $region13: #{tpu_custom_call.1} parent=11 // pred_check
          %p222 = pneg %p97
        $region14: #{tpu_custom_call.1} parent=11 // pred_check_branch
          %224 = sbr.rel (%p222) target = $region16
        $region15: #{tpu_custom_call.1} parent=11 // pred_region
          %226 = vsyncadd [#allocation6], 0
          %s227 = sshll.u32 %s2, 4
          %s228 = int_to_ptr.hbm [resolvable:$true] %s227
          %s229 = sshll.u32 [#allocation7], 4
          %s230 = int_to_ptr.vmem [resolvable:$true] %s229
          %235 = dma.hbm_to_vmem [thread:$0]  %s228, 24576, %s230, [#allocation6], 128, 128, 8
        $region16: #{tpu_custom_call.1} parent=11 // pred_fallthru
          _
        // Predicated region
        $region17: #{tpu_custom_call.1} parent=11 // pred_check
          %p236 = pneg %p118
        $region18: #{tpu_custom_call.1} parent=11 // pred_check_branch
          %238 = sbr.rel (%p236) target = $region20
        $region19: #{tpu_custom_call.1} parent=11 // pred_region
          %240 = vsyncadd [#allocation9], 0
          %s241 = sshll.u32 %s3, 4
          %s242 = int_to_ptr.hbm [resolvable:$true] %s241
          %s243 = sshll.u32 [#allocation8], 4
          %s244 = int_to_ptr.vmem [resolvable:$true] %s243
          %249 = dma.hbm_to_vmem [thread:$0]  %s242, 8192, %s244, [#allocation9], 256, 256, 16
        $region20: #{tpu_custom_call.1} parent=11 // pred_fallthru
          _
        // Predicated region
        $region21: #{tpu_custom_call.1} parent=11 // pred_check
          %p250 = pneg %p139
        $region22: #{tpu_custom_call.1} parent=11 // pred_check_branch
          %252 = sbr.rel (%p250) target = $region24
        $region23: #{tpu_custom_call.1} parent=11 // pred_region
          %254 = vsyncadd [#allocation9], 0
          %s256 = sshll.u32 %s4, 4
          %s257 = int_to_ptr.hbm [resolvable:$true] %s256
          %s258 = sshll.u32 [#allocation10], 4
          %s259 = int_to_ptr.vmem [resolvable:$true] %s258
          %261 = dma.hbm_to_vmem [thread:$0]  %s257, 64, %s259, [#allocation9]
        $region24: #{tpu_custom_call.1} parent=11 // pred_fallthru
          _
        // Predicated region
        $region25: #{tpu_custom_call.1} parent=11 // pred_check
          %p262 = pneg %p160
        $region26: #{tpu_custom_call.1} parent=11 // pred_check_branch
          %264 = sbr.rel (%p262) target = $region28
        $region27: #{tpu_custom_call.1} parent=11 // pred_region
          %266 = vsyncadd [#allocation12], 0
          %s267 = sshll.u32 %s5, 4
          %s268 = int_to_ptr.hbm [resolvable:$true] %s267
          %s269 = sshll.u32 [#allocation11], 4
          %s270 = int_to_ptr.vmem [resolvable:$true] %s269
          %275 = dma.hbm_to_vmem [thread:$0]  %s268, 24576, %s270, [#allocation12], 384, 384, 24
        $region28: #{tpu_custom_call.1} parent=11 // pred_fallthru
          _
        // Predicated region
        $region29: #{tpu_custom_call.1} parent=11 // pred_check
          %p276 = pneg %p181
        $region30: #{tpu_custom_call.1} parent=11 // pred_check_branch
          %278 = sbr.rel (%p276) target = $region32
        $region31: #{tpu_custom_call.1} parent=11 // pred_region
          %280 = vsyncadd [#allocation12], 0
          %s282 = sshll.u32 %s6, 4
          %s283 = int_to_ptr.hbm [resolvable:$true] %s282
          %s284 = sshll.u32 [#allocation13], 4
          %s285 = int_to_ptr.vmem [resolvable:$true] %s284
          %287 = dma.hbm_to_vmem [thread:$0]  %s283, 96, %s285, [#allocation12]
        $region32: #{tpu_custom_call.1} parent=11 // pred_fallthru
          _
      $region12: #{tpu_custom_call.1} parent=5 // pred_fallthru
        _
      %p288 = scmp.lt.s32.totalorder %s24, 2
      // Predicated region
      $region33: #{tpu_custom_call.1} parent=5 // pred_check
        %p289 = pneg %p288
      $region34: #{tpu_custom_call.1} parent=5 // pred_check_branch
        %291 = sbr.rel (%p289) target = $region36
      $region35: #{tpu_custom_call.1} parent=5 // pred_region
        // Predicated region
        $region37: #{tpu_custom_call.1} parent=35 // pred_check
          %p292 = pneg %p44
        $region38: #{tpu_custom_call.1} parent=35 // pred_check_branch
          %294 = sbr.rel (%p292) target = $region40
        $region39: #{tpu_custom_call.1} parent=35 // pred_region
          %s295 = sand.u32 %s34, 1
          %s296 = scalar_lea.sflag [#allocation3], %s295
          %s297 = sand.u32 %s34, 1
          %s298 = smul.addr %s297, 192
          %s299 = scalar_lea.vmem [#allocation2], %s298
          %s300 = smul.u32 2, %s24
          %s301 = ssub.s32 3, %s300
          %p302 = scmp.lt.s32.totalorder %s301, 2
          %s303 = scalar_select %p302, %s301, 2
          %s304 = smul.u32 8, %s303
          %s305 = smul.u32 %s304, 12
          %s306 = ssub.s32 192, %s305
          %s307 = sshll.u32 %s306, 4
          %308 = vsyncadd %s296, %s307
          %p309 = scmp.ne.s32.totalorder 0, %s305
          %s310 = smul.addr %s300, 12
          %s311 = smul.addr %s310, 8
          %s312 = scalar_lea.hbm %s0, %s311
          %s313 = smul.u32 96, %s303
          %s314 = sshll.u32 %s312, 4
          %s315 = int_to_ptr.hbm [resolvable:$true] %s314
          %s316 = sshll.u32 %s299, 4
          %s317 = int_to_ptr.vmem [resolvable:$true] %s316
          %s318 = sshll.u32 %s313, 4
          %322 = dma.hbm_to_vmem [thread:$0]  (%p309), %s315, %s318, %s317, %s296, 1536, 1536, 96
        $region40: #{tpu_custom_call.1} parent=35 // pred_fallthru
          _
        // Predicated region
        $region41: #{tpu_custom_call.1} parent=35 // pred_check
          %p323 = pneg %p70
        $region42: #{tpu_custom_call.1} parent=35 // pred_check_branch
          %325 = sbr.rel (%p323) target = $region44
        $region43: #{tpu_custom_call.1} parent=35 // pred_region
          %s326 = sand.u32 %s24, 1
          %s327 = scalar_lea.sflag [#allocation6], %s326
          %s328 = sand.u32 %s60, 1
          %s329 = smul.addr %s328, 16
          %s330 = scalar_lea.vmem [#allocation5], %s329
          %s331 = smul.u32 2, %s24
          %s332 = ssub.s32 3, %s331
          %p333 = scmp.lt.s32.totalorder %s332, 2
          %s334 = scalar_select %p333, %s332, 2
          %s335 = smul.u32 4, %s334
          %s336 = smul.u32 %s335, 2
          %s337 = ssub.s32 16, %s336
          %s338 = sshll.u32 %s337, 4
          %339 = vsyncadd %s327, %s338
          %p340 = scmp.ne.s32.totalorder 0, %s336
          %s341 = smul.addr %s331, 2
          %s342 = smul.addr %s341, 4
          %s343 = scalar_lea.hbm %s1, %s342
          %s344 = smul.u32 8, %s334
          %s345 = sshll.u32 %s343, 4
          %s346 = int_to_ptr.hbm [resolvable:$true] %s345
          %s347 = sshll.u32 %s330, 4
          %s348 = int_to_ptr.vmem [resolvable:$true] %s347
          %s349 = sshll.u32 %s344, 4
          %353 = dma.hbm_to_vmem [thread:$0]  (%p340), %s346, %s349, %s348, %s327, 128, 128, 8
        $region44: #{tpu_custom_call.1} parent=35 // pred_fallthru
          _
      $region36: #{tpu_custom_call.1} parent=5 // pred_fallthru
        _
      %p354 = scmp.le.s32.totalorder 1, %s24
      %p355 = scmp.lt.s32.totalorder %s24, 3
      %p356 = pnand %p354, %p355
      %p357 = pneg %p356
      // Predicated region
      $region45: #{tpu_custom_call.1} parent=5 // pred_check
        _
      $region46: #{tpu_custom_call.1} parent=5 // pred_check_branch
        %359 = sbr.rel (%p356) target = $region48
      $region47: #{tpu_custom_call.1} parent=5 // pred_region
        %s360 = ssub.s32 %s24, 1
        %s361 = sand.u32 %s37, 1
        %s362 = scalar_lea.sflag [#allocation3], %s361
        %s363 = sand.u32 %s37, 1
        %s364 = smul.addr %s363, 192
        %s365 = scalar_lea.vmem [#allocation2], %s364
        // Predicated region
        $region49: #{tpu_custom_call.1} parent=47 // pred_check
          %p366 = pneg %p50
        $region50: #{tpu_custom_call.1} parent=47 // pred_check_branch
          %368 = sbr.rel (%p366) target = $region52
        $region51: #{tpu_custom_call.1} parent=47 // pred_region
          %370 = dma.done %s362, 3072
        $region52: #{tpu_custom_call.1} parent=47 // pred_fallthru
          _
        %s371 = sand.u32 %s29, 1
        %s372 = scalar_lea.sflag [#allocation6], %s371
        %s373 = sand.u32 %s63, 1
        %s374 = smul.addr %s373, 16
        %s375 = scalar_lea.vmem [#allocation5], %s374
        // Predicated region
        $region53: #{tpu_custom_call.1} parent=47 // pred_check
          %p376 = pneg %p76
        $region54: #{tpu_custom_call.1} parent=47 // pred_check_branch
          %378 = sbr.rel (%p376) target = $region56
        $region55: #{tpu_custom_call.1} parent=47 // pred_region
          %380 = dma.done %s372, 256
        $region56: #{tpu_custom_call.1} parent=47 // pred_fallthru
          _
        // Predicated region
        $region57: #{tpu_custom_call.1} parent=47 // pred_check
          %p381 = pneg %p97
        $region58: #{tpu_custom_call.1} parent=47 // pred_check_branch
          %383 = sbr.rel (%p381) target = $region60
        $region59: #{tpu_custom_call.1} parent=47 // pred_region
          %385 = dma.done [#allocation6], 24576
        $region60: #{tpu_custom_call.1} parent=47 // pred_fallthru
          _
        // Predicated region
        $region61: #{tpu_custom_call.1} parent=47 // pred_check
          %p386 = pneg %p118
        $region62: #{tpu_custom_call.1} parent=47 // pred_check_branch
          %388 = sbr.rel (%p386) target = $region64
        $region63: #{tpu_custom_call.1} parent=47 // pred_region
          %390 = dma.done [#allocation9], 8192
        $region64: #{tpu_custom_call.1} parent=47 // pred_fallthru
          _
        // Predicated region
        $region65: #{tpu_custom_call.1} parent=47 // pred_check
          %p391 = pneg %p139
        $region66: #{tpu_custom_call.1} parent=47 // pred_check_branch
          %393 = sbr.rel (%p391) target = $region68
        $region67: #{tpu_custom_call.1} parent=47 // pred_region
          %395 = dma.done [#allocation9], 64
        $region68: #{tpu_custom_call.1} parent=47 // pred_fallthru
          _
        // Predicated region
        $region69: #{tpu_custom_call.1} parent=47 // pred_check
          %p396 = pneg %p160
        $region70: #{tpu_custom_call.1} parent=47 // pred_check_branch
          %398 = sbr.rel (%p396) target = $region72
        $region71: #{tpu_custom_call.1} parent=47 // pred_region
          %400 = dma.done [#allocation12], 24576
        $region72: #{tpu_custom_call.1} parent=47 // pred_fallthru
          _
        // Predicated region
        $region73: #{tpu_custom_call.1} parent=47 // pred_check
          %p401 = pneg %p181
        $region74: #{tpu_custom_call.1} parent=47 // pred_check_branch
          %403 = sbr.rel (%p401) target = $region76
        $region75: #{tpu_custom_call.1} parent=47 // pred_region
          %405 = dma.done [#allocation12], 96
        $region76: #{tpu_custom_call.1} parent=47 // pred_fallthru
          _
        %s406 = sand.u32 %s37, 1
        %s407 = scalar_lea.sflag [#allocation3], %s406
        %s408 = sand.u32 %s37, 1
        %s409 = smul.addr %s408, 192
        %s410 = scalar_lea.vmem [#allocation2], %s409
        %p411 = pneg %p50
        %p412 = pneg %p47
        %s413 = sand.u32 %s29, 1
        %s414 = scalar_lea.sflag [#allocation6], %s413
        %s415 = sand.u32 %s63, 1
        %s416 = smul.addr %s415, 16
        %s417 = scalar_lea.vmem [#allocation5], %s416
        %p418 = pneg %p76
        %p419 = pneg %p73
        %p420 = pneg %p97
        %p421 = pneg %p94
        %p422 = pneg %p118
        %p423 = pneg %p115
        %p424 = pneg %p139
        %p425 = pneg %p136
        %p426 = pneg %p160
        %p427 = pneg %p157
        %p428 = pneg %p181
        %p429 = pneg %p178
        %p430 = pneg %p207
        %p431 = pneg %p204
        %s432 = sand.u32 %s194, 1
        %s433 = scalar_lea.sflag [#allocation4], %s432
        %s434 = sand.u32 %s194, 1
        %s435 = smul.addr %s434, 96
        %s436 = scalar_lea.vmem [#allocation14], %s435
        %s437 = smul.u32 2, %s29
        %s438 = ssub.s32 3, %s437
        %p439 = scmp.lt.s32.totalorder %s438, 2
        %s440 = scalar_select %p439, %s438, 2
        %s441 = smul.u32 8, %s440
        %s442 = smul.u32 %s441, 12
        %s443 = smul.u32 2, %s29
        %s444 = ssub.s32 3, %s443
        %p445 = scmp.lt.s32.totalorder %s444, 2
        %s446 = scalar_select %p445, %s444, 2
        %s447 = smul.u32 4, %s446
        %s448 = smul.u32 %s447, 2
        %s449 = smul.u32 2, %s29
        %s450 = ssub.s32 3, %s449
        %p451 = scmp.lt.s32.totalorder %s450, 2
        %s452 = scalar_select %p451, %s450, 2
        %s453 = smul.u32 8, %s452
        %s454 = smul.u32 %s453, 6
        %v455 = vld [vmem:[%s365] sm:$0xff]
        %v456 = vld [vmem:[%s365 + $0x8] sm:$0xff]
        %v457 = vld [vmem:[%s365 + $0x10] sm:$0xff]
        %v458 = vld [vmem:[%s365 + $0x18] sm:$0xff]
        %v459 = vld [vmem:[%s365 + $0x20] sm:$0xff]
        %v460 = vld [vmem:[%s365 + $0x28] sm:$0xff]
        %v461 = vld [vmem:[%s365 + $0x30] sm:$0xff]
        %v462 = vld [vmem:[%s365 + $0x38] sm:$0xff]
        %v463 = vld [vmem:[%s365 + $0x40] sm:$0xff]
        %v464 = vld [vmem:[%s365 + $0x48] sm:$0xff]
        %v465 = vld [vmem:[%s365 + $0x50] sm:$0xff]
        %v466 = vld [vmem:[%s365 + $0x58] sm:$0xff]
        %v467 = vld [vmem:[%s365 + $0x60] sm:$0xff]
        %v468 = vld [vmem:[%s365 + $0x68] sm:$0xff]
        %v469 = vld [vmem:[%s365 + $0x70] sm:$0xff]
        %v470 = vld [vmem:[%s365 + $0x78] sm:$0xff]
        %v471 = vld [vmem:[%s365 + $0x80] sm:$0xff]
        %v472 = vld [vmem:[%s365 + $0x88] sm:$0xff]
        %v473 = vld [vmem:[%s365 + $0x90] sm:$0xff]
        %v474 = vld [vmem:[%s365 + $0x98] sm:$0xff]
        %v475 = vld [vmem:[%s365 + $0xa0] sm:$0xff]
        %v476 = vld [vmem:[%s365 + $0xa8] sm:$0xff]
        %v477 = vld [vmem:[%s365 + $0xb0] sm:$0xff]
        %v478 = vld [vmem:[%s365 + $0xb8] sm:$0xff]
        %v479 = vpack.c.bf16 %v467, %v455
        %v480 = vpack.c.bf16 %v468, %v456
        %v481 = vpack.c.bf16 %v469, %v457
        %v482 = vpack.c.bf16 %v470, %v458
        %v483 = vpack.c.bf16 %v471, %v459
        %v484 = vpack.c.bf16 %v472, %v460
        %v485 = vpack.c.bf16 %v473, %v461
        %v486 = vpack.c.bf16 %v474, %v462
        %v487 = vpack.c.bf16 %v475, %v463
        %v488 = vpack.c.bf16 %v476, %v464
        %v489 = vpack.c.bf16 %v477, %v465
        %v490 = vpack.c.bf16 %v478, %v466
        %v491 = vld [vmem:[#allocation7] sm:$0xff]
        %v492 = vld [vmem:[#allocation7 + $0x8] sm:$0xff]
        %v493 = vld [vmem:[#allocation7 + $0x10] sm:$0xff]
        %v494 = vld [vmem:[#allocation7 + $0x18] sm:$0xff]
        %v495 = vld [vmem:[#allocation7 + $0x20] sm:$0xff]
        %v496 = vld [vmem:[#allocation7 + $0x28] sm:$0xff]
        %v497 = vld [vmem:[#allocation7 + $0x30] sm:$0xff]
        %v498 = vld [vmem:[#allocation7 + $0x38] sm:$0xff]
        %v499 = vld [vmem:[#allocation7 + $0x40] sm:$0xff]
        %v500 = vld [vmem:[#allocation7 + $0x48] sm:$0xff]
        %v501 = vld [vmem:[#allocation7 + $0x50] sm:$0xff]
        %v502 = vld [vmem:[#allocation7 + $0x58] sm:$0xff]
        %v503 = vld [vmem:[#allocation7 + $0x60] sm:$0xff]
        %v504 = vld [vmem:[#allocation7 + $0x68] sm:$0xff]
        %v505 = vld [vmem:[#allocation7 + $0x70] sm:$0xff]
        %v506 = vld [vmem:[#allocation7 + $0x78] sm:$0xff]
        %v507 = vld [vmem:[#allocation7 + $0x80] sm:$0xff]
        %v508 = vld [vmem:[#allocation7 + $0x88] sm:$0xff]
        %v509 = vld [vmem:[#allocation7 + $0x90] sm:$0xff]
        %v510 = vld [vmem:[#allocation7 + $0x98] sm:$0xff]
        %v511 = vld [vmem:[#allocation7 + $0xa0] sm:$0xff]
        %v512 = vld [vmem:[#allocation7 + $0xa8] sm:$0xff]
        %v513 = vld [vmem:[#allocation7 + $0xb0] sm:$0xff]
        %v514 = vld [vmem:[#allocation7 + $0xb8] sm:$0xff]
        %v515 = vld [vmem:[#allocation7 + $0xc0] sm:$0xff]
        %v516 = vld [vmem:[#allocation7 + $0xc8] sm:$0xff]
        %v517 = vld [vmem:[#allocation7 + $0xd0] sm:$0xff]
        %v518 = vld [vmem:[#allocation7 + $0xd8] sm:$0xff]
        %v519 = vld [vmem:[#allocation7 + $0xe0] sm:$0xff]
        %v520 = vld [vmem:[#allocation7 + $0xe8] sm:$0xff]
        %v521 = vld [vmem:[#allocation7 + $0xf0] sm:$0xff]
        %v522 = vld [vmem:[#allocation7 + $0xf8] sm:$0xff]
        %v523 = vld [vmem:[#allocation7 + $0x100] sm:$0xff]
        %v524 = vld [vmem:[#allocation7 + $0x108] sm:$0xff]
        %v525 = vld [vmem:[#allocation7 + $0x110] sm:$0xff]
        %v526 = vld [vmem:[#allocation7 + $0x118] sm:$0xff]
        %v527 = vld [vmem:[#allocation7 + $0x120] sm:$0xff]
        %v528 = vld [vmem:[#allocation7 + $0x128] sm:$0xff]
        %v529 = vld [vmem:[#allocation7 + $0x130] sm:$0xff]
        %v530 = vld [vmem:[#allocation7 + $0x138] sm:$0xff]
        %v531 = vld [vmem:[#allocation7 + $0x140] sm:$0xff]
        %v532 = vld [vmem:[#allocation7 + $0x148] sm:$0xff]
        %v533 = vld [vmem:[#allocation7 + $0x150] sm:$0xff]
        %v534 = vld [vmem:[#allocation7 + $0x158] sm:$0xff]
        %v535 = vld [vmem:[#allocation7 + $0x160] sm:$0xff]
        %v536 = vld [vmem:[#allocation7 + $0x168] sm:$0xff]
        %v537 = vld [vmem:[#allocation7 + $0x170] sm:$0xff]
        %v538 = vld [vmem:[#allocation7 + $0x178] sm:$0xff]
        %v539 = vld [vmem:[#allocation7 + $0x180] sm:$0xff]
        %v540 = vld [vmem:[#allocation7 + $0x188] sm:$0xff]
        %v541 = vld [vmem:[#allocation7 + $0x190] sm:$0xff]
        %v542 = vld [vmem:[#allocation7 + $0x198] sm:$0xff]
        %v543 = vld [vmem:[#allocation7 + $0x1a0] sm:$0xff]
        %v544 = vld [vmem:[#allocation7 + $0x1a8] sm:$0xff]
        %v545 = vld [vmem:[#allocation7 + $0x1b0] sm:$0xff]
        %v546 = vld [vmem:[#allocation7 + $0x1b8] sm:$0xff]
        %v547 = vld [vmem:[#allocation7 + $0x1c0] sm:$0xff]
        %v548 = vld [vmem:[#allocation7 + $0x1c8] sm:$0xff]
        %v549 = vld [vmem:[#allocation7 + $0x1d0] sm:$0xff]
        %v550 = vld [vmem:[#allocation7 + $0x1d8] sm:$0xff]
        %v551 = vld [vmem:[#allocation7 + $0x1e0] sm:$0xff]
        %v552 = vld [vmem:[#allocation7 + $0x1e8] sm:$0xff]
        %v553 = vld [vmem:[#allocation7 + $0x1f0] sm:$0xff]
        %v554 = vld [vmem:[#allocation7 + $0x1f8] sm:$0xff]
        %v555 = vld [vmem:[#allocation7 + $0x200] sm:$0xff]
        %v556 = vld [vmem:[#allocation7 + $0x208] sm:$0xff]
        %v557 = vld [vmem:[#allocation7 + $0x210] sm:$0xff]
        %v558 = vld [vmem:[#allocation7 + $0x218] sm:$0xff]
        %v559 = vld [vmem:[#allocation7 + $0x220] sm:$0xff]
        %v560 = vld [vmem:[#allocation7 + $0x228] sm:$0xff]
        %v561 = vld [vmem:[#allocation7 + $0x230] sm:$0xff]
        %v562 = vld [vmem:[#allocation7 + $0x238] sm:$0xff]
        %v563 = vld [vmem:[#allocation7 + $0x240] sm:$0xff]
        %v564 = vld [vmem:[#allocation7 + $0x248] sm:$0xff]
        %v565 = vld [vmem:[#allocation7 + $0x250] sm:$0xff]
        %v566 = vld [vmem:[#allocation7 + $0x258] sm:$0xff]
        %v567 = vld [vmem:[#allocation7 + $0x260] sm:$0xff]
        %v568 = vld [vmem:[#allocation7 + $0x268] sm:$0xff]
        %v569 = vld [vmem:[#allocation7 + $0x270] sm:$0xff]
        %v570 = vld [vmem:[#allocation7 + $0x278] sm:$0xff]
        %v571 = vld [vmem:[#allocation7 + $0x280] sm:$0xff]
        %v572 = vld [vmem:[#allocation7 + $0x288] sm:$0xff]
        %v573 = vld [vmem:[#allocation7 + $0x290] sm:$0xff]
        %v574 = vld [vmem:[#allocation7 + $0x298] sm:$0xff]
        %v575 = vld [vmem:[#allocation7 + $0x2a0] sm:$0xff]
        %v576 = vld [vmem:[#allocation7 + $0x2a8] sm:$0xff]
        %v577 = vld [vmem:[#allocation7 + $0x2b0] sm:$0xff]
        %v578 = vld [vmem:[#allocation7 + $0x2b8] sm:$0xff]
        %v579 = vld [vmem:[#allocation7 + $0x2c0] sm:$0xff]
        %v580 = vld [vmem:[#allocation7 + $0x2c8] sm:$0xff]
        %v581 = vld [vmem:[#allocation7 + $0x2d0] sm:$0xff]
        %v582 = vld [vmem:[#allocation7 + $0x2d8] sm:$0xff]
        %v583 = vld [vmem:[#allocation7 + $0x2e0] sm:$0xff]
        %v584 = vld [vmem:[#allocation7 + $0x2e8] sm:$0xff]
        %v585 = vld [vmem:[#allocation7 + $0x2f0] sm:$0xff]
        %v586 = vld [vmem:[#allocation7 + $0x2f8] sm:$0xff]
        %v587 = vld [vmem:[#allocation7 + $0x300] sm:$0xff]
        %v588 = vld [vmem:[#allocation7 + $0x308] sm:$0xff]
        %v589 = vld [vmem:[#allocation7 + $0x310] sm:$0xff]
        %v590 = vld [vmem:[#allocation7 + $0x318] sm:$0xff]
        %v591 = vld [vmem:[#allocation7 + $0x320] sm:$0xff]
        %v592 = vld [vmem:[#allocation7 + $0x328] sm:$0xff]
        %v593 = vld [vmem:[#allocation7 + $0x330] sm:$0xff]
        %v594 = vld [vmem:[#allocation7 + $0x338] sm:$0xff]
        %v595 = vld [vmem:[#allocation7 + $0x340] sm:$0xff]
        %v596 = vld [vmem:[#allocation7 + $0x348] sm:$0xff]
        %v597 = vld [vmem:[#allocation7 + $0x350] sm:$0xff]
        %v598 = vld [vmem:[#allocation7 + $0x358] sm:$0xff]
        %v599 = vld [vmem:[#allocation7 + $0x360] sm:$0xff]
        %v600 = vld [vmem:[#allocation7 + $0x368] sm:$0xff]
        %v601 = vld [vmem:[#allocation7 + $0x370] sm:$0xff]
        %v602 = vld [vmem:[#allocation7 + $0x378] sm:$0xff]
        %v603 = vld [vmem:[#allocation7 + $0x380] sm:$0xff]
        %v604 = vld [vmem:[#allocation7 + $0x388] sm:$0xff]
        %v605 = vld [vmem:[#allocation7 + $0x390] sm:$0xff]
        %v606 = vld [vmem:[#allocation7 + $0x398] sm:$0xff]
        %v607 = vld [vmem:[#allocation7 + $0x3a0] sm:$0xff]
        %v608 = vld [vmem:[#allocation7 + $0x3a8] sm:$0xff]
        %v609 = vld [vmem:[#allocation7 + $0x3b0] sm:$0xff]
        %v610 = vld [vmem:[#allocation7 + $0x3b8] sm:$0xff]
        %v611 = vld [vmem:[#allocation7 + $0x3c0] sm:$0xff]
        %v612 = vld [vmem:[#allocation7 + $0x3c8] sm:$0xff]
        %v613 = vld [vmem:[#allocation7 + $0x3d0] sm:$0xff]
        %v614 = vld [vmem:[#allocation7 + $0x3d8] sm:$0xff]
        %v615 = vld [vmem:[#allocation7 + $0x3e0] sm:$0xff]
        %v616 = vld [vmem:[#allocation7 + $0x3e8] sm:$0xff]
        %v617 = vld [vmem:[#allocation7 + $0x3f0] sm:$0xff]
        %v618 = vld [vmem:[#allocation7 + $0x3f8] sm:$0xff]
        %v619 = vld [vmem:[#allocation7 + $0x400] sm:$0xff]
        %v620 = vld [vmem:[#allocation7 + $0x408] sm:$0xff]
        %v621 = vld [vmem:[#allocation7 + $0x410] sm:$0xff]
        %v622 = vld [vmem:[#allocation7 + $0x418] sm:$0xff]
        %v623 = vld [vmem:[#allocation7 + $0x420] sm:$0xff]
        %v624 = vld [vmem:[#allocation7 + $0x428] sm:$0xff]
        %v625 = vld [vmem:[#allocation7 + $0x430] sm:$0xff]
        %v626 = vld [vmem:[#allocation7 + $0x438] sm:$0xff]
        %v627 = vld [vmem:[#allocation7 + $0x440] sm:$0xff]
        %v628 = vld [vmem:[#allocation7 + $0x448] sm:$0xff]
        %v629 = vld [vmem:[#allocation7 + $0x450] sm:$0xff]
        %v630 = vld [vmem:[#allocation7 + $0x458] sm:$0xff]
        %v631 = vld [vmem:[#allocation7 + $0x460] sm:$0xff]
        %v632 = vld [vmem:[#allocation7 + $0x468] sm:$0xff]
        %v633 = vld [vmem:[#allocation7 + $0x470] sm:$0xff]
        %v634 = vld [vmem:[#allocation7 + $0x478] sm:$0xff]
        %v635 = vld [vmem:[#allocation7 + $0x480] sm:$0xff]
        %v636 = vld [vmem:[#allocation7 + $0x488] sm:$0xff]
        %v637 = vld [vmem:[#allocation7 + $0x490] sm:$0xff]
        %v638 = vld [vmem:[#allocation7 + $0x498] sm:$0xff]
        %v639 = vld [vmem:[#allocation7 + $0x4a0] sm:$0xff]
        %v640 = vld [vmem:[#allocation7 + $0x4a8] sm:$0xff]
        %v641 = vld [vmem:[#allocation7 + $0x4b0] sm:$0xff]
        %v642 = vld [vmem:[#allocation7 + $0x4b8] sm:$0xff]
        %v643 = vld [vmem:[#allocation7 + $0x4c0] sm:$0xff]
        %v644 = vld [vmem:[#allocation7 + $0x4c8] sm:$0xff]
        %v645 = vld [vmem:[#allocation7 + $0x4d0] sm:$0xff]
        %v646 = vld [vmem:[#allocation7 + $0x4d8] sm:$0xff]
        %v647 = vld [vmem:[#allocation7 + $0x4e0] sm:$0xff]
        %v648 = vld [vmem:[#allocation7 + $0x4e8] sm:$0xff]
        %v649 = vld [vmem:[#allocation7 + $0x4f0] sm:$0xff]
        %v650 = vld [vmem:[#allocation7 + $0x4f8] sm:$0xff]
        %v651 = vld [vmem:[#allocation7 + $0x500] sm:$0xff]
        %v652 = vld [vmem:[#allocation7 + $0x508] sm:$0xff]
        %v653 = vld [vmem:[#allocation7 + $0x510] sm:$0xff]
        %v654 = vld [vmem:[#allocation7 + $0x518] sm:$0xff]
        %v655 = vld [vmem:[#allocation7 + $0x520] sm:$0xff]
        %v656 = vld [vmem:[#allocation7 + $0x528] sm:$0xff]
        %v657 = vld [vmem:[#allocation7 + $0x530] sm:$0xff]
        %v658 = vld [vmem:[#allocation7 + $0x538] sm:$0xff]
        %v659 = vld [vmem:[#allocation7 + $0x540] sm:$0xff]
        %v660 = vld [vmem:[#allocation7 + $0x548] sm:$0xff]
        %v661 = vld [vmem:[#allocation7 + $0x550] sm:$0xff]
        %v662 = vld [vmem:[#allocation7 + $0x558] sm:$0xff]
        %v663 = vld [vmem:[#allocation7 + $0x560] sm:$0xff]
        %v664 = vld [vmem:[#allocation7 + $0x568] sm:$0xff]
        %v665 = vld [vmem:[#allocation7 + $0x570] sm:$0xff]
        %v666 = vld [vmem:[#allocation7 + $0x578] sm:$0xff]
        %v667 = vld [vmem:[#allocation7 + $0x580] sm:$0xff]
        %v668 = vld [vmem:[#allocation7 + $0x588] sm:$0xff]
        %v669 = vld [vmem:[#allocation7 + $0x590] sm:$0xff]
        %v670 = vld [vmem:[#allocation7 + $0x598] sm:$0xff]
        %v671 = vld [vmem:[#allocation7 + $0x5a0] sm:$0xff]
        %v672 = vld [vmem:[#allocation7 + $0x5a8] sm:$0xff]
        %v673 = vld [vmem:[#allocation7 + $0x5b0] sm:$0xff]
        %v674 = vld [vmem:[#allocation7 + $0x5b8] sm:$0xff]
        %v675 = vld [vmem:[#allocation7 + $0x5c0] sm:$0xff]
        %v676 = vld [vmem:[#allocation7 + $0x5c8] sm:$0xff]
        %v677 = vld [vmem:[#allocation7 + $0x5d0] sm:$0xff]
        %v678 = vld [vmem:[#allocation7 + $0x5d8] sm:$0xff]
        %v679 = vld [vmem:[#allocation7 + $0x5e0] sm:$0xff]
        %v680 = vld [vmem:[#allocation7 + $0x5e8] sm:$0xff]
        %v681 = vld [vmem:[#allocation7 + $0x5f0] sm:$0xff]
        %v682 = vld [vmem:[#allocation7 + $0x5f8] sm:$0xff]
        %v683 = vld [vmem:[%s375] sm:$0xff]
        %v684 = vld [vmem:[%s375 + $0x8] sm:$0xff]
        %v685 = vunpack.c.l.bf16 %v683
        %v686 = vunpack.c.h.bf16 %v683
        %v687 = vunpack.c.l.bf16 %v684
        %v688 = vunpack.c.h.bf16 %v684
        %v881 = vunpack.c.l.b16 %v491
        %v882 = vunpack.c.h.b16 %v491
        %v883 = vunpack.c.l.b16 %v492
        %v884 = vunpack.c.h.b16 %v492
        %v885 = vunpack.c.l.b16 %v493
        %v886 = vunpack.c.h.b16 %v493
        %v887 = vunpack.c.l.b16 %v494
        %v888 = vunpack.c.h.b16 %v494
        %v889 = vunpack.c.l.b16 %v495
        %v890 = vunpack.c.h.b16 %v495
        %v891 = vunpack.c.l.b16 %v496
        %v892 = vunpack.c.h.b16 %v496
        %v893 = vunpack.c.l.b16 %v497
        %v894 = vunpack.c.h.b16 %v497
        %v895 = vunpack.c.l.b16 %v498
        %v896 = vunpack.c.h.b16 %v498
        %v897 = vunpack.c.l.b16 %v499
        %v898 = vunpack.c.h.b16 %v499
        %v899 = vunpack.c.l.b16 %v500
        %v900 = vunpack.c.h.b16 %v500
        %v901 = vunpack.c.l.b16 %v501
        %v902 = vunpack.c.h.b16 %v501
        %v903 = vunpack.c.l.b16 %v502
        %v904 = vunpack.c.h.b16 %v502
        %v905 = vunpack.c.l.b16 %v503
        %v906 = vunpack.c.h.b16 %v503
        %v907 = vunpack.c.l.b16 %v504
        %v908 = vunpack.c.h.b16 %v504
        %v909 = vunpack.c.l.b16 %v505
        %v910 = vunpack.c.h.b16 %v505
        %v911 = vunpack.c.l.b16 %v506
        %v912 = vunpack.c.h.b16 %v506
        %v913 = vunpack.c.l.b16 %v507
        %v914 = vunpack.c.h.b16 %v507
        %v915 = vunpack.c.l.b16 %v508
        %v916 = vunpack.c.h.b16 %v508
        %v917 = vunpack.c.l.b16 %v509
        %v918 = vunpack.c.h.b16 %v509
        %v919 = vunpack.c.l.b16 %v510
        %v920 = vunpack.c.h.b16 %v510
        %v921 = vunpack.c.l.b16 %v511
        %v922 = vunpack.c.h.b16 %v511
        %v923 = vunpack.c.l.b16 %v512
        %v924 = vunpack.c.h.b16 %v512
        %v925 = vunpack.c.l.b16 %v513
        %v926 = vunpack.c.h.b16 %v513
        %v927 = vunpack.c.l.b16 %v514
        %v928 = vunpack.c.h.b16 %v514
        %v929 = vunpack.c.l.b16 %v515
        %v930 = vunpack.c.h.b16 %v515
        %v931 = vunpack.c.l.b16 %v516
        %v932 = vunpack.c.h.b16 %v516
        %v933 = vunpack.c.l.b16 %v517
        %v934 = vunpack.c.h.b16 %v517
        %v935 = vunpack.c.l.b16 %v518
        %v936 = vunpack.c.h.b16 %v518
        %v937 = vunpack.c.l.b16 %v519
        %v938 = vunpack.c.h.b16 %v519
        %v939 = vunpack.c.l.b16 %v520
        %v940 = vunpack.c.h.b16 %v520
        %v941 = vunpack.c.l.b16 %v521
        %v942 = vunpack.c.h.b16 %v521
        %v943 = vunpack.c.l.b16 %v522
        %v944 = vunpack.c.h.b16 %v522
        %v945 = vunpack.c.l.b16 %v523
        %v946 = vunpack.c.h.b16 %v523
        %v947 = vunpack.c.l.b16 %v524
        %v948 = vunpack.c.h.b16 %v524
        %v949 = vunpack.c.l.b16 %v525
        %v950 = vunpack.c.h.b16 %v525
        %v951 = vunpack.c.l.b16 %v526
        %v952 = vunpack.c.h.b16 %v526
        %v953 = vunpack.c.l.b16 %v527
        %v954 = vunpack.c.h.b16 %v527
        %v955 = vunpack.c.l.b16 %v528
        %v956 = vunpack.c.h.b16 %v528
        %v957 = vunpack.c.l.b16 %v529
        %v958 = vunpack.c.h.b16 %v529
        %v959 = vunpack.c.l.b16 %v530
        %v960 = vunpack.c.h.b16 %v530
        %v961 = vunpack.c.l.b16 %v531
        %v962 = vunpack.c.h.b16 %v531
        %v963 = vunpack.c.l.b16 %v532
        %v964 = vunpack.c.h.b16 %v532
        %v965 = vunpack.c.l.b16 %v533
        %v966 = vunpack.c.h.b16 %v533
        %v967 = vunpack.c.l.b16 %v534
        %v968 = vunpack.c.h.b16 %v534
        %v969 = vunpack.c.l.b16 %v535
        %v970 = vunpack.c.h.b16 %v535
        %v971 = vunpack.c.l.b16 %v536
        %v972 = vunpack.c.h.b16 %v536
        %v973 = vunpack.c.l.b16 %v537
        %v974 = vunpack.c.h.b16 %v537
        %v975 = vunpack.c.l.b16 %v538
        %v976 = vunpack.c.h.b16 %v538
        %v977 = vunpack.c.l.b16 %v539
        %v978 = vunpack.c.h.b16 %v539
        %v979 = vunpack.c.l.b16 %v540
        %v980 = vunpack.c.h.b16 %v540
        %v981 = vunpack.c.l.b16 %v541
        %v982 = vunpack.c.h.b16 %v541
        %v983 = vunpack.c.l.b16 %v542
        %v984 = vunpack.c.h.b16 %v542
        %v985 = vunpack.c.l.b16 %v543
        %v986 = vunpack.c.h.b16 %v543
        %v987 = vunpack.c.l.b16 %v544
        %v988 = vunpack.c.h.b16 %v544
        %v989 = vunpack.c.l.b16 %v545
        %v990 = vunpack.c.h.b16 %v545
        %v991 = vunpack.c.l.b16 %v546
        %v992 = vunpack.c.h.b16 %v546
        %v993 = vunpack.c.l.b16 %v547
        %v994 = vunpack.c.h.b16 %v547
        %v995 = vunpack.c.l.b16 %v548
        %v996 = vunpack.c.h.b16 %v548
        %v997 = vunpack.c.l.b16 %v549
        %v998 = vunpack.c.h.b16 %v549
        %v999 = vunpack.c.l.b16 %v550
        %v1000 = vunpack.c.h.b16 %v550
        %v1001 = vunpack.c.l.b16 %v551
        %v1002 = vunpack.c.h.b16 %v551
        %v1003 = vunpack.c.l.b16 %v552
        %v1004 = vunpack.c.h.b16 %v552
        %v1005 = vunpack.c.l.b16 %v553
        %v1006 = vunpack.c.h.b16 %v553
        %v1007 = vunpack.c.l.b16 %v554
        %v1008 = vunpack.c.h.b16 %v554
        %v1009 = vunpack.c.l.b16 %v555
        %v1010 = vunpack.c.h.b16 %v555
        %v1011 = vunpack.c.l.b16 %v556
        %v1012 = vunpack.c.h.b16 %v556
        %v1013 = vunpack.c.l.b16 %v557
        %v1014 = vunpack.c.h.b16 %v557
        %v1015 = vunpack.c.l.b16 %v558
        %v1016 = vunpack.c.h.b16 %v558
        %v1017 = vunpack.c.l.b16 %v559
        %v1018 = vunpack.c.h.b16 %v559
        %v1019 = vunpack.c.l.b16 %v560
        %v1020 = vunpack.c.h.b16 %v560
        %v1021 = vunpack.c.l.b16 %v561
        %v1022 = vunpack.c.h.b16 %v561
        %v1023 = vunpack.c.l.b16 %v562
        %v1024 = vunpack.c.h.b16 %v562
        %v1025 = vunpack.c.l.b16 %v563
        %v1026 = vunpack.c.h.b16 %v563
        %v1027 = vunpack.c.l.b16 %v564
        %v1028 = vunpack.c.h.b16 %v564
        %v1029 = vunpack.c.l.b16 %v565
        %v1030 = vunpack.c.h.b16 %v565
        %v1031 = vunpack.c.l.b16 %v566
        %v1032 = vunpack.c.h.b16 %v566
        %v1033 = vunpack.c.l.b16 %v567
        %v1034 = vunpack.c.h.b16 %v567
        %v1035 = vunpack.c.l.b16 %v568
        %v1036 = vunpack.c.h.b16 %v568
        %v1037 = vunpack.c.l.b16 %v569
        %v1038 = vunpack.c.h.b16 %v569
        %v1039 = vunpack.c.l.b16 %v570
        %v1040 = vunpack.c.h.b16 %v570
        %v1041 = vunpack.c.l.b16 %v571
        %v1042 = vunpack.c.h.b16 %v571
        %v1043 = vunpack.c.l.b16 %v572
        %v1044 = vunpack.c.h.b16 %v572
        %v1045 = vunpack.c.l.b16 %v573
        %v1046 = vunpack.c.h.b16 %v573
        %v1047 = vunpack.c.l.b16 %v574
        %v1048 = vunpack.c.h.b16 %v574
        %v1049 = vunpack.c.l.b16 %v575
        %v1050 = vunpack.c.h.b16 %v575
        %v1051 = vunpack.c.l.b16 %v576
        %v1052 = vunpack.c.h.b16 %v576
        %v1053 = vunpack.c.l.b16 %v577
        %v1054 = vunpack.c.h.b16 %v577
        %v1055 = vunpack.c.l.b16 %v578
        %v1056 = vunpack.c.h.b16 %v578
        %v1057 = vunpack.c.l.b16 %v579
        %v1058 = vunpack.c.h.b16 %v579
        %v1059 = vunpack.c.l.b16 %v580
        %v1060 = vunpack.c.h.b16 %v580
        %v1061 = vunpack.c.l.b16 %v581
        %v1062 = vunpack.c.h.b16 %v581
        %v1063 = vunpack.c.l.b16 %v582
        %v1064 = vunpack.c.h.b16 %v582
        %v1065 = vunpack.c.l.b16 %v583
        %v1066 = vunpack.c.h.b16 %v583
        %v1067 = vunpack.c.l.b16 %v584
        %v1068 = vunpack.c.h.b16 %v584
        %v1069 = vunpack.c.l.b16 %v585
        %v1070 = vunpack.c.h.b16 %v585
        %v1071 = vunpack.c.l.b16 %v586
        %v1072 = vunpack.c.h.b16 %v586
        %v1073 = vunpack.c.l.b16 %v587
        %v1074 = vunpack.c.h.b16 %v587
        %v1075 = vunpack.c.l.b16 %v588
        %v1076 = vunpack.c.h.b16 %v588
        %v1077 = vunpack.c.l.b16 %v589
        %v1078 = vunpack.c.h.b16 %v589
        %v1079 = vunpack.c.l.b16 %v590
        %v1080 = vunpack.c.h.b16 %v590
        %v1081 = vunpack.c.l.b16 %v591
        %v1082 = vunpack.c.h.b16 %v591
        %v1083 = vunpack.c.l.b16 %v592
        %v1084 = vunpack.c.h.b16 %v592
        %v1085 = vunpack.c.l.b16 %v593
        %v1086 = vunpack.c.h.b16 %v593
        %v1087 = vunpack.c.l.b16 %v594
        %v1088 = vunpack.c.h.b16 %v594
        %v1089 = vunpack.c.l.b16 %v595
        %v1090 = vunpack.c.h.b16 %v595
        %v1091 = vunpack.c.l.b16 %v596
        %v1092 = vunpack.c.h.b16 %v596
        %v1093 = vunpack.c.l.b16 %v597
        %v1094 = vunpack.c.h.b16 %v597
        %v1095 = vunpack.c.l.b16 %v598
        %v1096 = vunpack.c.h.b16 %v598
        %v1097 = vunpack.c.l.b16 %v599
        %v1098 = vunpack.c.h.b16 %v599
        %v1099 = vunpack.c.l.b16 %v600
        %v1100 = vunpack.c.h.b16 %v600
        %v1101 = vunpack.c.l.b16 %v601
        %v1102 = vunpack.c.h.b16 %v601
        %v1103 = vunpack.c.l.b16 %v602
        %v1104 = vunpack.c.h.b16 %v602
        %v1105 = vunpack.c.l.b16 %v603
        %v1106 = vunpack.c.h.b16 %v603
        %v1107 = vunpack.c.l.b16 %v604
        %v1108 = vunpack.c.h.b16 %v604
        %v1109 = vunpack.c.l.b16 %v605
        %v1110 = vunpack.c.h.b16 %v605
        %v1111 = vunpack.c.l.b16 %v606
        %v1112 = vunpack.c.h.b16 %v606
        %v1113 = vunpack.c.l.b16 %v607
        %v1114 = vunpack.c.h.b16 %v607
        %v1115 = vunpack.c.l.b16 %v608
        %v1116 = vunpack.c.h.b16 %v608
        %v1117 = vunpack.c.l.b16 %v609
        %v1118 = vunpack.c.h.b16 %v609
        %v1119 = vunpack.c.l.b16 %v610
        %v1120 = vunpack.c.h.b16 %v610
        %v1121 = vunpack.c.l.b16 %v611
        %v1122 = vunpack.c.h.b16 %v611
        %v1123 = vunpack.c.l.b16 %v612
        %v1124 = vunpack.c.h.b16 %v612
        %v1125 = vunpack.c.l.b16 %v613
        %v1126 = vunpack.c.h.b16 %v613
        %v1127 = vunpack.c.l.b16 %v614
        %v1128 = vunpack.c.h.b16 %v614
        %v1129 = vunpack.c.l.b16 %v615
        %v1130 = vunpack.c.h.b16 %v615
        %v1131 = vunpack.c.l.b16 %v616
        %v1132 = vunpack.c.h.b16 %v616
        %v1133 = vunpack.c.l.b16 %v617
        %v1134 = vunpack.c.h.b16 %v617
        %v1135 = vunpack.c.l.b16 %v618
        %v1136 = vunpack.c.h.b16 %v618
        %v1137 = vunpack.c.l.b16 %v619
        %v1138 = vunpack.c.h.b16 %v619
        %v1139 = vunpack.c.l.b16 %v620
        %v1140 = vunpack.c.h.b16 %v620
        %v1141 = vunpack.c.l.b16 %v621
        %v1142 = vunpack.c.h.b16 %v621
        %v1143 = vunpack.c.l.b16 %v622
        %v1144 = vunpack.c.h.b16 %v622
        %v1145 = vunpack.c.l.b16 %v623
        %v1146 = vunpack.c.h.b16 %v623
        %v1147 = vunpack.c.l.b16 %v624
        %v1148 = vunpack.c.h.b16 %v624
        %v1149 = vunpack.c.l.b16 %v625
        %v1150 = vunpack.c.h.b16 %v625
        %v1151 = vunpack.c.l.b16 %v626
        %v1152 = vunpack.c.h.b16 %v626
        %v1153 = vunpack.c.l.b16 %v627
        %v1154 = vunpack.c.h.b16 %v627
        %v1155 = vunpack.c.l.b16 %v628
        %v1156 = vunpack.c.h.b16 %v628
        %v1157 = vunpack.c.l.b16 %v629
        %v1158 = vunpack.c.h.b16 %v629
        %v1159 = vunpack.c.l.b16 %v630
        %v1160 = vunpack.c.h.b16 %v630
        %v1161 = vunpack.c.l.b16 %v631
        %v1162 = vunpack.c.h.b16 %v631
        %v1163 = vunpack.c.l.b16 %v632
        %v1164 = vunpack.c.h.b16 %v632
        %v1165 = vunpack.c.l.b16 %v633
        %v1166 = vunpack.c.h.b16 %v633
        %v1167 = vunpack.c.l.b16 %v634
        %v1168 = vunpack.c.h.b16 %v634
        %v1169 = vunpack.c.l.b16 %v635
        %v1170 = vunpack.c.h.b16 %v635
        %v1171 = vunpack.c.l.b16 %v636
        %v1172 = vunpack.c.h.b16 %v636
        %v1173 = vunpack.c.l.b16 %v637
        %v1174 = vunpack.c.h.b16 %v637
        %v1175 = vunpack.c.l.b16 %v638
        %v1176 = vunpack.c.h.b16 %v638
        %v1177 = vunpack.c.l.b16 %v639
        %v1178 = vunpack.c.h.b16 %v639
        %v1179 = vunpack.c.l.b16 %v640
        %v1180 = vunpack.c.h.b16 %v640
        %v1181 = vunpack.c.l.b16 %v641
        %v1182 = vunpack.c.h.b16 %v641
        %v1183 = vunpack.c.l.b16 %v642
        %v1184 = vunpack.c.h.b16 %v642
        %v1185 = vunpack.c.l.b16 %v643
        %v1186 = vunpack.c.h.b16 %v643
        %v1187 = vunpack.c.l.b16 %v644
        %v1188 = vunpack.c.h.b16 %v644
        %v1189 = vunpack.c.l.b16 %v645
        %v1190 = vunpack.c.h.b16 %v645
        %v1191 = vunpack.c.l.b16 %v646
        %v1192 = vunpack.c.h.b16 %v646
        %v1193 = vunpack.c.l.b16 %v647
        %v1194 = vunpack.c.h.b16 %v647
        %v1195 = vunpack.c.l.b16 %v648
        %v1196 = vunpack.c.h.b16 %v648
        %v1197 = vunpack.c.l.b16 %v649
        %v1198 = vunpack.c.h.b16 %v649
        %v1199 = vunpack.c.l.b16 %v650
        %v1200 = vunpack.c.h.b16 %v650
        %v1201 = vunpack.c.l.b16 %v651
        %v1202 = vunpack.c.h.b16 %v651
        %v1203 = vunpack.c.l.b16 %v652
        %v1204 = vunpack.c.h.b16 %v652
        %v1205 = vunpack.c.l.b16 %v653
        %v1206 = vunpack.c.h.b16 %v653
        %v1207 = vunpack.c.l.b16 %v654
        %v1208 = vunpack.c.h.b16 %v654
        %v1209 = vunpack.c.l.b16 %v655
        %v1210 = vunpack.c.h.b16 %v655
        %v1211 = vunpack.c.l.b16 %v656
        %v1212 = vunpack.c.h.b16 %v656
        %v1213 = vunpack.c.l.b16 %v657
        %v1214 = vunpack.c.h.b16 %v657
        %v1215 = vunpack.c.l.b16 %v658
        %v1216 = vunpack.c.h.b16 %v658
        %v1217 = vunpack.c.l.b16 %v659
        %v1218 = vunpack.c.h.b16 %v659
        %v1219 = vunpack.c.l.b16 %v660
        %v1220 = vunpack.c.h.b16 %v660
        %v1221 = vunpack.c.l.b16 %v661
        %v1222 = vunpack.c.h.b16 %v661
        %v1223 = vunpack.c.l.b16 %v662
        %v1224 = vunpack.c.h.b16 %v662
        %v1225 = vunpack.c.l.b16 %v663
        %v1226 = vunpack.c.h.b16 %v663
        %v1227 = vunpack.c.l.b16 %v664
        %v1228 = vunpack.c.h.b16 %v664
        %v1229 = vunpack.c.l.b16 %v665
        %v1230 = vunpack.c.h.b16 %v665
        %v1231 = vunpack.c.l.b16 %v666
        %v1232 = vunpack.c.h.b16 %v666
        %v1233 = vunpack.c.l.b16 %v667
        %v1234 = vunpack.c.h.b16 %v667
        %v1235 = vunpack.c.l.b16 %v668
        %v1236 = vunpack.c.h.b16 %v668
        %v1237 = vunpack.c.l.b16 %v669
        %v1238 = vunpack.c.h.b16 %v669
        %v1239 = vunpack.c.l.b16 %v670
        %v1240 = vunpack.c.h.b16 %v670
        %v1241 = vunpack.c.l.b16 %v671
        %v1242 = vunpack.c.h.b16 %v671
        %v1243 = vunpack.c.l.b16 %v672
        %v1244 = vunpack.c.h.b16 %v672
        %v1245 = vunpack.c.l.b16 %v673
        %v1246 = vunpack.c.h.b16 %v673
        %v1247 = vunpack.c.l.b16 %v674
        %v1248 = vunpack.c.h.b16 %v674
        %v1249 = vunpack.c.l.b16 %v675
        %v1250 = vunpack.c.h.b16 %v675
        %v1251 = vunpack.c.l.b16 %v676
        %v1252 = vunpack.c.h.b16 %v676
        %v1253 = vunpack.c.l.b16 %v677
        %v1254 = vunpack.c.h.b16 %v677
        %v1255 = vunpack.c.l.b16 %v678
        %v1256 = vunpack.c.h.b16 %v678
        %v1257 = vunpack.c.l.b16 %v679
        %v1258 = vunpack.c.h.b16 %v679
        %v1259 = vunpack.c.l.b16 %v680
        %v1260 = vunpack.c.h.b16 %v680
        %v1261 = vunpack.c.l.b16 %v681
        %v1262 = vunpack.c.h.b16 %v681
        %v1263 = vunpack.c.l.b16 %v682
        %v1264 = vunpack.c.h.b16 %v682
        %v1265 = vpack.c.b16 %v883, %v881
        %v1266 = vpack.c.b16 %v884, %v882
        %v1267 = vpack.c.b16 %v887, %v885
        %v1268 = vpack.c.b16 %v888, %v886
        %v1269 = vpack.c.b16 %v891, %v889
        %v1270 = vpack.c.b16 %v892, %v890
        %v1271 = vpack.c.b16 %v895, %v893
        %v1272 = vpack.c.b16 %v896, %v894
        %v1273 = vpack.c.b16 %v899, %v897
        %v1274 = vpack.c.b16 %v900, %v898
        %v1275 = vpack.c.b16 %v903, %v901
        %v1276 = vpack.c.b16 %v904, %v902
        %v1277 = vpack.c.b16 %v907, %v905
        %v1278 = vpack.c.b16 %v908, %v906
        %v1279 = vpack.c.b16 %v911, %v909
        %v1280 = vpack.c.b16 %v912, %v910
        %v1281 = vpack.c.b16 %v915, %v913
        %v1282 = vpack.c.b16 %v916, %v914
        %v1283 = vpack.c.b16 %v919, %v917
        %v1284 = vpack.c.b16 %v920, %v918
        %v1285 = vpack.c.b16 %v923, %v921
        %v1286 = vpack.c.b16 %v924, %v922
        %v1287 = vpack.c.b16 %v927, %v925
        %v1288 = vpack.c.b16 %v928, %v926
        %v1289 = vpack.c.b16 %v931, %v929
        %v1290 = vpack.c.b16 %v932, %v930
        %v1291 = vpack.c.b16 %v935, %v933
        %v1292 = vpack.c.b16 %v936, %v934
        %v1293 = vpack.c.b16 %v939, %v937
        %v1294 = vpack.c.b16 %v940, %v938
        %v1295 = vpack.c.b16 %v943, %v941
        %v1296 = vpack.c.b16 %v944, %v942
        %v1297 = vpack.c.b16 %v947, %v945
        %v1298 = vpack.c.b16 %v948, %v946
        %v1299 = vpack.c.b16 %v951, %v949
        %v1300 = vpack.c.b16 %v952, %v950
        %v1301 = vpack.c.b16 %v955, %v953
        %v1302 = vpack.c.b16 %v956, %v954
        %v1303 = vpack.c.b16 %v959, %v957
        %v1304 = vpack.c.b16 %v960, %v958
        %v1305 = vpack.c.b16 %v963, %v961
        %v1306 = vpack.c.b16 %v964, %v962
        %v1307 = vpack.c.b16 %v967, %v965
        %v1308 = vpack.c.b16 %v968, %v966
        %v1309 = vpack.c.b16 %v971, %v969
        %v1310 = vpack.c.b16 %v972, %v970
        %v1311 = vpack.c.b16 %v975, %v973
        %v1312 = vpack.c.b16 %v976, %v974
        %v1313 = vpack.c.b16 %v979, %v977
        %v1314 = vpack.c.b16 %v980, %v978
        %v1315 = vpack.c.b16 %v983, %v981
        %v1316 = vpack.c.b16 %v984, %v982
        %v1317 = vpack.c.b16 %v987, %v985
        %v1318 = vpack.c.b16 %v988, %v986
        %v1319 = vpack.c.b16 %v991, %v989
        %v1320 = vpack.c.b16 %v992, %v990
        %v1321 = vpack.c.b16 %v995, %v993
        %v1322 = vpack.c.b16 %v996, %v994
        %v1323 = vpack.c.b16 %v999, %v997
        %v1324 = vpack.c.b16 %v1000, %v998
        %v1325 = vpack.c.b16 %v1003, %v1001
        %v1326 = vpack.c.b16 %v1004, %v1002
        %v1327 = vpack.c.b16 %v1007, %v1005
        %v1328 = vpack.c.b16 %v1008, %v1006
        %v1329 = vpack.c.b16 %v1011, %v1009
        %v1330 = vpack.c.b16 %v1012, %v1010
        %v1331 = vpack.c.b16 %v1015, %v1013
        %v1332 = vpack.c.b16 %v1016, %v1014
        %v1333 = vpack.c.b16 %v1019, %v1017
        %v1334 = vpack.c.b16 %v1020, %v1018
        %v1335 = vpack.c.b16 %v1023, %v1021
        %v1336 = vpack.c.b16 %v1024, %v1022
        %v1337 = vpack.c.b16 %v1027, %v1025
        %v1338 = vpack.c.b16 %v1028, %v1026
        %v1339 = vpack.c.b16 %v1031, %v1029
        %v1340 = vpack.c.b16 %v1032, %v1030
        %v1341 = vpack.c.b16 %v1035, %v1033
        %v1342 = vpack.c.b16 %v1036, %v1034
        %v1343 = vpack.c.b16 %v1039, %v1037
        %v1344 = vpack.c.b16 %v1040, %v1038
        %v1345 = vpack.c.b16 %v1043, %v1041
        %v1346 = vpack.c.b16 %v1044, %v1042
        %v1347 = vpack.c.b16 %v1047, %v1045
        %v1348 = vpack.c.b16 %v1048, %v1046
        %v1349 = vpack.c.b16 %v1051, %v1049
        %v1350 = vpack.c.b16 %v1052, %v1050
        %v1351 = vpack.c.b16 %v1055, %v1053
        %v1352 = vpack.c.b16 %v1056, %v1054
        %v1353 = vpack.c.b16 %v1059, %v1057
        %v1354 = vpack.c.b16 %v1060, %v1058
        %v1355 = vpack.c.b16 %v1063, %v1061
        %v1356 = vpack.c.b16 %v1064, %v1062
        %v1357 = vpack.c.b16 %v1067, %v1065
        %v1358 = vpack.c.b16 %v1068, %v1066
        %v1359 = vpack.c.b16 %v1071, %v1069
        %v1360 = vpack.c.b16 %v1072, %v1070
        %v1361 = vpack.c.b16 %v1075, %v1073
        %v1362 = vpack.c.b16 %v1076, %v1074
        %v1363 = vpack.c.b16 %v1079, %v1077
        %v1364 = vpack.c.b16 %v1080, %v1078
        %v1365 = vpack.c.b16 %v1083, %v1081
        %v1366 = vpack.c.b16 %v1084, %v1082
        %v1367 = vpack.c.b16 %v1087, %v1085
        %v1368 = vpack.c.b16 %v1088, %v1086
        %v1369 = vpack.c.b16 %v1091, %v1089
        %v1370 = vpack.c.b16 %v1092, %v1090
        %v1371 = vpack.c.b16 %v1095, %v1093
        %v1372 = vpack.c.b16 %v1096, %v1094
        %v1373 = vpack.c.b16 %v1099, %v1097
        %v1374 = vpack.c.b16 %v1100, %v1098
        %v1375 = vpack.c.b16 %v1103, %v1101
        %v1376 = vpack.c.b16 %v1104, %v1102
        %v1377 = vpack.c.b16 %v1107, %v1105
        %v1378 = vpack.c.b16 %v1108, %v1106
        %v1379 = vpack.c.b16 %v1111, %v1109
        %v1380 = vpack.c.b16 %v1112, %v1110
        %v1381 = vpack.c.b16 %v1115, %v1113
        %v1382 = vpack.c.b16 %v1116, %v1114
        %v1383 = vpack.c.b16 %v1119, %v1117
        %v1384 = vpack.c.b16 %v1120, %v1118
        %v1385 = vpack.c.b16 %v1123, %v1121
        %v1386 = vpack.c.b16 %v1124, %v1122
        %v1387 = vpack.c.b16 %v1127, %v1125
        %v1388 = vpack.c.b16 %v1128, %v1126
        %v1389 = vpack.c.b16 %v1131, %v1129
        %v1390 = vpack.c.b16 %v1132, %v1130
        %v1391 = vpack.c.b16 %v1135, %v1133
        %v1392 = vpack.c.b16 %v1136, %v1134
        %v1393 = vpack.c.b16 %v1139, %v1137
        %v1394 = vpack.c.b16 %v1140, %v1138
        %v1395 = vpack.c.b16 %v1143, %v1141
        %v1396 = vpack.c.b16 %v1144, %v1142
        %v1397 = vpack.c.b16 %v1147, %v1145
        %v1398 = vpack.c.b16 %v1148, %v1146
        %v1399 = vpack.c.b16 %v1151, %v1149
        %v1400 = vpack.c.b16 %v1152, %v1150
        %v1401 = vpack.c.b16 %v1155, %v1153
        %v1402 = vpack.c.b16 %v1156, %v1154
        %v1403 = vpack.c.b16 %v1159, %v1157
        %v1404 = vpack.c.b16 %v1160, %v1158
        %v1405 = vpack.c.b16 %v1163, %v1161
        %v1406 = vpack.c.b16 %v1164, %v1162
        %v1407 = vpack.c.b16 %v1167, %v1165
        %v1408 = vpack.c.b16 %v1168, %v1166
        %v1409 = vpack.c.b16 %v1171, %v1169
        %v1410 = vpack.c.b16 %v1172, %v1170
        %v1411 = vpack.c.b16 %v1175, %v1173
        %v1412 = vpack.c.b16 %v1176, %v1174
        %v1413 = vpack.c.b16 %v1179, %v1177
        %v1414 = vpack.c.b16 %v1180, %v1178
        %v1415 = vpack.c.b16 %v1183, %v1181
        %v1416 = vpack.c.b16 %v1184, %v1182
        %v1417 = vpack.c.b16 %v1187, %v1185
        %v1418 = vpack.c.b16 %v1188, %v1186
        %v1419 = vpack.c.b16 %v1191, %v1189
        %v1420 = vpack.c.b16 %v1192, %v1190
        %v1421 = vpack.c.b16 %v1195, %v1193
        %v1422 = vpack.c.b16 %v1196, %v1194
        %v1423 = vpack.c.b16 %v1199, %v1197
        %v1424 = vpack.c.b16 %v1200, %v1198
        %v1425 = vpack.c.b16 %v1203, %v1201
        %v1426 = vpack.c.b16 %v1204, %v1202
        %v1427 = vpack.c.b16 %v1207, %v1205
        %v1428 = vpack.c.b16 %v1208, %v1206
        %v1429 = vpack.c.b16 %v1211, %v1209
        %v1430 = vpack.c.b16 %v1212, %v1210
        %v1431 = vpack.c.b16 %v1215, %v1213
        %v1432 = vpack.c.b16 %v1216, %v1214
        %v1433 = vpack.c.b16 %v1219, %v1217
        %v1434 = vpack.c.b16 %v1220, %v1218
        %v1435 = vpack.c.b16 %v1223, %v1221
        %v1436 = vpack.c.b16 %v1224, %v1222
        %v1437 = vpack.c.b16 %v1227, %v1225
        %v1438 = vpack.c.b16 %v1228, %v1226
        %v1439 = vpack.c.b16 %v1231, %v1229
        %v1440 = vpack.c.b16 %v1232, %v1230
        %v1441 = vpack.c.b16 %v1235, %v1233
        %v1442 = vpack.c.b16 %v1236, %v1234
        %v1443 = vpack.c.b16 %v1239, %v1237
        %v1444 = vpack.c.b16 %v1240, %v1238
        %v1445 = vpack.c.b16 %v1243, %v1241
        %v1446 = vpack.c.b16 %v1244, %v1242
        %v1447 = vpack.c.b16 %v1247, %v1245
        %v1448 = vpack.c.b16 %v1248, %v1246
        %v1449 = vpack.c.b16 %v1251, %v1249
        %v1450 = vpack.c.b16 %v1252, %v1250
        %v1451 = vpack.c.b16 %v1255, %v1253
        %v1452 = vpack.c.b16 %v1256, %v1254
        %v1453 = vpack.c.b16 %v1259, %v1257
        %v1454 = vpack.c.b16 %v1260, %v1258
        %v1455 = vpack.c.b16 %v1263, %v1261
        %v1456 = vpack.c.b16 %v1264, %v1262
        %1649 = vmatpush.bf16.msra.mxu0 %v1279
        %1650 = vmatpush.bf16.msra.mxu0 %v1277
        %1651 = vmatpush.bf16.msra.mxu0 %v1275
        %1652 = vmatpush.bf16.msra.mxu0 %v1273
        %1653 = vmatpush.bf16.msra.mxu0 %v1271
        %1654 = vmatpush.bf16.msra.mxu0 %v1269
        %1655 = vmatpush.bf16.msra.mxu0 %v1267
        %1656 = vmatpush.bf16.msra.mxu0 %v1265
        %1657 = vmatmul.bf16.gmra.mxu0 %v479
        %v1658 = vpop.f32.mrf.mxu0
        %v1659 = vadd.f32 %v685, %v1658
        %v1660 = vpop.f32.mrf.mxu0
        %v1661 = vadd.f32 %v687, %v1660
        %1662 = vdwg.mxu0
        %1663 = vmatpush.bf16.msra.mxu0 %v1295
        %1664 = vmatpush.bf16.msra.mxu0 %v1293
        %1665 = vmatpush.bf16.msra.mxu0 %v1291
        %1666 = vmatpush.bf16.msra.mxu0 %v1289
        %1667 = vmatpush.bf16.msra.mxu0 %v1287
        %1668 = vmatpush.bf16.msra.mxu0 %v1285
        %1669 = vmatpush.bf16.msra.mxu0 %v1283
        %1670 = vmatpush.bf16.msra.mxu0 %v1281
        %1671 = vmatmul.bf16.gmra.mxu0 %v480
        %v1672 = vpop.f32.mrf.mxu0
        %v1673 = vadd.f32 %v1659, %v1672
        %v1674 = vpop.f32.mrf.mxu0
        %v1675 = vadd.f32 %v1661, %v1674
        %1676 = vdwg.mxu0
        %1677 = vmatpush.bf16.msra.mxu0 %v1311
        %1678 = vmatpush.bf16.msra.mxu0 %v1309
        %1679 = vmatpush.bf16.msra.mxu0 %v1307
        %1680 = vmatpush.bf16.msra.mxu0 %v1305
        %1681 = vmatpush.bf16.msra.mxu0 %v1303
        %1682 = vmatpush.bf16.msra.mxu0 %v1301
        %1683 = vmatpush.bf16.msra.mxu0 %v1299
        %1684 = vmatpush.bf16.msra.mxu0 %v1297
        %1685 = vmatmul.bf16.gmra.mxu0 %v481
        %v1686 = vpop.f32.mrf.mxu0
        %v1687 = vadd.f32 %v1673, %v1686
        %v1688 = vpop.f32.mrf.mxu0
        %v1689 = vadd.f32 %v1675, %v1688
        %1690 = vdwg.mxu0
        %1691 = vmatpush.bf16.msra.mxu0 %v1327
        %1692 = vmatpush.bf16.msra.mxu0 %v1325
        %1693 = vmatpush.bf16.msra.mxu0 %v1323
        %1694 = vmatpush.bf16.msra.mxu0 %v1321
        %1695 = vmatpush.bf16.msra.mxu0 %v1319
        %1696 = vmatpush.bf16.msra.mxu0 %v1317
        %1697 = vmatpush.bf16.msra.mxu0 %v1315
        %1698 = vmatpush.bf16.msra.mxu0 %v1313
        %1699 = vmatmul.bf16.gmra.mxu0 %v482
        %v1700 = vpop.f32.mrf.mxu0
        %v1701 = vadd.f32 %v1687, %v1700
        %v1702 = vpop.f32.mrf.mxu0
        %v1703 = vadd.f32 %v1689, %v1702
        %1704 = vdwg.mxu0
        %1705 = vmatpush.bf16.msra.mxu0 %v1343
        %1706 = vmatpush.bf16.msra.mxu0 %v1341
        %1707 = vmatpush.bf16.msra.mxu0 %v1339
        %1708 = vmatpush.bf16.msra.mxu0 %v1337
        %1709 = vmatpush.bf16.msra.mxu0 %v1335
        %1710 = vmatpush.bf16.msra.mxu0 %v1333
        %1711 = vmatpush.bf16.msra.mxu0 %v1331
        %1712 = vmatpush.bf16.msra.mxu0 %v1329
        %1713 = vmatmul.bf16.gmra.mxu0 %v483
        %v1714 = vpop.f32.mrf.mxu0
        %v1715 = vadd.f32 %v1701, %v1714
        %v1716 = vpop.f32.mrf.mxu0
        %v1717 = vadd.f32 %v1703, %v1716
        %1718 = vdwg.mxu0
        %1719 = vmatpush.bf16.msra.mxu0 %v1359
        %1720 = vmatpush.bf16.msra.mxu0 %v1357
        %1721 = vmatpush.bf16.msra.mxu0 %v1355
        %1722 = vmatpush.bf16.msra.mxu0 %v1353
        %1723 = vmatpush.bf16.msra.mxu0 %v1351
        %1724 = vmatpush.bf16.msra.mxu0 %v1349
        %1725 = vmatpush.bf16.msra.mxu0 %v1347
        %1726 = vmatpush.bf16.msra.mxu0 %v1345
        %1727 = vmatmul.bf16.gmra.mxu0 %v484
        %v1728 = vpop.f32.mrf.mxu0
        %v1729 = vadd.f32 %v1715, %v1728
        %v1730 = vpop.f32.mrf.mxu0
        %v1731 = vadd.f32 %v1717, %v1730
        %1732 = vdwg.mxu0
        %1733 = vmatpush.bf16.msra.mxu0 %v1375
        %1734 = vmatpush.bf16.msra.mxu0 %v1373
        %1735 = vmatpush.bf16.msra.mxu0 %v1371
        %1736 = vmatpush.bf16.msra.mxu0 %v1369
        %1737 = vmatpush.bf16.msra.mxu0 %v1367
        %1738 = vmatpush.bf16.msra.mxu0 %v1365
        %1739 = vmatpush.bf16.msra.mxu0 %v1363
        %1740 = vmatpush.bf16.msra.mxu0 %v1361
        %1741 = vmatmul.bf16.gmra.mxu0 %v485
        %v1742 = vpop.f32.mrf.mxu0
        %v1743 = vadd.f32 %v1729, %v1742
        %v1744 = vpop.f32.mrf.mxu0
        %v1745 = vadd.f32 %v1731, %v1744
        %1746 = vdwg.mxu0
        %1747 = vmatpush.bf16.msra.mxu0 %v1391
        %1748 = vmatpush.bf16.msra.mxu0 %v1389
        %1749 = vmatpush.bf16.msra.mxu0 %v1387
        %1750 = vmatpush.bf16.msra.mxu0 %v1385
        %1751 = vmatpush.bf16.msra.mxu0 %v1383
        %1752 = vmatpush.bf16.msra.mxu0 %v1381
        %1753 = vmatpush.bf16.msra.mxu0 %v1379
        %1754 = vmatpush.bf16.msra.mxu0 %v1377
        %1755 = vmatmul.bf16.gmra.mxu0 %v486
        %v1756 = vpop.f32.mrf.mxu0
        %v1757 = vadd.f32 %v1743, %v1756
        %v1758 = vpop.f32.mrf.mxu0
        %v1759 = vadd.f32 %v1745, %v1758
        %1760 = vdwg.mxu0
        %1761 = vmatpush.bf16.msra.mxu0 %v1407
        %1762 = vmatpush.bf16.msra.mxu0 %v1405
        %1763 = vmatpush.bf16.msra.mxu0 %v1403
        %1764 = vmatpush.bf16.msra.mxu0 %v1401
        %1765 = vmatpush.bf16.msra.mxu0 %v1399
        %1766 = vmatpush.bf16.msra.mxu0 %v1397
        %1767 = vmatpush.bf16.msra.mxu0 %v1395
        %1768 = vmatpush.bf16.msra.mxu0 %v1393
        %1769 = vmatmul.bf16.gmra.mxu0 %v487
        %v1770 = vpop.f32.mrf.mxu0
        %v1771 = vadd.f32 %v1757, %v1770
        %v1772 = vpop.f32.mrf.mxu0
        %v1773 = vadd.f32 %v1759, %v1772
        %1774 = vdwg.mxu0
        %1775 = vmatpush.bf16.msra.mxu0 %v1423
        %1776 = vmatpush.bf16.msra.mxu0 %v1421
        %1777 = vmatpush.bf16.msra.mxu0 %v1419
        %1778 = vmatpush.bf16.msra.mxu0 %v1417
        %1779 = vmatpush.bf16.msra.mxu0 %v1415
        %1780 = vmatpush.bf16.msra.mxu0 %v1413
        %1781 = vmatpush.bf16.msra.mxu0 %v1411
        %1782 = vmatpush.bf16.msra.mxu0 %v1409
        %1783 = vmatmul.bf16.gmra.mxu0 %v488
        %v1784 = vpop.f32.mrf.mxu0
        %v1785 = vadd.f32 %v1771, %v1784
        %v1786 = vpop.f32.mrf.mxu0
        %v1787 = vadd.f32 %v1773, %v1786
        %1788 = vdwg.mxu0
        %1789 = vmatpush.bf16.msra.mxu0 %v1439
        %1790 = vmatpush.bf16.msra.mxu0 %v1437
        %1791 = vmatpush.bf16.msra.mxu0 %v1435
        %1792 = vmatpush.bf16.msra.mxu0 %v1433
        %1793 = vmatpush.bf16.msra.mxu0 %v1431
        %1794 = vmatpush.bf16.msra.mxu0 %v1429
        %1795 = vmatpush.bf16.msra.mxu0 %v1427
        %1796 = vmatpush.bf16.msra.mxu0 %v1425
        %1797 = vmatmul.bf16.gmra.mxu0 %v489
        %v1798 = vpop.f32.mrf.mxu0
        %v1799 = vadd.f32 %v1785, %v1798
        %v1800 = vpop.f32.mrf.mxu0
        %v1801 = vadd.f32 %v1787, %v1800
        %1802 = vdwg.mxu0
        %1803 = vmatpush.bf16.msra.mxu0 %v1455
        %1804 = vmatpush.bf16.msra.mxu0 %v1453
        %1805 = vmatpush.bf16.msra.mxu0 %v1451
        %1806 = vmatpush.bf16.msra.mxu0 %v1449
        %1807 = vmatpush.bf16.msra.mxu0 %v1447
        %1808 = vmatpush.bf16.msra.mxu0 %v1445
        %1809 = vmatpush.bf16.msra.mxu0 %v1443
        %1810 = vmatpush.bf16.msra.mxu0 %v1441
        %1811 = vmatmul.bf16.gmra.mxu0 %v490
        %v1812 = vpop.f32.mrf.mxu0
        %v1813 = vadd.f32 %v1799, %v1812
        %v1814 = vpop.f32.mrf.mxu0
        %v1815 = vadd.f32 %v1801, %v1814
        %1816 = vdwg.mxu0
        %1817 = vmatpush.bf16.msra.mxu0 %v1280
        %1818 = vmatpush.bf16.msra.mxu0 %v1278
        %1819 = vmatpush.bf16.msra.mxu0 %v1276
        %1820 = vmatpush.bf16.msra.mxu0 %v1274
        %1821 = vmatpush.bf16.msra.mxu0 %v1272
        %1822 = vmatpush.bf16.msra.mxu0 %v1270
        %1823 = vmatpush.bf16.msra.mxu0 %v1268
        %1824 = vmatpush.bf16.msra.mxu0 %v1266
        %1825 = vmatmul.bf16.gmra.mxu0 %v479
        %v1826 = vpop.f32.mrf.mxu0
        %v1827 = vadd.f32 %v686, %v1826
        %v1828 = vpop.f32.mrf.mxu0
        %v1829 = vadd.f32 %v688, %v1828
        %1830 = vdwg.mxu0
        %1831 = vmatpush.bf16.msra.mxu0 %v1296
        %1832 = vmatpush.bf16.msra.mxu0 %v1294
        %1833 = vmatpush.bf16.msra.mxu0 %v1292
        %1834 = vmatpush.bf16.msra.mxu0 %v1290
        %1835 = vmatpush.bf16.msra.mxu0 %v1288
        %1836 = vmatpush.bf16.msra.mxu0 %v1286
        %1837 = vmatpush.bf16.msra.mxu0 %v1284
        %1838 = vmatpush.bf16.msra.mxu0 %v1282
        %1839 = vmatmul.bf16.gmra.mxu0 %v480
        %v1840 = vpop.f32.mrf.mxu0
        %v1841 = vadd.f32 %v1827, %v1840
        %v1842 = vpop.f32.mrf.mxu0
        %v1843 = vadd.f32 %v1829, %v1842
        %1844 = vdwg.mxu0
        %1845 = vmatpush.bf16.msra.mxu0 %v1312
        %1846 = vmatpush.bf16.msra.mxu0 %v1310
        %1847 = vmatpush.bf16.msra.mxu0 %v1308
        %1848 = vmatpush.bf16.msra.mxu0 %v1306
        %1849 = vmatpush.bf16.msra.mxu0 %v1304
        %1850 = vmatpush.bf16.msra.mxu0 %v1302
        %1851 = vmatpush.bf16.msra.mxu0 %v1300
        %1852 = vmatpush.bf16.msra.mxu0 %v1298
        %1853 = vmatmul.bf16.gmra.mxu0 %v481
        %v1854 = vpop.f32.mrf.mxu0
        %v1855 = vadd.f32 %v1841, %v1854
        %v1856 = vpop.f32.mrf.mxu0
        %v1857 = vadd.f32 %v1843, %v1856
        %1858 = vdwg.mxu0
        %1859 = vmatpush.bf16.msra.mxu0 %v1328
        %1860 = vmatpush.bf16.msra.mxu0 %v1326
        %1861 = vmatpush.bf16.msra.mxu0 %v1324
        %1862 = vmatpush.bf16.msra.mxu0 %v1322
        %1863 = vmatpush.bf16.msra.mxu0 %v1320
        %1864 = vmatpush.bf16.msra.mxu0 %v1318
        %1865 = vmatpush.bf16.msra.mxu0 %v1316
        %1866 = vmatpush.bf16.msra.mxu0 %v1314
        %1867 = vmatmul.bf16.gmra.mxu0 %v482
        %v1868 = vpop.f32.mrf.mxu0
        %v1869 = vadd.f32 %v1855, %v1868
        %v1870 = vpop.f32.mrf.mxu0
        %v1871 = vadd.f32 %v1857, %v1870
        %1872 = vdwg.mxu0
        %1873 = vmatpush.bf16.msra.mxu0 %v1344
        %1874 = vmatpush.bf16.msra.mxu0 %v1342
        %1875 = vmatpush.bf16.msra.mxu0 %v1340
        %1876 = vmatpush.bf16.msra.mxu0 %v1338
        %1877 = vmatpush.bf16.msra.mxu0 %v1336
        %1878 = vmatpush.bf16.msra.mxu0 %v1334
        %1879 = vmatpush.bf16.msra.mxu0 %v1332
        %1880 = vmatpush.bf16.msra.mxu0 %v1330
        %1881 = vmatmul.bf16.gmra.mxu0 %v483
        %v1882 = vpop.f32.mrf.mxu0
        %v1883 = vadd.f32 %v1869, %v1882
        %v1884 = vpop.f32.mrf.mxu0
        %v1885 = vadd.f32 %v1871, %v1884
        %1886 = vdwg.mxu0
        %1887 = vmatpush.bf16.msra.mxu0 %v1360
        %1888 = vmatpush.bf16.msra.mxu0 %v1358
        %1889 = vmatpush.bf16.msra.mxu0 %v1356
        %1890 = vmatpush.bf16.msra.mxu0 %v1354
        %1891 = vmatpush.bf16.msra.mxu0 %v1352
        %1892 = vmatpush.bf16.msra.mxu0 %v1350
        %1893 = vmatpush.bf16.msra.mxu0 %v1348
        %1894 = vmatpush.bf16.msra.mxu0 %v1346
        %1895 = vmatmul.bf16.gmra.mxu0 %v484
        %v1896 = vpop.f32.mrf.mxu0
        %v1897 = vadd.f32 %v1883, %v1896
        %v1898 = vpop.f32.mrf.mxu0
        %v1899 = vadd.f32 %v1885, %v1898
        %1900 = vdwg.mxu0
        %1901 = vmatpush.bf16.msra.mxu0 %v1376
        %1902 = vmatpush.bf16.msra.mxu0 %v1374
        %1903 = vmatpush.bf16.msra.mxu0 %v1372
        %1904 = vmatpush.bf16.msra.mxu0 %v1370
        %1905 = vmatpush.bf16.msra.mxu0 %v1368
        %1906 = vmatpush.bf16.msra.mxu0 %v1366
        %1907 = vmatpush.bf16.msra.mxu0 %v1364
        %1908 = vmatpush.bf16.msra.mxu0 %v1362
        %1909 = vmatmul.bf16.gmra.mxu0 %v485
        %v1910 = vpop.f32.mrf.mxu0
        %v1911 = vadd.f32 %v1897, %v1910
        %v1912 = vpop.f32.mrf.mxu0
        %v1913 = vadd.f32 %v1899, %v1912
        %1914 = vdwg.mxu0
        %1915 = vmatpush.bf16.msra.mxu0 %v1392
        %1916 = vmatpush.bf16.msra.mxu0 %v1390
        %1917 = vmatpush.bf16.msra.mxu0 %v1388
        %1918 = vmatpush.bf16.msra.mxu0 %v1386
        %1919 = vmatpush.bf16.msra.mxu0 %v1384
        %1920 = vmatpush.bf16.msra.mxu0 %v1382
        %1921 = vmatpush.bf16.msra.mxu0 %v1380
        %1922 = vmatpush.bf16.msra.mxu0 %v1378
        %1923 = vmatmul.bf16.gmra.mxu0 %v486
        %v1924 = vpop.f32.mrf.mxu0
        %v1925 = vadd.f32 %v1911, %v1924
        %v1926 = vpop.f32.mrf.mxu0
        %v1927 = vadd.f32 %v1913, %v1926
        %1928 = vdwg.mxu0
        %1929 = vmatpush.bf16.msra.mxu0 %v1408
        %1930 = vmatpush.bf16.msra.mxu0 %v1406
        %1931 = vmatpush.bf16.msra.mxu0 %v1404
        %1932 = vmatpush.bf16.msra.mxu0 %v1402
        %1933 = vmatpush.bf16.msra.mxu0 %v1400
        %1934 = vmatpush.bf16.msra.mxu0 %v1398
        %1935 = vmatpush.bf16.msra.mxu0 %v1396
        %1936 = vmatpush.bf16.msra.mxu0 %v1394
        %1937 = vmatmul.bf16.gmra.mxu0 %v487
        %v1938 = vpop.f32.mrf.mxu0
        %v1939 = vadd.f32 %v1925, %v1938
        %v1940 = vpop.f32.mrf.mxu0
        %v1941 = vadd.f32 %v1927, %v1940
        %1942 = vdwg.mxu0
        %1943 = vmatpush.bf16.msra.mxu0 %v1424
        %1944 = vmatpush.bf16.msra.mxu0 %v1422
        %1945 = vmatpush.bf16.msra.mxu0 %v1420
        %1946 = vmatpush.bf16.msra.mxu0 %v1418
        %1947 = vmatpush.bf16.msra.mxu0 %v1416
        %1948 = vmatpush.bf16.msra.mxu0 %v1414
        %1949 = vmatpush.bf16.msra.mxu0 %v1412
        %1950 = vmatpush.bf16.msra.mxu0 %v1410
        %1951 = vmatmul.bf16.gmra.mxu0 %v488
        %v1952 = vpop.f32.mrf.mxu0
        %v1953 = vadd.f32 %v1939, %v1952
        %v1954 = vpop.f32.mrf.mxu0
        %v1955 = vadd.f32 %v1941, %v1954
        %1956 = vdwg.mxu0
        %1957 = vmatpush.bf16.msra.mxu0 %v1440
        %1958 = vmatpush.bf16.msra.mxu0 %v1438
        %1959 = vmatpush.bf16.msra.mxu0 %v1436
        %1960 = vmatpush.bf16.msra.mxu0 %v1434
        %1961 = vmatpush.bf16.msra.mxu0 %v1432
        %1962 = vmatpush.bf16.msra.mxu0 %v1430
        %1963 = vmatpush.bf16.msra.mxu0 %v1428
        %1964 = vmatpush.bf16.msra.mxu0 %v1426
        %1965 = vmatmul.bf16.gmra.mxu0 %v489
        %v1966 = vpop.f32.mrf.mxu0
        %v1967 = vadd.f32 %v1953, %v1966
        %v1968 = vpop.f32.mrf.mxu0
        %v1969 = vadd.f32 %v1955, %v1968
        %1970 = vdwg.mxu0
        %1971 = vmatpush.bf16.msra.mxu0 %v1456
        %1972 = vmatpush.bf16.msra.mxu0 %v1454
        %1973 = vmatpush.bf16.msra.mxu0 %v1452
        %1974 = vmatpush.bf16.msra.mxu0 %v1450
        %1975 = vmatpush.bf16.msra.mxu0 %v1448
        %1976 = vmatpush.bf16.msra.mxu0 %v1446
        %1977 = vmatpush.bf16.msra.mxu0 %v1444
        %1978 = vmatpush.bf16.msra.mxu0 %v1442
        %1979 = vmatmul.bf16.gmra.mxu0 %v490
        %v1980 = vpop.f32.mrf.mxu0
        %v1981 = vadd.f32 %v1967, %v1980
        %v1982 = vpop.f32.mrf.mxu0
        %v1983 = vadd.f32 %v1969, %v1982
        %1984 = vdwg.mxu0
        %v1985 = vmax.f32 %v1813, 0.0
        %v1986 = vmax.f32 %v1981, 0.0
        %v1987 = vmax.f32 %v1815, 0.0
        %v1988 = vmax.f32 %v1983, 0.0
        %v1989 = vpack.c.bf16 %v1987, %v1985
        %v1990 = vpack.c.bf16 %v1988, %v1986
        %v1991 = vld [vmem:[#allocation8] sm:$0xff]
        %v1992 = vld [vmem:[#allocation8 + $0x8] sm:$0xff]
        %v1993 = vld [vmem:[#allocation8 + $0x10] sm:$0xff]
        %v1994 = vld [vmem:[#allocation8 + $0x18] sm:$0xff]
        %v1995 = vld [vmem:[#allocation8 + $0x20] sm:$0xff]
        %v1996 = vld [vmem:[#allocation8 + $0x28] sm:$0xff]
        %v1997 = vld [vmem:[#allocation8 + $0x30] sm:$0xff]
        %v1998 = vld [vmem:[#allocation8 + $0x38] sm:$0xff]
        %v1999 = vld [vmem:[#allocation8 + $0x40] sm:$0xff]
        %v2000 = vld [vmem:[#allocation8 + $0x48] sm:$0xff]
        %v2001 = vld [vmem:[#allocation8 + $0x50] sm:$0xff]
        %v2002 = vld [vmem:[#allocation8 + $0x58] sm:$0xff]
        %v2003 = vld [vmem:[#allocation8 + $0x60] sm:$0xff]
        %v2004 = vld [vmem:[#allocation8 + $0x68] sm:$0xff]
        %v2005 = vld [vmem:[#allocation8 + $0x70] sm:$0xff]
        %v2006 = vld [vmem:[#allocation8 + $0x78] sm:$0xff]
        %v2007 = vld [vmem:[#allocation8 + $0x80] sm:$0xff]
        %v2008 = vld [vmem:[#allocation8 + $0x88] sm:$0xff]
        %v2009 = vld [vmem:[#allocation8 + $0x90] sm:$0xff]
        %v2010 = vld [vmem:[#allocation8 + $0x98] sm:$0xff]
        %v2011 = vld [vmem:[#allocation8 + $0xa0] sm:$0xff]
        %v2012 = vld [vmem:[#allocation8 + $0xa8] sm:$0xff]
        %v2013 = vld [vmem:[#allocation8 + $0xb0] sm:$0xff]
        %v2014 = vld [vmem:[#allocation8 + $0xb8] sm:$0xff]
        %v2015 = vld [vmem:[#allocation8 + $0xc0] sm:$0xff]
        %v2016 = vld [vmem:[#allocation8 + $0xc8] sm:$0xff]
        %v2017 = vld [vmem:[#allocation8 + $0xd0] sm:$0xff]
        %v2018 = vld [vmem:[#allocation8 + $0xd8] sm:$0xff]
        %v2019 = vld [vmem:[#allocation8 + $0xe0] sm:$0xff]
        %v2020 = vld [vmem:[#allocation8 + $0xe8] sm:$0xff]
        %v2021 = vld [vmem:[#allocation8 + $0xf0] sm:$0xff]
        %v2022 = vld [vmem:[#allocation8 + $0xf8] sm:$0xff]
        %v2023 = vld [vmem:[#allocation8 + $0x100] sm:$0xff]
        %v2024 = vld [vmem:[#allocation8 + $0x108] sm:$0xff]
        %v2025 = vld [vmem:[#allocation8 + $0x110] sm:$0xff]
        %v2026 = vld [vmem:[#allocation8 + $0x118] sm:$0xff]
        %v2027 = vld [vmem:[#allocation8 + $0x120] sm:$0xff]
        %v2028 = vld [vmem:[#allocation8 + $0x128] sm:$0xff]
        %v2029 = vld [vmem:[#allocation8 + $0x130] sm:$0xff]
        %v2030 = vld [vmem:[#allocation8 + $0x138] sm:$0xff]
        %v2031 = vld [vmem:[#allocation8 + $0x140] sm:$0xff]
        %v2032 = vld [vmem:[#allocation8 + $0x148] sm:$0xff]
        %v2033 = vld [vmem:[#allocation8 + $0x150] sm:$0xff]
        %v2034 = vld [vmem:[#allocation8 + $0x158] sm:$0xff]
        %v2035 = vld [vmem:[#allocation8 + $0x160] sm:$0xff]
        %v2036 = vld [vmem:[#allocation8 + $0x168] sm:$0xff]
        %v2037 = vld [vmem:[#allocation8 + $0x170] sm:$0xff]
        %v2038 = vld [vmem:[#allocation8 + $0x178] sm:$0xff]
        %v2039 = vld [vmem:[#allocation8 + $0x180] sm:$0xff]
        %v2040 = vld [vmem:[#allocation8 + $0x188] sm:$0xff]
        %v2041 = vld [vmem:[#allocation8 + $0x190] sm:$0xff]
        %v2042 = vld [vmem:[#allocation8 + $0x198] sm:$0xff]
        %v2043 = vld [vmem:[#allocation8 + $0x1a0] sm:$0xff]
        %v2044 = vld [vmem:[#allocation8 + $0x1a8] sm:$0xff]
        %v2045 = vld [vmem:[#allocation8 + $0x1b0] sm:$0xff]
        %v2046 = vld [vmem:[#allocation8 + $0x1b8] sm:$0xff]
        %v2047 = vld [vmem:[#allocation8 + $0x1c0] sm:$0xff]
        %v2048 = vld [vmem:[#allocation8 + $0x1c8] sm:$0xff]
        %v2049 = vld [vmem:[#allocation8 + $0x1d0] sm:$0xff]
        %v2050 = vld [vmem:[#allocation8 + $0x1d8] sm:$0xff]
        %v2051 = vld [vmem:[#allocation8 + $0x1e0] sm:$0xff]
        %v2052 = vld [vmem:[#allocation8 + $0x1e8] sm:$0xff]
        %v2053 = vld [vmem:[#allocation8 + $0x1f0] sm:$0xff]
        %v2054 = vld [vmem:[#allocation8 + $0x1f8] sm:$0xff]
        %v2055 = vld [vmem:[#allocation10] sm:$0xf]
        %v2057 = vperm.slane %v2055, 0
        %v2058 = vperm.slane %v2055, 1
        %v2059 = vperm.slane %v2055, 2
        %v2060 = vperm.slane %v2055, 3
        %v2129 = vunpack.c.l.b16 %v1991
        %v2130 = vunpack.c.h.b16 %v1991
        %v2131 = vunpack.c.l.b16 %v1992
        %v2132 = vunpack.c.h.b16 %v1992
        %v2133 = vunpack.c.l.b16 %v1993
        %v2134 = vunpack.c.h.b16 %v1993
        %v2135 = vunpack.c.l.b16 %v1994
        %v2136 = vunpack.c.h.b16 %v1994
        %v2137 = vunpack.c.l.b16 %v1995
        %v2138 = vunpack.c.h.b16 %v1995
        %v2139 = vunpack.c.l.b16 %v1996
        %v2140 = vunpack.c.h.b16 %v1996
        %v2141 = vunpack.c.l.b16 %v1997
        %v2142 = vunpack.c.h.b16 %v1997
        %v2143 = vunpack.c.l.b16 %v1998
        %v2144 = vunpack.c.h.b16 %v1998
        %v2145 = vunpack.c.l.b16 %v1999
        %v2146 = vunpack.c.h.b16 %v1999
        %v2147 = vunpack.c.l.b16 %v2000
        %v2148 = vunpack.c.h.b16 %v2000
        %v2149 = vunpack.c.l.b16 %v2001
        %v2150 = vunpack.c.h.b16 %v2001
        %v2151 = vunpack.c.l.b16 %v2002
        %v2152 = vunpack.c.h.b16 %v2002
        %v2153 = vunpack.c.l.b16 %v2003
        %v2154 = vunpack.c.h.b16 %v2003
        %v2155 = vunpack.c.l.b16 %v2004
        %v2156 = vunpack.c.h.b16 %v2004
        %v2157 = vunpack.c.l.b16 %v2005
        %v2158 = vunpack.c.h.b16 %v2005
        %v2159 = vunpack.c.l.b16 %v2006
        %v2160 = vunpack.c.h.b16 %v2006
        %v2161 = vunpack.c.l.b16 %v2007
        %v2162 = vunpack.c.h.b16 %v2007
        %v2163 = vunpack.c.l.b16 %v2008
        %v2164 = vunpack.c.h.b16 %v2008
        %v2165 = vunpack.c.l.b16 %v2009
        %v2166 = vunpack.c.h.b16 %v2009
        %v2167 = vunpack.c.l.b16 %v2010
        %v2168 = vunpack.c.h.b16 %v2010
        %v2169 = vunpack.c.l.b16 %v2011
        %v2170 = vunpack.c.h.b16 %v2011
        %v2171 = vunpack.c.l.b16 %v2012
        %v2172 = vunpack.c.h.b16 %v2012
        %v2173 = vunpack.c.l.b16 %v2013
        %v2174 = vunpack.c.h.b16 %v2013
        %v2175 = vunpack.c.l.b16 %v2014
        %v2176 = vunpack.c.h.b16 %v2014
        %v2177 = vunpack.c.l.b16 %v2015
        %v2178 = vunpack.c.h.b16 %v2015
        %v2179 = vunpack.c.l.b16 %v2016
        %v2180 = vunpack.c.h.b16 %v2016
        %v2181 = vunpack.c.l.b16 %v2017
        %v2182 = vunpack.c.h.b16 %v2017
        %v2183 = vunpack.c.l.b16 %v2018
        %v2184 = vunpack.c.h.b16 %v2018
        %v2185 = vunpack.c.l.b16 %v2019
        %v2186 = vunpack.c.h.b16 %v2019
        %v2187 = vunpack.c.l.b16 %v2020
        %v2188 = vunpack.c.h.b16 %v2020
        %v2189 = vunpack.c.l.b16 %v2021
        %v2190 = vunpack.c.h.b16 %v2021
        %v2191 = vunpack.c.l.b16 %v2022
        %v2192 = vunpack.c.h.b16 %v2022
        %v2193 = vunpack.c.l.b16 %v2023
        %v2194 = vunpack.c.h.b16 %v2023
        %v2195 = vunpack.c.l.b16 %v2024
        %v2196 = vunpack.c.h.b16 %v2024
        %v2197 = vunpack.c.l.b16 %v2025
        %v2198 = vunpack.c.h.b16 %v2025
        %v2199 = vunpack.c.l.b16 %v2026
        %v2200 = vunpack.c.h.b16 %v2026
        %v2201 = vunpack.c.l.b16 %v2027
        %v2202 = vunpack.c.h.b16 %v2027
        %v2203 = vunpack.c.l.b16 %v2028
        %v2204 = vunpack.c.h.b16 %v2028
        %v2205 = vunpack.c.l.b16 %v2029
        %v2206 = vunpack.c.h.b16 %v2029
        %v2207 = vunpack.c.l.b16 %v2030
        %v2208 = vunpack.c.h.b16 %v2030
        %v2209 = vunpack.c.l.b16 %v2031
        %v2210 = vunpack.c.h.b16 %v2031
        %v2211 = vunpack.c.l.b16 %v2032
        %v2212 = vunpack.c.h.b16 %v2032
        %v2213 = vunpack.c.l.b16 %v2033
        %v2214 = vunpack.c.h.b16 %v2033
        %v2215 = vunpack.c.l.b16 %v2034
        %v2216 = vunpack.c.h.b16 %v2034
        %v2217 = vunpack.c.l.b16 %v2035
        %v2218 = vunpack.c.h.b16 %v2035
        %v2219 = vunpack.c.l.b16 %v2036
        %v2220 = vunpack.c.h.b16 %v2036
        %v2221 = vunpack.c.l.b16 %v2037
        %v2222 = vunpack.c.h.b16 %v2037
        %v2223 = vunpack.c.l.b16 %v2038
        %v2224 = vunpack.c.h.b16 %v2038
        %v2225 = vunpack.c.l.b16 %v2039
        %v2226 = vunpack.c.h.b16 %v2039
        %v2227 = vunpack.c.l.b16 %v2040
        %v2228 = vunpack.c.h.b16 %v2040
        %v2229 = vunpack.c.l.b16 %v2041
        %v2230 = vunpack.c.h.b16 %v2041
        %v2231 = vunpack.c.l.b16 %v2042
        %v2232 = vunpack.c.h.b16 %v2042
        %v2233 = vunpack.c.l.b16 %v2043
        %v2234 = vunpack.c.h.b16 %v2043
        %v2235 = vunpack.c.l.b16 %v2044
        %v2236 = vunpack.c.h.b16 %v2044
        %v2237 = vunpack.c.l.b16 %v2045
        %v2238 = vunpack.c.h.b16 %v2045
        %v2239 = vunpack.c.l.b16 %v2046
        %v2240 = vunpack.c.h.b16 %v2046
        %v2241 = vunpack.c.l.b16 %v2047
        %v2242 = vunpack.c.h.b16 %v2047
        %v2243 = vunpack.c.l.b16 %v2048
        %v2244 = vunpack.c.h.b16 %v2048
        %v2245 = vunpack.c.l.b16 %v2049
        %v2246 = vunpack.c.h.b16 %v2049
        %v2247 = vunpack.c.l.b16 %v2050
        %v2248 = vunpack.c.h.b16 %v2050
        %v2249 = vunpack.c.l.b16 %v2051
        %v2250 = vunpack.c.h.b16 %v2051
        %v2251 = vunpack.c.l.b16 %v2052
        %v2252 = vunpack.c.h.b16 %v2052
        %v2253 = vunpack.c.l.b16 %v2053
        %v2254 = vunpack.c.h.b16 %v2053
        %v2255 = vunpack.c.l.b16 %v2054
        %v2256 = vunpack.c.h.b16 %v2054
        %v2257 = vpack.c.b16 %v2133, %v2129
        %v2258 = vpack.c.b16 %v2134, %v2130
        %v2259 = vpack.c.b16 %v2135, %v2131
        %v2260 = vpack.c.b16 %v2136, %v2132
        %v2261 = vpack.c.b16 %v2141, %v2137
        %v2262 = vpack.c.b16 %v2142, %v2138
        %v2263 = vpack.c.b16 %v2143, %v2139
        %v2264 = vpack.c.b16 %v2144, %v2140
        %v2265 = vpack.c.b16 %v2149, %v2145
        %v2266 = vpack.c.b16 %v2150, %v2146
        %v2267 = vpack.c.b16 %v2151, %v2147
        %v2268 = vpack.c.b16 %v2152, %v2148
        %v2269 = vpack.c.b16 %v2157, %v2153
        %v2270 = vpack.c.b16 %v2158, %v2154
        %v2271 = vpack.c.b16 %v2159, %v2155
        %v2272 = vpack.c.b16 %v2160, %v2156
        %v2273 = vpack.c.b16 %v2165, %v2161
        %v2274 = vpack.c.b16 %v2166, %v2162
        %v2275 = vpack.c.b16 %v2167, %v2163
        %v2276 = vpack.c.b16 %v2168, %v2164
        %v2277 = vpack.c.b16 %v2173, %v2169
        %v2278 = vpack.c.b16 %v2174, %v2170
        %v2279 = vpack.c.b16 %v2175, %v2171
        %v2280 = vpack.c.b16 %v2176, %v2172
        %v2281 = vpack.c.b16 %v2181, %v2177
        %v2282 = vpack.c.b16 %v2182, %v2178
        %v2283 = vpack.c.b16 %v2183, %v2179
        %v2284 = vpack.c.b16 %v2184, %v2180
        %v2285 = vpack.c.b16 %v2189, %v2185
        %v2286 = vpack.c.b16 %v2190, %v2186
        %v2287 = vpack.c.b16 %v2191, %v2187
        %v2288 = vpack.c.b16 %v2192, %v2188
        %v2289 = vpack.c.b16 %v2197, %v2193
        %v2290 = vpack.c.b16 %v2198, %v2194
        %v2291 = vpack.c.b16 %v2199, %v2195
        %v2292 = vpack.c.b16 %v2200, %v2196
        %v2293 = vpack.c.b16 %v2205, %v2201
        %v2294 = vpack.c.b16 %v2206, %v2202
        %v2295 = vpack.c.b16 %v2207, %v2203
        %v2296 = vpack.c.b16 %v2208, %v2204
        %v2297 = vpack.c.b16 %v2213, %v2209
        %v2298 = vpack.c.b16 %v2214, %v2210
        %v2299 = vpack.c.b16 %v2215, %v2211
        %v2300 = vpack.c.b16 %v2216, %v2212
        %v2301 = vpack.c.b16 %v2221, %v2217
        %v2302 = vpack.c.b16 %v2222, %v2218
        %v2303 = vpack.c.b16 %v2223, %v2219
        %v2304 = vpack.c.b16 %v2224, %v2220
        %v2305 = vpack.c.b16 %v2229, %v2225
        %v2306 = vpack.c.b16 %v2230, %v2226
        %v2307 = vpack.c.b16 %v2231, %v2227
        %v2308 = vpack.c.b16 %v2232, %v2228
        %v2309 = vpack.c.b16 %v2237, %v2233
        %v2310 = vpack.c.b16 %v2238, %v2234
        %v2311 = vpack.c.b16 %v2239, %v2235
        %v2312 = vpack.c.b16 %v2240, %v2236
        %v2313 = vpack.c.b16 %v2245, %v2241
        %v2314 = vpack.c.b16 %v2246, %v2242
        %v2315 = vpack.c.b16 %v2247, %v2243
        %v2316 = vpack.c.b16 %v2248, %v2244
        %v2317 = vpack.c.b16 %v2253, %v2249
        %v2318 = vpack.c.b16 %v2254, %v2250
        %v2319 = vpack.c.b16 %v2255, %v2251
        %v2320 = vpack.c.b16 %v2256, %v2252
        %2385 = vmatpush.bf16.msra.mxu0 %v2285
        %2386 = vmatpush.bf16.msra.mxu0 %v2281
        %2387 = vmatpush.bf16.msra.mxu0 %v2277
        %2388 = vmatpush.bf16.msra.mxu0 %v2273
        %2389 = vmatpush.bf16.msra.mxu0 %v2269
        %2390 = vmatpush.bf16.msra.mxu0 %v2265
        %2391 = vmatpush.bf16.msra.mxu0 %v2261
        %2392 = vmatpush.bf16.msra.mxu0 %v2257
        %2393 = vmatmul.bf16.gmra.mxu0 %v1989
        %v2394 = vpop.f32.mrf.mxu0
        %v2395 = vadd.f32 %v2057, %v2394
        %v2396 = vpop.f32.mrf.mxu0
        %v2397 = vadd.f32 %v2057, %v2396
        %2398 = vdwg.mxu0
        %2399 = vmatpush.bf16.msra.mxu0 %v2317
        %2400 = vmatpush.bf16.msra.mxu0 %v2313
        %2401 = vmatpush.bf16.msra.mxu0 %v2309
        %2402 = vmatpush.bf16.msra.mxu0 %v2305
        %2403 = vmatpush.bf16.msra.mxu0 %v2301
        %2404 = vmatpush.bf16.msra.mxu0 %v2297
        %2405 = vmatpush.bf16.msra.mxu0 %v2293
        %2406 = vmatpush.bf16.msra.mxu0 %v2289
        %2407 = vmatmul.bf16.gmra.mxu0 %v1990
        %v2408 = vpop.f32.mrf.mxu0
        %v2409 = vadd.f32 %v2395, %v2408
        %v2410 = vpop.f32.mrf.mxu0
        %v2411 = vadd.f32 %v2397, %v2410
        %2412 = vdwg.mxu0
        %2413 = vmatpush.bf16.msra.mxu0 %v2286
        %2414 = vmatpush.bf16.msra.mxu0 %v2282
        %2415 = vmatpush.bf16.msra.mxu0 %v2278
        %2416 = vmatpush.bf16.msra.mxu0 %v2274
        %2417 = vmatpush.bf16.msra.mxu0 %v2270
        %2418 = vmatpush.bf16.msra.mxu0 %v2266
        %2419 = vmatpush.bf16.msra.mxu0 %v2262
        %2420 = vmatpush.bf16.msra.mxu0 %v2258
        %2421 = vmatmul.bf16.gmra.mxu0 %v1989
        %v2422 = vpop.f32.mrf.mxu0
        %v2423 = vadd.f32 %v2058, %v2422
        %v2424 = vpop.f32.mrf.mxu0
        %v2425 = vadd.f32 %v2058, %v2424
        %2426 = vdwg.mxu0
        %2427 = vmatpush.bf16.msra.mxu0 %v2318
        %2428 = vmatpush.bf16.msra.mxu0 %v2314
        %2429 = vmatpush.bf16.msra.mxu0 %v2310
        %2430 = vmatpush.bf16.msra.mxu0 %v2306
        %2431 = vmatpush.bf16.msra.mxu0 %v2302
        %2432 = vmatpush.bf16.msra.mxu0 %v2298
        %2433 = vmatpush.bf16.msra.mxu0 %v2294
        %2434 = vmatpush.bf16.msra.mxu0 %v2290
        %2435 = vmatmul.bf16.gmra.mxu0 %v1990
        %v2436 = vpop.f32.mrf.mxu0
        %v2437 = vadd.f32 %v2423, %v2436
        %v2438 = vpop.f32.mrf.mxu0
        %v2439 = vadd.f32 %v2425, %v2438
        %2440 = vdwg.mxu0
        %2441 = vmatpush.bf16.msra.mxu0 %v2287
        %2442 = vmatpush.bf16.msra.mxu0 %v2283
        %2443 = vmatpush.bf16.msra.mxu0 %v2279
        %2444 = vmatpush.bf16.msra.mxu0 %v2275
        %2445 = vmatpush.bf16.msra.mxu0 %v2271
        %2446 = vmatpush.bf16.msra.mxu0 %v2267
        %2447 = vmatpush.bf16.msra.mxu0 %v2263
        %2448 = vmatpush.bf16.msra.mxu0 %v2259
        %2449 = vmatmul.bf16.gmra.mxu0 %v1989
        %v2450 = vpop.f32.mrf.mxu0
        %v2451 = vadd.f32 %v2059, %v2450
        %v2452 = vpop.f32.mrf.mxu0
        %v2453 = vadd.f32 %v2059, %v2452
        %2454 = vdwg.mxu0
        %2455 = vmatpush.bf16.msra.mxu0 %v2319
        %2456 = vmatpush.bf16.msra.mxu0 %v2315
        %2457 = vmatpush.bf16.msra.mxu0 %v2311
        %2458 = vmatpush.bf16.msra.mxu0 %v2307
        %2459 = vmatpush.bf16.msra.mxu0 %v2303
        %2460 = vmatpush.bf16.msra.mxu0 %v2299
        %2461 = vmatpush.bf16.msra.mxu0 %v2295
        %2462 = vmatpush.bf16.msra.mxu0 %v2291
        %2463 = vmatmul.bf16.gmra.mxu0 %v1990
        %v2464 = vpop.f32.mrf.mxu0
        %v2465 = vadd.f32 %v2451, %v2464
        %v2466 = vpop.f32.mrf.mxu0
        %v2467 = vadd.f32 %v2453, %v2466
        %2468 = vdwg.mxu0
        %2469 = vmatpush.bf16.msra.mxu0 %v2288
        %2470 = vmatpush.bf16.msra.mxu0 %v2284
        %2471 = vmatpush.bf16.msra.mxu0 %v2280
        %2472 = vmatpush.bf16.msra.mxu0 %v2276
        %2473 = vmatpush.bf16.msra.mxu0 %v2272
        %2474 = vmatpush.bf16.msra.mxu0 %v2268
        %2475 = vmatpush.bf16.msra.mxu0 %v2264
        %2476 = vmatpush.bf16.msra.mxu0 %v2260
        %2477 = vmatmul.bf16.gmra.mxu0 %v1989
        %v2478 = vpop.f32.mrf.mxu0
        %v2479 = vadd.f32 %v2060, %v2478
        %v2480 = vpop.f32.mrf.mxu0
        %v2481 = vadd.f32 %v2060, %v2480
        %2482 = vdwg.mxu0
        %2483 = vmatpush.bf16.msra.mxu0 %v2320
        %2484 = vmatpush.bf16.msra.mxu0 %v2316
        %2485 = vmatpush.bf16.msra.mxu0 %v2312
        %2486 = vmatpush.bf16.msra.mxu0 %v2308
        %2487 = vmatpush.bf16.msra.mxu0 %v2304
        %2488 = vmatpush.bf16.msra.mxu0 %v2300
        %2489 = vmatpush.bf16.msra.mxu0 %v2296
        %2490 = vmatpush.bf16.msra.mxu0 %v2292
        %2491 = vmatmul.bf16.gmra.mxu0 %v1990
        %v2492 = vpop.f32.mrf.mxu0
        %v2493 = vadd.f32 %v2479, %v2492
        %v2494 = vpop.f32.mrf.mxu0
        %v2495 = vadd.f32 %v2481, %v2494
        %2496 = vdwg.mxu0
        %v2497 = vmax.f32 %v2409, 0.0
        %v2498 = vmax.f32 %v2437, 0.0
        %v2499 = vmax.f32 %v2465, 0.0
        %v2500 = vmax.f32 %v2493, 0.0
        %v2501 = vmax.f32 %v2411, 0.0
        %v2502 = vmax.f32 %v2439, 0.0
        %v2503 = vmax.f32 %v2467, 0.0
        %v2504 = vmax.f32 %v2495, 0.0
        %v2505 = vpack.c.bf16 %v2501, %v2497
        %v2506 = vpack.c.bf16 %v2502, %v2498
        %v2507 = vpack.c.bf16 %v2503, %v2499
        %v2508 = vpack.c.bf16 %v2504, %v2500
        %v2509 = vld [vmem:[#allocation11] sm:$0xff]
        %v2510 = vld [vmem:[#allocation11 + $0x8] sm:$0xff]
        %v2511 = vld [vmem:[#allocation11 + $0x10] sm:$0xff]
        %v2512 = vld [vmem:[#allocation11 + $0x18] sm:$0xff]
        %v2513 = vld [vmem:[#allocation11 + $0x20] sm:$0xff]
        %v2514 = vld [vmem:[#allocation11 + $0x28] sm:$0xff]
        %v2515 = vld [vmem:[#allocation11 + $0x30] sm:$0xff]
        %v2516 = vld [vmem:[#allocation11 + $0x38] sm:$0xff]
        %v2517 = vld [vmem:[#allocation11 + $0x40] sm:$0xff]
        %v2518 = vld [vmem:[#allocation11 + $0x48] sm:$0xff]
        %v2519 = vld [vmem:[#allocation11 + $0x50] sm:$0xff]
        %v2520 = vld [vmem:[#allocation11 + $0x58] sm:$0xff]
        %v2521 = vld [vmem:[#allocation11 + $0x60] sm:$0xff]
        %v2522 = vld [vmem:[#allocation11 + $0x68] sm:$0xff]
        %v2523 = vld [vmem:[#allocation11 + $0x70] sm:$0xff]
        %v2524 = vld [vmem:[#allocation11 + $0x78] sm:$0xff]
        %v2525 = vld [vmem:[#allocation11 + $0x80] sm:$0xff]
        %v2526 = vld [vmem:[#allocation11 + $0x88] sm:$0xff]
        %v2527 = vld [vmem:[#allocation11 + $0x90] sm:$0xff]
        %v2528 = vld [vmem:[#allocation11 + $0x98] sm:$0xff]
        %v2529 = vld [vmem:[#allocation11 + $0xa0] sm:$0xff]
        %v2530 = vld [vmem:[#allocation11 + $0xa8] sm:$0xff]
        %v2531 = vld [vmem:[#allocation11 + $0xb0] sm:$0xff]
        %v2532 = vld [vmem:[#allocation11 + $0xb8] sm:$0xff]
        %v2533 = vld [vmem:[#allocation11 + $0xc0] sm:$0xff]
        %v2534 = vld [vmem:[#allocation11 + $0xc8] sm:$0xff]
        %v2535 = vld [vmem:[#allocation11 + $0xd0] sm:$0xff]
        %v2536 = vld [vmem:[#allocation11 + $0xd8] sm:$0xff]
        %v2537 = vld [vmem:[#allocation11 + $0xe0] sm:$0xff]
        %v2538 = vld [vmem:[#allocation11 + $0xe8] sm:$0xff]
        %v2539 = vld [vmem:[#allocation11 + $0xf0] sm:$0xff]
        %v2540 = vld [vmem:[#allocation11 + $0xf8] sm:$0xff]
        %v2541 = vld [vmem:[#allocation11 + $0x100] sm:$0xff]
        %v2542 = vld [vmem:[#allocation11 + $0x108] sm:$0xff]
        %v2543 = vld [vmem:[#allocation11 + $0x110] sm:$0xff]
        %v2544 = vld [vmem:[#allocation11 + $0x118] sm:$0xff]
        %v2545 = vld [vmem:[#allocation11 + $0x120] sm:$0xff]
        %v2546 = vld [vmem:[#allocation11 + $0x128] sm:$0xff]
        %v2547 = vld [vmem:[#allocation11 + $0x130] sm:$0xff]
        %v2548 = vld [vmem:[#allocation11 + $0x138] sm:$0xff]
        %v2549 = vld [vmem:[#allocation11 + $0x140] sm:$0xff]
        %v2550 = vld [vmem:[#allocation11 + $0x148] sm:$0xff]
        %v2551 = vld [vmem:[#allocation11 + $0x150] sm:$0xff]
        %v2552 = vld [vmem:[#allocation11 + $0x158] sm:$0xff]
        %v2553 = vld [vmem:[#allocation11 + $0x160] sm:$0xff]
        %v2554 = vld [vmem:[#allocation11 + $0x168] sm:$0xff]
        %v2555 = vld [vmem:[#allocation11 + $0x170] sm:$0xff]
        %v2556 = vld [vmem:[#allocation11 + $0x178] sm:$0xff]
        %v2557 = vld [vmem:[#allocation11 + $0x180] sm:$0xff]
        %v2558 = vld [vmem:[#allocation11 + $0x188] sm:$0xff]
        %v2559 = vld [vmem:[#allocation11 + $0x190] sm:$0xff]
        %v2560 = vld [vmem:[#allocation11 + $0x198] sm:$0xff]
        %v2561 = vld [vmem:[#allocation11 + $0x1a0] sm:$0xff]
        %v2562 = vld [vmem:[#allocation11 + $0x1a8] sm:$0xff]
        %v2563 = vld [vmem:[#allocation11 + $0x1b0] sm:$0xff]
        %v2564 = vld [vmem:[#allocation11 + $0x1b8] sm:$0xff]
        %v2565 = vld [vmem:[#allocation11 + $0x1c0] sm:$0xff]
        %v2566 = vld [vmem:[#allocation11 + $0x1c8] sm:$0xff]
        %v2567 = vld [vmem:[#allocation11 + $0x1d0] sm:$0xff]
        %v2568 = vld [vmem:[#allocation11 + $0x1d8] sm:$0xff]
        %v2569 = vld [vmem:[#allocation11 + $0x1e0] sm:$0xff]
        %v2570 = vld [vmem:[#allocation11 + $0x1e8] sm:$0xff]
        %v2571 = vld [vmem:[#allocation11 + $0x1f0] sm:$0xff]
        %v2572 = vld [vmem:[#allocation11 + $0x1f8] sm:$0xff]
        %v2573 = vld [vmem:[#allocation11 + $0x200] sm:$0xff]
        %v2574 = vld [vmem:[#allocation11 + $0x208] sm:$0xff]
        %v2575 = vld [vmem:[#allocation11 + $0x210] sm:$0xff]
        %v2576 = vld [vmem:[#allocation11 + $0x218] sm:$0xff]
        %v2577 = vld [vmem:[#allocation11 + $0x220] sm:$0xff]
        %v2578 = vld [vmem:[#allocation11 + $0x228] sm:$0xff]
        %v2579 = vld [vmem:[#allocation11 + $0x230] sm:$0xff]
        %v2580 = vld [vmem:[#allocation11 + $0x238] sm:$0xff]
        %v2581 = vld [vmem:[#allocation11 + $0x240] sm:$0xff]
        %v2582 = vld [vmem:[#allocation11 + $0x248] sm:$0xff]
        %v2583 = vld [vmem:[#allocation11 + $0x250] sm:$0xff]
        %v2584 = vld [vmem:[#allocation11 + $0x258] sm:$0xff]
        %v2585 = vld [vmem:[#allocation11 + $0x260] sm:$0xff]
        %v2586 = vld [vmem:[#allocation11 + $0x268] sm:$0xff]
        %v2587 = vld [vmem:[#allocation11 + $0x270] sm:$0xff]
        %v2588 = vld [vmem:[#allocation11 + $0x278] sm:$0xff]
        %v2589 = vld [vmem:[#allocation11 + $0x280] sm:$0xff]
        %v2590 = vld [vmem:[#allocation11 + $0x288] sm:$0xff]
        %v2591 = vld [vmem:[#allocation11 + $0x290] sm:$0xff]
        %v2592 = vld [vmem:[#allocation11 + $0x298] sm:$0xff]
        %v2593 = vld [vmem:[#allocation11 + $0x2a0] sm:$0xff]
        %v2594 = vld [vmem:[#allocation11 + $0x2a8] sm:$0xff]
        %v2595 = vld [vmem:[#allocation11 + $0x2b0] sm:$0xff]
        %v2596 = vld [vmem:[#allocation11 + $0x2b8] sm:$0xff]
        %v2597 = vld [vmem:[#allocation11 + $0x2c0] sm:$0xff]
        %v2598 = vld [vmem:[#allocation11 + $0x2c8] sm:$0xff]
        %v2599 = vld [vmem:[#allocation11 + $0x2d0] sm:$0xff]
        %v2600 = vld [vmem:[#allocation11 + $0x2d8] sm:$0xff]
        %v2601 = vld [vmem:[#allocation11 + $0x2e0] sm:$0xff]
        %v2602 = vld [vmem:[#allocation11 + $0x2e8] sm:$0xff]
        %v2603 = vld [vmem:[#allocation11 + $0x2f0] sm:$0xff]
        %v2604 = vld [vmem:[#allocation11 + $0x2f8] sm:$0xff]
        %v2605 = vld [vmem:[#allocation11 + $0x300] sm:$0xff]
        %v2606 = vld [vmem:[#allocation11 + $0x308] sm:$0xff]
        %v2607 = vld [vmem:[#allocation11 + $0x310] sm:$0xff]
        %v2608 = vld [vmem:[#allocation11 + $0x318] sm:$0xff]
        %v2609 = vld [vmem:[#allocation11 + $0x320] sm:$0xff]
        %v2610 = vld [vmem:[#allocation11 + $0x328] sm:$0xff]
        %v2611 = vld [vmem:[#allocation11 + $0x330] sm:$0xff]
        %v2612 = vld [vmem:[#allocation11 + $0x338] sm:$0xff]
        %v2613 = vld [vmem:[#allocation11 + $0x340] sm:$0xff]
        %v2614 = vld [vmem:[#allocation11 + $0x348] sm:$0xff]
        %v2615 = vld [vmem:[#allocation11 + $0x350] sm:$0xff]
        %v2616 = vld [vmem:[#allocation11 + $0x358] sm:$0xff]
        %v2617 = vld [vmem:[#allocation11 + $0x360] sm:$0xff]
        %v2618 = vld [vmem:[#allocation11 + $0x368] sm:$0xff]
        %v2619 = vld [vmem:[#allocation11 + $0x370] sm:$0xff]
        %v2620 = vld [vmem:[#allocation11 + $0x378] sm:$0xff]
        %v2621 = vld [vmem:[#allocation11 + $0x380] sm:$0xff]
        %v2622 = vld [vmem:[#allocation11 + $0x388] sm:$0xff]
        %v2623 = vld [vmem:[#allocation11 + $0x390] sm:$0xff]
        %v2624 = vld [vmem:[#allocation11 + $0x398] sm:$0xff]
        %v2625 = vld [vmem:[#allocation11 + $0x3a0] sm:$0xff]
        %v2626 = vld [vmem:[#allocation11 + $0x3a8] sm:$0xff]
        %v2627 = vld [vmem:[#allocation11 + $0x3b0] sm:$0xff]
        %v2628 = vld [vmem:[#allocation11 + $0x3b8] sm:$0xff]
        %v2629 = vld [vmem:[#allocation11 + $0x3c0] sm:$0xff]
        %v2630 = vld [vmem:[#allocation11 + $0x3c8] sm:$0xff]
        %v2631 = vld [vmem:[#allocation11 + $0x3d0] sm:$0xff]
        %v2632 = vld [vmem:[#allocation11 + $0x3d8] sm:$0xff]
        %v2633 = vld [vmem:[#allocation11 + $0x3e0] sm:$0xff]
        %v2634 = vld [vmem:[#allocation11 + $0x3e8] sm:$0xff]
        %v2635 = vld [vmem:[#allocation11 + $0x3f0] sm:$0xff]
        %v2636 = vld [vmem:[#allocation11 + $0x3f8] sm:$0xff]
        %v2637 = vld [vmem:[#allocation11 + $0x400] sm:$0xff]
        %v2638 = vld [vmem:[#allocation11 + $0x408] sm:$0xff]
        %v2639 = vld [vmem:[#allocation11 + $0x410] sm:$0xff]
        %v2640 = vld [vmem:[#allocation11 + $0x418] sm:$0xff]
        %v2641 = vld [vmem:[#allocation11 + $0x420] sm:$0xff]
        %v2642 = vld [vmem:[#allocation11 + $0x428] sm:$0xff]
        %v2643 = vld [vmem:[#allocation11 + $0x430] sm:$0xff]
        %v2644 = vld [vmem:[#allocation11 + $0x438] sm:$0xff]
        %v2645 = vld [vmem:[#allocation11 + $0x440] sm:$0xff]
        %v2646 = vld [vmem:[#allocation11 + $0x448] sm:$0xff]
        %v2647 = vld [vmem:[#allocation11 + $0x450] sm:$0xff]
        %v2648 = vld [vmem:[#allocation11 + $0x458] sm:$0xff]
        %v2649 = vld [vmem:[#allocation11 + $0x460] sm:$0xff]
        %v2650 = vld [vmem:[#allocation11 + $0x468] sm:$0xff]
        %v2651 = vld [vmem:[#allocation11 + $0x470] sm:$0xff]
        %v2652 = vld [vmem:[#allocation11 + $0x478] sm:$0xff]
        %v2653 = vld [vmem:[#allocation11 + $0x480] sm:$0xff]
        %v2654 = vld [vmem:[#allocation11 + $0x488] sm:$0xff]
        %v2655 = vld [vmem:[#allocation11 + $0x490] sm:$0xff]
        %v2656 = vld [vmem:[#allocation11 + $0x498] sm:$0xff]
        %v2657 = vld [vmem:[#allocation11 + $0x4a0] sm:$0xff]
        %v2658 = vld [vmem:[#allocation11 + $0x4a8] sm:$0xff]
        %v2659 = vld [vmem:[#allocation11 + $0x4b0] sm:$0xff]
        %v2660 = vld [vmem:[#allocation11 + $0x4b8] sm:$0xff]
        %v2661 = vld [vmem:[#allocation11 + $0x4c0] sm:$0xff]
        %v2662 = vld [vmem:[#allocation11 + $0x4c8] sm:$0xff]
        %v2663 = vld [vmem:[#allocation11 + $0x4d0] sm:$0xff]
        %v2664 = vld [vmem:[#allocation11 + $0x4d8] sm:$0xff]
        %v2665 = vld [vmem:[#allocation11 + $0x4e0] sm:$0xff]
        %v2666 = vld [vmem:[#allocation11 + $0x4e8] sm:$0xff]
        %v2667 = vld [vmem:[#allocation11 + $0x4f0] sm:$0xff]
        %v2668 = vld [vmem:[#allocation11 + $0x4f8] sm:$0xff]
        %v2669 = vld [vmem:[#allocation11 + $0x500] sm:$0xff]
        %v2670 = vld [vmem:[#allocation11 + $0x508] sm:$0xff]
        %v2671 = vld [vmem:[#allocation11 + $0x510] sm:$0xff]
        %v2672 = vld [vmem:[#allocation11 + $0x518] sm:$0xff]
        %v2673 = vld [vmem:[#allocation11 + $0x520] sm:$0xff]
        %v2674 = vld [vmem:[#allocation11 + $0x528] sm:$0xff]
        %v2675 = vld [vmem:[#allocation11 + $0x530] sm:$0xff]
        %v2676 = vld [vmem:[#allocation11 + $0x538] sm:$0xff]
        %v2677 = vld [vmem:[#allocation11 + $0x540] sm:$0xff]
        %v2678 = vld [vmem:[#allocation11 + $0x548] sm:$0xff]
        %v2679 = vld [vmem:[#allocation11 + $0x550] sm:$0xff]
        %v2680 = vld [vmem:[#allocation11 + $0x558] sm:$0xff]
        %v2681 = vld [vmem:[#allocation11 + $0x560] sm:$0xff]
        %v2682 = vld [vmem:[#allocation11 + $0x568] sm:$0xff]
        %v2683 = vld [vmem:[#allocation11 + $0x570] sm:$0xff]
        %v2684 = vld [vmem:[#allocation11 + $0x578] sm:$0xff]
        %v2685 = vld [vmem:[#allocation11 + $0x580] sm:$0xff]
        %v2686 = vld [vmem:[#allocation11 + $0x588] sm:$0xff]
        %v2687 = vld [vmem:[#allocation11 + $0x590] sm:$0xff]
        %v2688 = vld [vmem:[#allocation11 + $0x598] sm:$0xff]
        %v2689 = vld [vmem:[#allocation11 + $0x5a0] sm:$0xff]
        %v2690 = vld [vmem:[#allocation11 + $0x5a8] sm:$0xff]
        %v2691 = vld [vmem:[#allocation11 + $0x5b0] sm:$0xff]
        %v2692 = vld [vmem:[#allocation11 + $0x5b8] sm:$0xff]
        %v2693 = vld [vmem:[#allocation11 + $0x5c0] sm:$0xff]
        %v2694 = vld [vmem:[#allocation11 + $0x5c8] sm:$0xff]
        %v2695 = vld [vmem:[#allocation11 + $0x5d0] sm:$0xff]
        %v2696 = vld [vmem:[#allocation11 + $0x5d8] sm:$0xff]
        %v2697 = vld [vmem:[#allocation11 + $0x5e0] sm:$0xff]
        %v2698 = vld [vmem:[#allocation11 + $0x5e8] sm:$0xff]
        %v2699 = vld [vmem:[#allocation11 + $0x5f0] sm:$0xff]
        %v2700 = vld [vmem:[#allocation11 + $0x5f8] sm:$0xff]
        %v2701 = vld [vmem:[#allocation13] sm:$0x3f]
        %v2703 = vperm.slane %v2701, 0
        %v2704 = vperm.slane %v2701, 1
        %v2705 = vperm.slane %v2701, 2
        %v2706 = vperm.slane %v2701, 3
        %v2707 = vperm.slane %v2701, 4
        %v2708 = vperm.slane %v2701, 5
        %v2907 = vunpack.c.l.b16 %v2509
        %v2908 = vunpack.c.h.b16 %v2509
        %v2909 = vunpack.c.l.b16 %v2510
        %v2910 = vunpack.c.h.b16 %v2510
        %v2911 = vunpack.c.l.b16 %v2511
        %v2912 = vunpack.c.h.b16 %v2511
        %v2913 = vunpack.c.l.b16 %v2512
        %v2914 = vunpack.c.h.b16 %v2512
        %v2915 = vunpack.c.l.b16 %v2513
        %v2916 = vunpack.c.h.b16 %v2513
        %v2917 = vunpack.c.l.b16 %v2514
        %v2918 = vunpack.c.h.b16 %v2514
        %v2919 = vunpack.c.l.b16 %v2515
        %v2920 = vunpack.c.h.b16 %v2515
        %v2921 = vunpack.c.l.b16 %v2516
        %v2922 = vunpack.c.h.b16 %v2516
        %v2923 = vunpack.c.l.b16 %v2517
        %v2924 = vunpack.c.h.b16 %v2517
        %v2925 = vunpack.c.l.b16 %v2518
        %v2926 = vunpack.c.h.b16 %v2518
        %v2927 = vunpack.c.l.b16 %v2519
        %v2928 = vunpack.c.h.b16 %v2519
        %v2929 = vunpack.c.l.b16 %v2520
        %v2930 = vunpack.c.h.b16 %v2520
        %v2931 = vunpack.c.l.b16 %v2521
        %v2932 = vunpack.c.h.b16 %v2521
        %v2933 = vunpack.c.l.b16 %v2522
        %v2934 = vunpack.c.h.b16 %v2522
        %v2935 = vunpack.c.l.b16 %v2523
        %v2936 = vunpack.c.h.b16 %v2523
        %v2937 = vunpack.c.l.b16 %v2524
        %v2938 = vunpack.c.h.b16 %v2524
        %v2939 = vunpack.c.l.b16 %v2525
        %v2940 = vunpack.c.h.b16 %v2525
        %v2941 = vunpack.c.l.b16 %v2526
        %v2942 = vunpack.c.h.b16 %v2526
        %v2943 = vunpack.c.l.b16 %v2527
        %v2944 = vunpack.c.h.b16 %v2527
        %v2945 = vunpack.c.l.b16 %v2528
        %v2946 = vunpack.c.h.b16 %v2528
        %v2947 = vunpack.c.l.b16 %v2529
        %v2948 = vunpack.c.h.b16 %v2529
        %v2949 = vunpack.c.l.b16 %v2530
        %v2950 = vunpack.c.h.b16 %v2530
        %v2951 = vunpack.c.l.b16 %v2531
        %v2952 = vunpack.c.h.b16 %v2531
        %v2953 = vunpack.c.l.b16 %v2532
        %v2954 = vunpack.c.h.b16 %v2532
        %v2955 = vunpack.c.l.b16 %v2533
        %v2956 = vunpack.c.h.b16 %v2533
        %v2957 = vunpack.c.l.b16 %v2534
        %v2958 = vunpack.c.h.b16 %v2534
        %v2959 = vunpack.c.l.b16 %v2535
        %v2960 = vunpack.c.h.b16 %v2535
        %v2961 = vunpack.c.l.b16 %v2536
        %v2962 = vunpack.c.h.b16 %v2536
        %v2963 = vunpack.c.l.b16 %v2537
        %v2964 = vunpack.c.h.b16 %v2537
        %v2965 = vunpack.c.l.b16 %v2538
        %v2966 = vunpack.c.h.b16 %v2538
        %v2967 = vunpack.c.l.b16 %v2539
        %v2968 = vunpack.c.h.b16 %v2539
        %v2969 = vunpack.c.l.b16 %v2540
        %v2970 = vunpack.c.h.b16 %v2540
        %v2971 = vunpack.c.l.b16 %v2541
        %v2972 = vunpack.c.h.b16 %v2541
        %v2973 = vunpack.c.l.b16 %v2542
        %v2974 = vunpack.c.h.b16 %v2542
        %v2975 = vunpack.c.l.b16 %v2543
        %v2976 = vunpack.c.h.b16 %v2543
        %v2977 = vunpack.c.l.b16 %v2544
        %v2978 = vunpack.c.h.b16 %v2544
        %v2979 = vunpack.c.l.b16 %v2545
        %v2980 = vunpack.c.h.b16 %v2545
        %v2981 = vunpack.c.l.b16 %v2546
        %v2982 = vunpack.c.h.b16 %v2546
        %v2983 = vunpack.c.l.b16 %v2547
        %v2984 = vunpack.c.h.b16 %v2547
        %v2985 = vunpack.c.l.b16 %v2548
        %v2986 = vunpack.c.h.b16 %v2548
        %v2987 = vunpack.c.l.b16 %v2549
        %v2988 = vunpack.c.h.b16 %v2549
        %v2989 = vunpack.c.l.b16 %v2550
        %v2990 = vunpack.c.h.b16 %v2550
        %v2991 = vunpack.c.l.b16 %v2551
        %v2992 = vunpack.c.h.b16 %v2551
        %v2993 = vunpack.c.l.b16 %v2552
        %v2994 = vunpack.c.h.b16 %v2552
        %v2995 = vunpack.c.l.b16 %v2553
        %v2996 = vunpack.c.h.b16 %v2553
        %v2997 = vunpack.c.l.b16 %v2554
        %v2998 = vunpack.c.h.b16 %v2554
        %v2999 = vunpack.c.l.b16 %v2555
        %v3000 = vunpack.c.h.b16 %v2555
        %v3001 = vunpack.c.l.b16 %v2556
        %v3002 = vunpack.c.h.b16 %v2556
        %v3003 = vunpack.c.l.b16 %v2557
        %v3004 = vunpack.c.h.b16 %v2557
        %v3005 = vunpack.c.l.b16 %v2558
        %v3006 = vunpack.c.h.b16 %v2558
        %v3007 = vunpack.c.l.b16 %v2559
        %v3008 = vunpack.c.h.b16 %v2559
        %v3009 = vunpack.c.l.b16 %v2560
        %v3010 = vunpack.c.h.b16 %v2560
        %v3011 = vunpack.c.l.b16 %v2561
        %v3012 = vunpack.c.h.b16 %v2561
        %v3013 = vunpack.c.l.b16 %v2562
        %v3014 = vunpack.c.h.b16 %v2562
        %v3015 = vunpack.c.l.b16 %v2563
        %v3016 = vunpack.c.h.b16 %v2563
        %v3017 = vunpack.c.l.b16 %v2564
        %v3018 = vunpack.c.h.b16 %v2564
        %v3019 = vunpack.c.l.b16 %v2565
        %v3020 = vunpack.c.h.b16 %v2565
        %v3021 = vunpack.c.l.b16 %v2566
        %v3022 = vunpack.c.h.b16 %v2566
        %v3023 = vunpack.c.l.b16 %v2567
        %v3024 = vunpack.c.h.b16 %v2567
        %v3025 = vunpack.c.l.b16 %v2568
        %v3026 = vunpack.c.h.b16 %v2568
        %v3027 = vunpack.c.l.b16 %v2569
        %v3028 = vunpack.c.h.b16 %v2569
        %v3029 = vunpack.c.l.b16 %v2570
        %v3030 = vunpack.c.h.b16 %v2570
        %v3031 = vunpack.c.l.b16 %v2571
        %v3032 = vunpack.c.h.b16 %v2571
        %v3033 = vunpack.c.l.b16 %v2572
        %v3034 = vunpack.c.h.b16 %v2572
        %v3035 = vunpack.c.l.b16 %v2573
        %v3036 = vunpack.c.h.b16 %v2573
        %v3037 = vunpack.c.l.b16 %v2574
        %v3038 = vunpack.c.h.b16 %v2574
        %v3039 = vunpack.c.l.b16 %v2575
        %v3040 = vunpack.c.h.b16 %v2575
        %v3041 = vunpack.c.l.b16 %v2576
        %v3042 = vunpack.c.h.b16 %v2576
        %v3043 = vunpack.c.l.b16 %v2577
        %v3044 = vunpack.c.h.b16 %v2577
        %v3045 = vunpack.c.l.b16 %v2578
        %v3046 = vunpack.c.h.b16 %v2578
        %v3047 = vunpack.c.l.b16 %v2579
        %v3048 = vunpack.c.h.b16 %v2579
        %v3049 = vunpack.c.l.b16 %v2580
        %v3050 = vunpack.c.h.b16 %v2580
        %v3051 = vunpack.c.l.b16 %v2581
        %v3052 = vunpack.c.h.b16 %v2581
        %v3053 = vunpack.c.l.b16 %v2582
        %v3054 = vunpack.c.h.b16 %v2582
        %v3055 = vunpack.c.l.b16 %v2583
        %v3056 = vunpack.c.h.b16 %v2583
        %v3057 = vunpack.c.l.b16 %v2584
        %v3058 = vunpack.c.h.b16 %v2584
        %v3059 = vunpack.c.l.b16 %v2585
        %v3060 = vunpack.c.h.b16 %v2585
        %v3061 = vunpack.c.l.b16 %v2586
        %v3062 = vunpack.c.h.b16 %v2586
        %v3063 = vunpack.c.l.b16 %v2587
        %v3064 = vunpack.c.h.b16 %v2587
        %v3065 = vunpack.c.l.b16 %v2588
        %v3066 = vunpack.c.h.b16 %v2588
        %v3067 = vunpack.c.l.b16 %v2589
        %v3068 = vunpack.c.h.b16 %v2589
        %v3069 = vunpack.c.l.b16 %v2590
        %v3070 = vunpack.c.h.b16 %v2590
        %v3071 = vunpack.c.l.b16 %v2591
        %v3072 = vunpack.c.h.b16 %v2591
        %v3073 = vunpack.c.l.b16 %v2592
        %v3074 = vunpack.c.h.b16 %v2592
        %v3075 = vunpack.c.l.b16 %v2593
        %v3076 = vunpack.c.h.b16 %v2593
        %v3077 = vunpack.c.l.b16 %v2594
        %v3078 = vunpack.c.h.b16 %v2594
        %v3079 = vunpack.c.l.b16 %v2595
        %v3080 = vunpack.c.h.b16 %v2595
        %v3081 = vunpack.c.l.b16 %v2596
        %v3082 = vunpack.c.h.b16 %v2596
        %v3083 = vunpack.c.l.b16 %v2597
        %v3084 = vunpack.c.h.b16 %v2597
        %v3085 = vunpack.c.l.b16 %v2598
        %v3086 = vunpack.c.h.b16 %v2598
        %v3087 = vunpack.c.l.b16 %v2599
        %v3088 = vunpack.c.h.b16 %v2599
        %v3089 = vunpack.c.l.b16 %v2600
        %v3090 = vunpack.c.h.b16 %v2600
        %v3091 = vunpack.c.l.b16 %v2601
        %v3092 = vunpack.c.h.b16 %v2601
        %v3093 = vunpack.c.l.b16 %v2602
        %v3094 = vunpack.c.h.b16 %v2602
        %v3095 = vunpack.c.l.b16 %v2603
        %v3096 = vunpack.c.h.b16 %v2603
        %v3097 = vunpack.c.l.b16 %v2604
        %v3098 = vunpack.c.h.b16 %v2604
        %v3099 = vunpack.c.l.b16 %v2605
        %v3100 = vunpack.c.h.b16 %v2605
        %v3101 = vunpack.c.l.b16 %v2606
        %v3102 = vunpack.c.h.b16 %v2606
        %v3103 = vunpack.c.l.b16 %v2607
        %v3104 = vunpack.c.h.b16 %v2607
        %v3105 = vunpack.c.l.b16 %v2608
        %v3106 = vunpack.c.h.b16 %v2608
        %v3107 = vunpack.c.l.b16 %v2609
        %v3108 = vunpack.c.h.b16 %v2609
        %v3109 = vunpack.c.l.b16 %v2610
        %v3110 = vunpack.c.h.b16 %v2610
        %v3111 = vunpack.c.l.b16 %v2611
        %v3112 = vunpack.c.h.b16 %v2611
        %v3113 = vunpack.c.l.b16 %v2612
        %v3114 = vunpack.c.h.b16 %v2612
        %v3115 = vunpack.c.l.b16 %v2613
        %v3116 = vunpack.c.h.b16 %v2613
        %v3117 = vunpack.c.l.b16 %v2614
        %v3118 = vunpack.c.h.b16 %v2614
        %v3119 = vunpack.c.l.b16 %v2615
        %v3120 = vunpack.c.h.b16 %v2615
        %v3121 = vunpack.c.l.b16 %v2616
        %v3122 = vunpack.c.h.b16 %v2616
        %v3123 = vunpack.c.l.b16 %v2617
        %v3124 = vunpack.c.h.b16 %v2617
        %v3125 = vunpack.c.l.b16 %v2618
        %v3126 = vunpack.c.h.b16 %v2618
        %v3127 = vunpack.c.l.b16 %v2619
        %v3128 = vunpack.c.h.b16 %v2619
        %v3129 = vunpack.c.l.b16 %v2620
        %v3130 = vunpack.c.h.b16 %v2620
        %v3131 = vunpack.c.l.b16 %v2621
        %v3132 = vunpack.c.h.b16 %v2621
        %v3133 = vunpack.c.l.b16 %v2622
        %v3134 = vunpack.c.h.b16 %v2622
        %v3135 = vunpack.c.l.b16 %v2623
        %v3136 = vunpack.c.h.b16 %v2623
        %v3137 = vunpack.c.l.b16 %v2624
        %v3138 = vunpack.c.h.b16 %v2624
        %v3139 = vunpack.c.l.b16 %v2625
        %v3140 = vunpack.c.h.b16 %v2625
        %v3141 = vunpack.c.l.b16 %v2626
        %v3142 = vunpack.c.h.b16 %v2626
        %v3143 = vunpack.c.l.b16 %v2627
        %v3144 = vunpack.c.h.b16 %v2627
        %v3145 = vunpack.c.l.b16 %v2628
        %v3146 = vunpack.c.h.b16 %v2628
        %v3147 = vunpack.c.l.b16 %v2629
        %v3148 = vunpack.c.h.b16 %v2629
        %v3149 = vunpack.c.l.b16 %v2630
        %v3150 = vunpack.c.h.b16 %v2630
        %v3151 = vunpack.c.l.b16 %v2631
        %v3152 = vunpack.c.h.b16 %v2631
        %v3153 = vunpack.c.l.b16 %v2632
        %v3154 = vunpack.c.h.b16 %v2632
        %v3155 = vunpack.c.l.b16 %v2633
        %v3156 = vunpack.c.h.b16 %v2633
        %v3157 = vunpack.c.l.b16 %v2634
        %v3158 = vunpack.c.h.b16 %v2634
        %v3159 = vunpack.c.l.b16 %v2635
        %v3160 = vunpack.c.h.b16 %v2635
        %v3161 = vunpack.c.l.b16 %v2636
        %v3162 = vunpack.c.h.b16 %v2636
        %v3163 = vunpack.c.l.b16 %v2637
        %v3164 = vunpack.c.h.b16 %v2637
        %v3165 = vunpack.c.l.b16 %v2638
        %v3166 = vunpack.c.h.b16 %v2638
        %v3167 = vunpack.c.l.b16 %v2639
        %v3168 = vunpack.c.h.b16 %v2639
        %v3169 = vunpack.c.l.b16 %v2640
        %v3170 = vunpack.c.h.b16 %v2640
        %v3171 = vunpack.c.l.b16 %v2641
        %v3172 = vunpack.c.h.b16 %v2641
        %v3173 = vunpack.c.l.b16 %v2642
        %v3174 = vunpack.c.h.b16 %v2642
        %v3175 = vunpack.c.l.b16 %v2643
        %v3176 = vunpack.c.h.b16 %v2643
        %v3177 = vunpack.c.l.b16 %v2644
        %v3178 = vunpack.c.h.b16 %v2644
        %v3179 = vunpack.c.l.b16 %v2645
        %v3180 = vunpack.c.h.b16 %v2645
        %v3181 = vunpack.c.l.b16 %v2646
        %v3182 = vunpack.c.h.b16 %v2646
        %v3183 = vunpack.c.l.b16 %v2647
        %v3184 = vunpack.c.h.b16 %v2647
        %v3185 = vunpack.c.l.b16 %v2648
        %v3186 = vunpack.c.h.b16 %v2648
        %v3187 = vunpack.c.l.b16 %v2649
        %v3188 = vunpack.c.h.b16 %v2649
        %v3189 = vunpack.c.l.b16 %v2650
        %v3190 = vunpack.c.h.b16 %v2650
        %v3191 = vunpack.c.l.b16 %v2651
        %v3192 = vunpack.c.h.b16 %v2651
        %v3193 = vunpack.c.l.b16 %v2652
        %v3194 = vunpack.c.h.b16 %v2652
        %v3195 = vunpack.c.l.b16 %v2653
        %v3196 = vunpack.c.h.b16 %v2653
        %v3197 = vunpack.c.l.b16 %v2654
        %v3198 = vunpack.c.h.b16 %v2654
        %v3199 = vunpack.c.l.b16 %v2655
        %v3200 = vunpack.c.h.b16 %v2655
        %v3201 = vunpack.c.l.b16 %v2656
        %v3202 = vunpack.c.h.b16 %v2656
        %v3203 = vunpack.c.l.b16 %v2657
        %v3204 = vunpack.c.h.b16 %v2657
        %v3205 = vunpack.c.l.b16 %v2658
        %v3206 = vunpack.c.h.b16 %v2658
        %v3207 = vunpack.c.l.b16 %v2659
        %v3208 = vunpack.c.h.b16 %v2659
        %v3209 = vunpack.c.l.b16 %v2660
        %v3210 = vunpack.c.h.b16 %v2660
        %v3211 = vunpack.c.l.b16 %v2661
        %v3212 = vunpack.c.h.b16 %v2661
        %v3213 = vunpack.c.l.b16 %v2662
        %v3214 = vunpack.c.h.b16 %v2662
        %v3215 = vunpack.c.l.b16 %v2663
        %v3216 = vunpack.c.h.b16 %v2663
        %v3217 = vunpack.c.l.b16 %v2664
        %v3218 = vunpack.c.h.b16 %v2664
        %v3219 = vunpack.c.l.b16 %v2665
        %v3220 = vunpack.c.h.b16 %v2665
        %v3221 = vunpack.c.l.b16 %v2666
        %v3222 = vunpack.c.h.b16 %v2666
        %v3223 = vunpack.c.l.b16 %v2667
        %v3224 = vunpack.c.h.b16 %v2667
        %v3225 = vunpack.c.l.b16 %v2668
        %v3226 = vunpack.c.h.b16 %v2668
        %v3227 = vunpack.c.l.b16 %v2669
        %v3228 = vunpack.c.h.b16 %v2669
        %v3229 = vunpack.c.l.b16 %v2670
        %v3230 = vunpack.c.h.b16 %v2670
        %v3231 = vunpack.c.l.b16 %v2671
        %v3232 = vunpack.c.h.b16 %v2671
        %v3233 = vunpack.c.l.b16 %v2672
        %v3234 = vunpack.c.h.b16 %v2672
        %v3235 = vunpack.c.l.b16 %v2673
        %v3236 = vunpack.c.h.b16 %v2673
        %v3237 = vunpack.c.l.b16 %v2674
        %v3238 = vunpack.c.h.b16 %v2674
        %v3239 = vunpack.c.l.b16 %v2675
        %v3240 = vunpack.c.h.b16 %v2675
        %v3241 = vunpack.c.l.b16 %v2676
        %v3242 = vunpack.c.h.b16 %v2676
        %v3243 = vunpack.c.l.b16 %v2677
        %v3244 = vunpack.c.h.b16 %v2677
        %v3245 = vunpack.c.l.b16 %v2678
        %v3246 = vunpack.c.h.b16 %v2678
        %v3247 = vunpack.c.l.b16 %v2679
        %v3248 = vunpack.c.h.b16 %v2679
        %v3249 = vunpack.c.l.b16 %v2680
        %v3250 = vunpack.c.h.b16 %v2680
        %v3251 = vunpack.c.l.b16 %v2681
        %v3252 = vunpack.c.h.b16 %v2681
        %v3253 = vunpack.c.l.b16 %v2682
        %v3254 = vunpack.c.h.b16 %v2682
        %v3255 = vunpack.c.l.b16 %v2683
        %v3256 = vunpack.c.h.b16 %v2683
        %v3257 = vunpack.c.l.b16 %v2684
        %v3258 = vunpack.c.h.b16 %v2684
        %v3259 = vunpack.c.l.b16 %v2685
        %v3260 = vunpack.c.h.b16 %v2685
        %v3261 = vunpack.c.l.b16 %v2686
        %v3262 = vunpack.c.h.b16 %v2686
        %v3263 = vunpack.c.l.b16 %v2687
        %v3264 = vunpack.c.h.b16 %v2687
        %v3265 = vunpack.c.l.b16 %v2688
        %v3266 = vunpack.c.h.b16 %v2688
        %v3267 = vunpack.c.l.b16 %v2689
        %v3268 = vunpack.c.h.b16 %v2689
        %v3269 = vunpack.c.l.b16 %v2690
        %v3270 = vunpack.c.h.b16 %v2690
        %v3271 = vunpack.c.l.b16 %v2691
        %v3272 = vunpack.c.h.b16 %v2691
        %v3273 = vunpack.c.l.b16 %v2692
        %v3274 = vunpack.c.h.b16 %v2692
        %v3275 = vunpack.c.l.b16 %v2693
        %v3276 = vunpack.c.h.b16 %v2693
        %v3277 = vunpack.c.l.b16 %v2694
        %v3278 = vunpack.c.h.b16 %v2694
        %v3279 = vunpack.c.l.b16 %v2695
        %v3280 = vunpack.c.h.b16 %v2695
        %v3281 = vunpack.c.l.b16 %v2696
        %v3282 = vunpack.c.h.b16 %v2696
        %v3283 = vunpack.c.l.b16 %v2697
        %v3284 = vunpack.c.h.b16 %v2697
        %v3285 = vunpack.c.l.b16 %v2698
        %v3286 = vunpack.c.h.b16 %v2698
        %v3287 = vunpack.c.l.b16 %v2699
        %v3288 = vunpack.c.h.b16 %v2699
        %v3289 = vunpack.c.l.b16 %v2700
        %v3290 = vunpack.c.h.b16 %v2700
        %v3291 = vpack.c.b16 %v2913, %v2907
        %v3292 = vpack.c.b16 %v2914, %v2908
        %v3293 = vpack.c.b16 %v2915, %v2909
        %v3294 = vpack.c.b16 %v2916, %v2910
        %v3295 = vpack.c.b16 %v2917, %v2911
        %v3296 = vpack.c.b16 %v2918, %v2912
        %v3297 = vpack.c.b16 %v2925, %v2919
        %v3298 = vpack.c.b16 %v2926, %v2920
        %v3299 = vpack.c.b16 %v2927, %v2921
        %v3300 = vpack.c.b16 %v2928, %v2922
        %v3301 = vpack.c.b16 %v2929, %v2923
        %v3302 = vpack.c.b16 %v2930, %v2924
        %v3303 = vpack.c.b16 %v2937, %v2931
        %v3304 = vpack.c.b16 %v2938, %v2932
        %v3305 = vpack.c.b16 %v2939, %v2933
        %v3306 = vpack.c.b16 %v2940, %v2934
        %v3307 = vpack.c.b16 %v2941, %v2935
        %v3308 = vpack.c.b16 %v2942, %v2936
        %v3309 = vpack.c.b16 %v2949, %v2943
        %v3310 = vpack.c.b16 %v2950, %v2944
        %v3311 = vpack.c.b16 %v2951, %v2945
        %v3312 = vpack.c.b16 %v2952, %v2946
        %v3313 = vpack.c.b16 %v2953, %v2947
        %v3314 = vpack.c.b16 %v2954, %v2948
        %v3315 = vpack.c.b16 %v2961, %v2955
        %v3316 = vpack.c.b16 %v2962, %v2956
        %v3317 = vpack.c.b16 %v2963, %v2957
        %v3318 = vpack.c.b16 %v2964, %v2958
        %v3319 = vpack.c.b16 %v2965, %v2959
        %v3320 = vpack.c.b16 %v2966, %v2960
        %v3321 = vpack.c.b16 %v2973, %v2967
        %v3322 = vpack.c.b16 %v2974, %v2968
        %v3323 = vpack.c.b16 %v2975, %v2969
        %v3324 = vpack.c.b16 %v2976, %v2970
        %v3325 = vpack.c.b16 %v2977, %v2971
        %v3326 = vpack.c.b16 %v2978, %v2972
        %v3327 = vpack.c.b16 %v2985, %v2979
        %v3328 = vpack.c.b16 %v2986, %v2980
        %v3329 = vpack.c.b16 %v2987, %v2981
        %v3330 = vpack.c.b16 %v2988, %v2982
        %v3331 = vpack.c.b16 %v2989, %v2983
        %v3332 = vpack.c.b16 %v2990, %v2984
        %v3333 = vpack.c.b16 %v2997, %v2991
        %v3334 = vpack.c.b16 %v2998, %v2992
        %v3335 = vpack.c.b16 %v2999, %v2993
        %v3336 = vpack.c.b16 %v3000, %v2994
        %v3337 = vpack.c.b16 %v3001, %v2995
        %v3338 = vpack.c.b16 %v3002, %v2996
        %v3339 = vpack.c.b16 %v3009, %v3003
        %v3340 = vpack.c.b16 %v3010, %v3004
        %v3341 = vpack.c.b16 %v3011, %v3005
        %v3342 = vpack.c.b16 %v3012, %v3006
        %v3343 = vpack.c.b16 %v3013, %v3007
        %v3344 = vpack.c.b16 %v3014, %v3008
        %v3345 = vpack.c.b16 %v3021, %v3015
        %v3346 = vpack.c.b16 %v3022, %v3016
        %v3347 = vpack.c.b16 %v3023, %v3017
        %v3348 = vpack.c.b16 %v3024, %v3018
        %v3349 = vpack.c.b16 %v3025, %v3019
        %v3350 = vpack.c.b16 %v3026, %v3020
        %v3351 = vpack.c.b16 %v3033, %v3027
        %v3352 = vpack.c.b16 %v3034, %v3028
        %v3353 = vpack.c.b16 %v3035, %v3029
        %v3354 = vpack.c.b16 %v3036, %v3030
        %v3355 = vpack.c.b16 %v3037, %v3031
        %v3356 = vpack.c.b16 %v3038, %v3032
        %v3357 = vpack.c.b16 %v3045, %v3039
        %v3358 = vpack.c.b16 %v3046, %v3040
        %v3359 = vpack.c.b16 %v3047, %v3041
        %v3360 = vpack.c.b16 %v3048, %v3042
        %v3361 = vpack.c.b16 %v3049, %v3043
        %v3362 = vpack.c.b16 %v3050, %v3044
        %v3363 = vpack.c.b16 %v3057, %v3051
        %v3364 = vpack.c.b16 %v3058, %v3052
        %v3365 = vpack.c.b16 %v3059, %v3053
        %v3366 = vpack.c.b16 %v3060, %v3054
        %v3367 = vpack.c.b16 %v3061, %v3055
        %v3368 = vpack.c.b16 %v3062, %v3056
        %v3369 = vpack.c.b16 %v3069, %v3063
        %v3370 = vpack.c.b16 %v3070, %v3064
        %v3371 = vpack.c.b16 %v3071, %v3065
        %v3372 = vpack.c.b16 %v3072, %v3066
        %v3373 = vpack.c.b16 %v3073, %v3067
        %v3374 = vpack.c.b16 %v3074, %v3068
        %v3375 = vpack.c.b16 %v3081, %v3075
        %v3376 = vpack.c.b16 %v3082, %v3076
        %v3377 = vpack.c.b16 %v3083, %v3077
        %v3378 = vpack.c.b16 %v3084, %v3078
        %v3379 = vpack.c.b16 %v3085, %v3079
        %v3380 = vpack.c.b16 %v3086, %v3080
        %v3381 = vpack.c.b16 %v3093, %v3087
        %v3382 = vpack.c.b16 %v3094, %v3088
        %v3383 = vpack.c.b16 %v3095, %v3089
        %v3384 = vpack.c.b16 %v3096, %v3090
        %v3385 = vpack.c.b16 %v3097, %v3091
        %v3386 = vpack.c.b16 %v3098, %v3092
        %v3387 = vpack.c.b16 %v3105, %v3099
        %v3388 = vpack.c.b16 %v3106, %v3100
        %v3389 = vpack.c.b16 %v3107, %v3101
        %v3390 = vpack.c.b16 %v3108, %v3102
        %v3391 = vpack.c.b16 %v3109, %v3103
        %v3392 = vpack.c.b16 %v3110, %v3104
        %v3393 = vpack.c.b16 %v3117, %v3111
        %v3394 = vpack.c.b16 %v3118, %v3112
        %v3395 = vpack.c.b16 %v3119, %v3113
        %v3396 = vpack.c.b16 %v3120, %v3114
        %v3397 = vpack.c.b16 %v3121, %v3115
        %v3398 = vpack.c.b16 %v3122, %v3116
        %v3399 = vpack.c.b16 %v3129, %v3123
        %v3400 = vpack.c.b16 %v3130, %v3124
        %v3401 = vpack.c.b16 %v3131, %v3125
        %v3402 = vpack.c.b16 %v3132, %v3126
        %v3403 = vpack.c.b16 %v3133, %v3127
        %v3404 = vpack.c.b16 %v3134, %v3128
        %v3405 = vpack.c.b16 %v3141, %v3135
        %v3406 = vpack.c.b16 %v3142, %v3136
        %v3407 = vpack.c.b16 %v3143, %v3137
        %v3408 = vpack.c.b16 %v3144, %v3138
        %v3409 = vpack.c.b16 %v3145, %v3139
        %v3410 = vpack.c.b16 %v3146, %v3140
        %v3411 = vpack.c.b16 %v3153, %v3147
        %v3412 = vpack.c.b16 %v3154, %v3148
        %v3413 = vpack.c.b16 %v3155, %v3149
        %v3414 = vpack.c.b16 %v3156, %v3150
        %v3415 = vpack.c.b16 %v3157, %v3151
        %v3416 = vpack.c.b16 %v3158, %v3152
        %v3417 = vpack.c.b16 %v3165, %v3159
        %v3418 = vpack.c.b16 %v3166, %v3160
        %v3419 = vpack.c.b16 %v3167, %v3161
        %v3420 = vpack.c.b16 %v3168, %v3162
        %v3421 = vpack.c.b16 %v3169, %v3163
        %v3422 = vpack.c.b16 %v3170, %v3164
        %v3423 = vpack.c.b16 %v3177, %v3171
        %v3424 = vpack.c.b16 %v3178, %v3172
        %v3425 = vpack.c.b16 %v3179, %v3173
        %v3426 = vpack.c.b16 %v3180, %v3174
        %v3427 = vpack.c.b16 %v3181, %v3175
        %v3428 = vpack.c.b16 %v3182, %v3176
        %v3429 = vpack.c.b16 %v3189, %v3183
        %v3430 = vpack.c.b16 %v3190, %v3184
        %v3431 = vpack.c.b16 %v3191, %v3185
        %v3432 = vpack.c.b16 %v3192, %v3186
        %v3433 = vpack.c.b16 %v3193, %v3187
        %v3434 = vpack.c.b16 %v3194, %v3188
        %v3435 = vpack.c.b16 %v3201, %v3195
        %v3436 = vpack.c.b16 %v3202, %v3196
        %v3437 = vpack.c.b16 %v3203, %v3197
        %v3438 = vpack.c.b16 %v3204, %v3198
        %v3439 = vpack.c.b16 %v3205, %v3199
        %v3440 = vpack.c.b16 %v3206, %v3200
        %v3441 = vpack.c.b16 %v3213, %v3207
        %v3442 = vpack.c.b16 %v3214, %v3208
        %v3443 = vpack.c.b16 %v3215, %v3209
        %v3444 = vpack.c.b16 %v3216, %v3210
        %v3445 = vpack.c.b16 %v3217, %v3211
        %v3446 = vpack.c.b16 %v3218, %v3212
        %v3447 = vpack.c.b16 %v3225, %v3219
        %v3448 = vpack.c.b16 %v3226, %v3220
        %v3449 = vpack.c.b16 %v3227, %v3221
        %v3450 = vpack.c.b16 %v3228, %v3222
        %v3451 = vpack.c.b16 %v3229, %v3223
        %v3452 = vpack.c.b16 %v3230, %v3224
        %v3453 = vpack.c.b16 %v3237, %v3231
        %v3454 = vpack.c.b16 %v3238, %v3232
        %v3455 = vpack.c.b16 %v3239, %v3233
        %v3456 = vpack.c.b16 %v3240, %v3234
        %v3457 = vpack.c.b16 %v3241, %v3235
        %v3458 = vpack.c.b16 %v3242, %v3236
        %v3459 = vpack.c.b16 %v3249, %v3243
        %v3460 = vpack.c.b16 %v3250, %v3244
        %v3461 = vpack.c.b16 %v3251, %v3245
        %v3462 = vpack.c.b16 %v3252, %v3246
        %v3463 = vpack.c.b16 %v3253, %v3247
        %v3464 = vpack.c.b16 %v3254, %v3248
        %v3465 = vpack.c.b16 %v3261, %v3255
        %v3466 = vpack.c.b16 %v3262, %v3256
        %v3467 = vpack.c.b16 %v3263, %v3257
        %v3468 = vpack.c.b16 %v3264, %v3258
        %v3469 = vpack.c.b16 %v3265, %v3259
        %v3470 = vpack.c.b16 %v3266, %v3260
        %v3471 = vpack.c.b16 %v3273, %v3267
        %v3472 = vpack.c.b16 %v3274, %v3268
        %v3473 = vpack.c.b16 %v3275, %v3269
        %v3474 = vpack.c.b16 %v3276, %v3270
        %v3475 = vpack.c.b16 %v3277, %v3271
        %v3476 = vpack.c.b16 %v3278, %v3272
        %v3477 = vpack.c.b16 %v3285, %v3279
        %v3478 = vpack.c.b16 %v3286, %v3280
        %v3479 = vpack.c.b16 %v3287, %v3281
        %v3480 = vpack.c.b16 %v3288, %v3282
        %v3481 = vpack.c.b16 %v3289, %v3283
        %v3482 = vpack.c.b16 %v3290, %v3284
        %3675 = vmatpush.bf16.msra.mxu0 %v3333
        %3676 = vmatpush.bf16.msra.mxu0 %v3327
        %3677 = vmatpush.bf16.msra.mxu0 %v3321
        %3678 = vmatpush.bf16.msra.mxu0 %v3315
        %3679 = vmatpush.bf16.msra.mxu0 %v3309
        %3680 = vmatpush.bf16.msra.mxu0 %v3303
        %3681 = vmatpush.bf16.msra.mxu0 %v3297
        %3682 = vmatpush.bf16.msra.mxu0 %v3291
        %3683 = vmatmul.bf16.gmra.mxu0 %v2505
        %v3684 = vpop.f32.mrf.mxu0
        %v3685 = vadd.f32 %v2703, %v3684
        %v3686 = vpop.f32.mrf.mxu0
        %v3687 = vadd.f32 %v2703, %v3686
        %3688 = vdwg.mxu0
        %3689 = vmatpush.bf16.msra.mxu0 %v3381
        %3690 = vmatpush.bf16.msra.mxu0 %v3375
        %3691 = vmatpush.bf16.msra.mxu0 %v3369
        %3692 = vmatpush.bf16.msra.mxu0 %v3363
        %3693 = vmatpush.bf16.msra.mxu0 %v3357
        %3694 = vmatpush.bf16.msra.mxu0 %v3351
        %3695 = vmatpush.bf16.msra.mxu0 %v3345
        %3696 = vmatpush.bf16.msra.mxu0 %v3339
        %3697 = vmatmul.bf16.gmra.mxu0 %v2506
        %v3698 = vpop.f32.mrf.mxu0
        %v3699 = vadd.f32 %v3685, %v3698
        %v3700 = vpop.f32.mrf.mxu0
        %v3701 = vadd.f32 %v3687, %v3700
        %3702 = vdwg.mxu0
        %3703 = vmatpush.bf16.msra.mxu0 %v3429
        %3704 = vmatpush.bf16.msra.mxu0 %v3423
        %3705 = vmatpush.bf16.msra.mxu0 %v3417
        %3706 = vmatpush.bf16.msra.mxu0 %v3411
        %3707 = vmatpush.bf16.msra.mxu0 %v3405
        %3708 = vmatpush.bf16.msra.mxu0 %v3399
        %3709 = vmatpush.bf16.msra.mxu0 %v3393
        %3710 = vmatpush.bf16.msra.mxu0 %v3387
        %3711 = vmatmul.bf16.gmra.mxu0 %v2507
        %v3712 = vpop.f32.mrf.mxu0
        %v3713 = vadd.f32 %v3699, %v3712
        %v3714 = vpop.f32.mrf.mxu0
        %v3715 = vadd.f32 %v3701, %v3714
        %3716 = vdwg.mxu0
        %3717 = vmatpush.bf16.msra.mxu0 %v3477
        %3718 = vmatpush.bf16.msra.mxu0 %v3471
        %3719 = vmatpush.bf16.msra.mxu0 %v3465
        %3720 = vmatpush.bf16.msra.mxu0 %v3459
        %3721 = vmatpush.bf16.msra.mxu0 %v3453
        %3722 = vmatpush.bf16.msra.mxu0 %v3447
        %3723 = vmatpush.bf16.msra.mxu0 %v3441
        %3724 = vmatpush.bf16.msra.mxu0 %v3435
        %3725 = vmatmul.bf16.gmra.mxu0 %v2508
        %v3726 = vpop.f32.mrf.mxu0
        %v3727 = vadd.f32 %v3713, %v3726
        %v3728 = vpop.f32.mrf.mxu0
        %v3729 = vadd.f32 %v3715, %v3728
        %3730 = vdwg.mxu0
        %3731 = vmatpush.bf16.msra.mxu0 %v3334
        %3732 = vmatpush.bf16.msra.mxu0 %v3328
        %3733 = vmatpush.bf16.msra.mxu0 %v3322
        %3734 = vmatpush.bf16.msra.mxu0 %v3316
        %3735 = vmatpush.bf16.msra.mxu0 %v3310
        %3736 = vmatpush.bf16.msra.mxu0 %v3304
        %3737 = vmatpush.bf16.msra.mxu0 %v3298
        %3738 = vmatpush.bf16.msra.mxu0 %v3292
        %3739 = vmatmul.bf16.gmra.mxu0 %v2505
        %v3740 = vpop.f32.mrf.mxu0
        %v3741 = vadd.f32 %v2704, %v3740
        %v3742 = vpop.f32.mrf.mxu0
        %v3743 = vadd.f32 %v2704, %v3742
        %3744 = vdwg.mxu0
        %3745 = vmatpush.bf16.msra.mxu0 %v3382
        %3746 = vmatpush.bf16.msra.mxu0 %v3376
        %3747 = vmatpush.bf16.msra.mxu0 %v3370
        %3748 = vmatpush.bf16.msra.mxu0 %v3364
        %3749 = vmatpush.bf16.msra.mxu0 %v3358
        %3750 = vmatpush.bf16.msra.mxu0 %v3352
        %3751 = vmatpush.bf16.msra.mxu0 %v3346
        %3752 = vmatpush.bf16.msra.mxu0 %v3340
        %3753 = vmatmul.bf16.gmra.mxu0 %v2506
        %v3754 = vpop.f32.mrf.mxu0
        %v3755 = vadd.f32 %v3741, %v3754
        %v3756 = vpop.f32.mrf.mxu0
        %v3757 = vadd.f32 %v3743, %v3756
        %3758 = vdwg.mxu0
        %3759 = vmatpush.bf16.msra.mxu0 %v3430
        %3760 = vmatpush.bf16.msra.mxu0 %v3424
        %3761 = vmatpush.bf16.msra.mxu0 %v3418
        %3762 = vmatpush.bf16.msra.mxu0 %v3412
        %3763 = vmatpush.bf16.msra.mxu0 %v3406
        %3764 = vmatpush.bf16.msra.mxu0 %v3400
        %3765 = vmatpush.bf16.msra.mxu0 %v3394
        %3766 = vmatpush.bf16.msra.mxu0 %v3388
        %3767 = vmatmul.bf16.gmra.mxu0 %v2507
        %v3768 = vpop.f32.mrf.mxu0
        %v3769 = vadd.f32 %v3755, %v3768
        %v3770 = vpop.f32.mrf.mxu0
        %v3771 = vadd.f32 %v3757, %v3770
        %3772 = vdwg.mxu0
        %3773 = vmatpush.bf16.msra.mxu0 %v3478
        %3774 = vmatpush.bf16.msra.mxu0 %v3472
        %3775 = vmatpush.bf16.msra.mxu0 %v3466
        %3776 = vmatpush.bf16.msra.mxu0 %v3460
        %3777 = vmatpush.bf16.msra.mxu0 %v3454
        %3778 = vmatpush.bf16.msra.mxu0 %v3448
        %3779 = vmatpush.bf16.msra.mxu0 %v3442
        %3780 = vmatpush.bf16.msra.mxu0 %v3436
        %3781 = vmatmul.bf16.gmra.mxu0 %v2508
        %v3782 = vpop.f32.mrf.mxu0
        %v3783 = vadd.f32 %v3769, %v3782
        %v3784 = vpop.f32.mrf.mxu0
        %v3785 = vadd.f32 %v3771, %v3784
        %3786 = vdwg.mxu0
        %3787 = vmatpush.bf16.msra.mxu0 %v3335
        %3788 = vmatpush.bf16.msra.mxu0 %v3329
        %3789 = vmatpush.bf16.msra.mxu0 %v3323
        %3790 = vmatpush.bf16.msra.mxu0 %v3317
        %3791 = vmatpush.bf16.msra.mxu0 %v3311
        %3792 = vmatpush.bf16.msra.mxu0 %v3305
        %3793 = vmatpush.bf16.msra.mxu0 %v3299
        %3794 = vmatpush.bf16.msra.mxu0 %v3293
        %3795 = vmatmul.bf16.gmra.mxu0 %v2505
        %v3796 = vpop.f32.mrf.mxu0
        %v3797 = vadd.f32 %v2705, %v3796
        %v3798 = vpop.f32.mrf.mxu0
        %v3799 = vadd.f32 %v2705, %v3798
        %3800 = vdwg.mxu0
        %3801 = vmatpush.bf16.msra.mxu0 %v3383
        %3802 = vmatpush.bf16.msra.mxu0 %v3377
        %3803 = vmatpush.bf16.msra.mxu0 %v3371
        %3804 = vmatpush.bf16.msra.mxu0 %v3365
        %3805 = vmatpush.bf16.msra.mxu0 %v3359
        %3806 = vmatpush.bf16.msra.mxu0 %v3353
        %3807 = vmatpush.bf16.msra.mxu0 %v3347
        %3808 = vmatpush.bf16.msra.mxu0 %v3341
        %3809 = vmatmul.bf16.gmra.mxu0 %v2506
        %v3810 = vpop.f32.mrf.mxu0
        %v3811 = vadd.f32 %v3797, %v3810
        %v3812 = vpop.f32.mrf.mxu0
        %v3813 = vadd.f32 %v3799, %v3812
        %3814 = vdwg.mxu0
        %3815 = vmatpush.bf16.msra.mxu0 %v3431
        %3816 = vmatpush.bf16.msra.mxu0 %v3425
        %3817 = vmatpush.bf16.msra.mxu0 %v3419
        %3818 = vmatpush.bf16.msra.mxu0 %v3413
        %3819 = vmatpush.bf16.msra.mxu0 %v3407
        %3820 = vmatpush.bf16.msra.mxu0 %v3401
        %3821 = vmatpush.bf16.msra.mxu0 %v3395
        %3822 = vmatpush.bf16.msra.mxu0 %v3389
        %3823 = vmatmul.bf16.gmra.mxu0 %v2507
        %v3824 = vpop.f32.mrf.mxu0
        %v3825 = vadd.f32 %v3811, %v3824
        %v3826 = vpop.f32.mrf.mxu0
        %v3827 = vadd.f32 %v3813, %v3826
        %3828 = vdwg.mxu0
        %3829 = vmatpush.bf16.msra.mxu0 %v3479
        %3830 = vmatpush.bf16.msra.mxu0 %v3473
        %3831 = vmatpush.bf16.msra.mxu0 %v3467
        %3832 = vmatpush.bf16.msra.mxu0 %v3461
        %3833 = vmatpush.bf16.msra.mxu0 %v3455
        %3834 = vmatpush.bf16.msra.mxu0 %v3449
        %3835 = vmatpush.bf16.msra.mxu0 %v3443
        %3836 = vmatpush.bf16.msra.mxu0 %v3437
        %3837 = vmatmul.bf16.gmra.mxu0 %v2508
        %v3838 = vpop.f32.mrf.mxu0
        %v3839 = vadd.f32 %v3825, %v3838
        %v3840 = vpop.f32.mrf.mxu0
        %v3841 = vadd.f32 %v3827, %v3840
        %3842 = vdwg.mxu0
        %3843 = vmatpush.bf16.msra.mxu0 %v3336
        %3844 = vmatpush.bf16.msra.mxu0 %v3330
        %3845 = vmatpush.bf16.msra.mxu0 %v3324
        %3846 = vmatpush.bf16.msra.mxu0 %v3318
        %3847 = vmatpush.bf16.msra.mxu0 %v3312
        %3848 = vmatpush.bf16.msra.mxu0 %v3306
        %3849 = vmatpush.bf16.msra.mxu0 %v3300
        %3850 = vmatpush.bf16.msra.mxu0 %v3294
        %3851 = vmatmul.bf16.gmra.mxu0 %v2505
        %v3852 = vpop.f32.mrf.mxu0
        %v3853 = vadd.f32 %v2706, %v3852
        %v3854 = vpop.f32.mrf.mxu0
        %v3855 = vadd.f32 %v2706, %v3854
        %3856 = vdwg.mxu0
        %3857 = vmatpush.bf16.msra.mxu0 %v3384
        %3858 = vmatpush.bf16.msra.mxu0 %v3378
        %3859 = vmatpush.bf16.msra.mxu0 %v3372
        %3860 = vmatpush.bf16.msra.mxu0 %v3366
        %3861 = vmatpush.bf16.msra.mxu0 %v3360
        %3862 = vmatpush.bf16.msra.mxu0 %v3354
        %3863 = vmatpush.bf16.msra.mxu0 %v3348
        %3864 = vmatpush.bf16.msra.mxu0 %v3342
        %3865 = vmatmul.bf16.gmra.mxu0 %v2506
        %v3866 = vpop.f32.mrf.mxu0
        %v3867 = vadd.f32 %v3853, %v3866
        %v3868 = vpop.f32.mrf.mxu0
        %v3869 = vadd.f32 %v3855, %v3868
        %3870 = vdwg.mxu0
        %3871 = vmatpush.bf16.msra.mxu0 %v3432
        %3872 = vmatpush.bf16.msra.mxu0 %v3426
        %3873 = vmatpush.bf16.msra.mxu0 %v3420
        %3874 = vmatpush.bf16.msra.mxu0 %v3414
        %3875 = vmatpush.bf16.msra.mxu0 %v3408
        %3876 = vmatpush.bf16.msra.mxu0 %v3402
        %3877 = vmatpush.bf16.msra.mxu0 %v3396
        %3878 = vmatpush.bf16.msra.mxu0 %v3390
        %3879 = vmatmul.bf16.gmra.mxu0 %v2507
        %v3880 = vpop.f32.mrf.mxu0
        %v3881 = vadd.f32 %v3867, %v3880
        %v3882 = vpop.f32.mrf.mxu0
        %v3883 = vadd.f32 %v3869, %v3882
        %3884 = vdwg.mxu0
        %3885 = vmatpush.bf16.msra.mxu0 %v3480
        %3886 = vmatpush.bf16.msra.mxu0 %v3474
        %3887 = vmatpush.bf16.msra.mxu0 %v3468
        %3888 = vmatpush.bf16.msra.mxu0 %v3462
        %3889 = vmatpush.bf16.msra.mxu0 %v3456
        %3890 = vmatpush.bf16.msra.mxu0 %v3450
        %3891 = vmatpush.bf16.msra.mxu0 %v3444
        %3892 = vmatpush.bf16.msra.mxu0 %v3438
        %3893 = vmatmul.bf16.gmra.mxu0 %v2508
        %v3894 = vpop.f32.mrf.mxu0
        %v3895 = vadd.f32 %v3881, %v3894
        %v3896 = vpop.f32.mrf.mxu0
        %v3897 = vadd.f32 %v3883, %v3896
        %3898 = vdwg.mxu0
        %3899 = vmatpush.bf16.msra.mxu0 %v3337
        %3900 = vmatpush.bf16.msra.mxu0 %v3331
        %3901 = vmatpush.bf16.msra.mxu0 %v3325
        %3902 = vmatpush.bf16.msra.mxu0 %v3319
        %3903 = vmatpush.bf16.msra.mxu0 %v3313
        %3904 = vmatpush.bf16.msra.mxu0 %v3307
        %3905 = vmatpush.bf16.msra.mxu0 %v3301
        %3906 = vmatpush.bf16.msra.mxu0 %v3295
        %3907 = vmatmul.bf16.gmra.mxu0 %v2505
        %v3908 = vpop.f32.mrf.mxu0
        %v3909 = vadd.f32 %v2707, %v3908
        %v3910 = vpop.f32.mrf.mxu0
        %v3911 = vadd.f32 %v2707, %v3910
        %3912 = vdwg.mxu0
        %3913 = vmatpush.bf16.msra.mxu0 %v3385
        %3914 = vmatpush.bf16.msra.mxu0 %v3379
        %3915 = vmatpush.bf16.msra.mxu0 %v3373
        %3916 = vmatpush.bf16.msra.mxu0 %v3367
        %3917 = vmatpush.bf16.msra.mxu0 %v3361
        %3918 = vmatpush.bf16.msra.mxu0 %v3355
        %3919 = vmatpush.bf16.msra.mxu0 %v3349
        %3920 = vmatpush.bf16.msra.mxu0 %v3343
        %3921 = vmatmul.bf16.gmra.mxu0 %v2506
        %v3922 = vpop.f32.mrf.mxu0
        %v3923 = vadd.f32 %v3909, %v3922
        %v3924 = vpop.f32.mrf.mxu0
        %v3925 = vadd.f32 %v3911, %v3924
        %3926 = vdwg.mxu0
        %3927 = vmatpush.bf16.msra.mxu0 %v3433
        %3928 = vmatpush.bf16.msra.mxu0 %v3427
        %3929 = vmatpush.bf16.msra.mxu0 %v3421
        %3930 = vmatpush.bf16.msra.mxu0 %v3415
        %3931 = vmatpush.bf16.msra.mxu0 %v3409
        %3932 = vmatpush.bf16.msra.mxu0 %v3403
        %3933 = vmatpush.bf16.msra.mxu0 %v3397
        %3934 = vmatpush.bf16.msra.mxu0 %v3391
        %3935 = vmatmul.bf16.gmra.mxu0 %v2507
        %v3936 = vpop.f32.mrf.mxu0
        %v3937 = vadd.f32 %v3923, %v3936
        %v3938 = vpop.f32.mrf.mxu0
        %v3939 = vadd.f32 %v3925, %v3938
        %3940 = vdwg.mxu0
        %3941 = vmatpush.bf16.msra.mxu0 %v3481
        %3942 = vmatpush.bf16.msra.mxu0 %v3475
        %3943 = vmatpush.bf16.msra.mxu0 %v3469
        %3944 = vmatpush.bf16.msra.mxu0 %v3463
        %3945 = vmatpush.bf16.msra.mxu0 %v3457
        %3946 = vmatpush.bf16.msra.mxu0 %v3451
        %3947 = vmatpush.bf16.msra.mxu0 %v3445
        %3948 = vmatpush.bf16.msra.mxu0 %v3439
        %3949 = vmatmul.bf16.gmra.mxu0 %v2508
        %v3950 = vpop.f32.mrf.mxu0
        %v3951 = vadd.f32 %v3937, %v3950
        %v3952 = vpop.f32.mrf.mxu0
        %v3953 = vadd.f32 %v3939, %v3952
        %3954 = vdwg.mxu0
        %3955 = vmatpush.bf16.msra.mxu0 %v3338
        %3956 = vmatpush.bf16.msra.mxu0 %v3332
        %3957 = vmatpush.bf16.msra.mxu0 %v3326
        %3958 = vmatpush.bf16.msra.mxu0 %v3320
        %3959 = vmatpush.bf16.msra.mxu0 %v3314
        %3960 = vmatpush.bf16.msra.mxu0 %v3308
        %3961 = vmatpush.bf16.msra.mxu0 %v3302
        %3962 = vmatpush.bf16.msra.mxu0 %v3296
        %3963 = vmatmul.bf16.gmra.mxu0 %v2505
        %v3964 = vpop.f32.mrf.mxu0
        %v3965 = vadd.f32 %v2708, %v3964
        %v3966 = vpop.f32.mrf.mxu0
        %v3967 = vadd.f32 %v2708, %v3966
        %3968 = vdwg.mxu0
        %3969 = vmatpush.bf16.msra.mxu0 %v3386
        %3970 = vmatpush.bf16.msra.mxu0 %v3380
        %3971 = vmatpush.bf16.msra.mxu0 %v3374
        %3972 = vmatpush.bf16.msra.mxu0 %v3368
        %3973 = vmatpush.bf16.msra.mxu0 %v3362
        %3974 = vmatpush.bf16.msra.mxu0 %v3356
        %3975 = vmatpush.bf16.msra.mxu0 %v3350
        %3976 = vmatpush.bf16.msra.mxu0 %v3344
        %3977 = vmatmul.bf16.gmra.mxu0 %v2506
        %v3978 = vpop.f32.mrf.mxu0
        %v3979 = vadd.f32 %v3965, %v3978
        %v3980 = vpop.f32.mrf.mxu0
        %v3981 = vadd.f32 %v3967, %v3980
        %3982 = vdwg.mxu0
        %3983 = vmatpush.bf16.msra.mxu0 %v3434
        %3984 = vmatpush.bf16.msra.mxu0 %v3428
        %3985 = vmatpush.bf16.msra.mxu0 %v3422
        %3986 = vmatpush.bf16.msra.mxu0 %v3416
        %3987 = vmatpush.bf16.msra.mxu0 %v3410
        %3988 = vmatpush.bf16.msra.mxu0 %v3404
        %3989 = vmatpush.bf16.msra.mxu0 %v3398
        %3990 = vmatpush.bf16.msra.mxu0 %v3392
        %3991 = vmatmul.bf16.gmra.mxu0 %v2507
        %v3992 = vpop.f32.mrf.mxu0
        %v3993 = vadd.f32 %v3979, %v3992
        %v3994 = vpop.f32.mrf.mxu0
        %v3995 = vadd.f32 %v3981, %v3994
        %3996 = vdwg.mxu0
        %3997 = vmatpush.bf16.msra.mxu0 %v3482
        %3998 = vmatpush.bf16.msra.mxu0 %v3476
        %3999 = vmatpush.bf16.msra.mxu0 %v3470
        %4000 = vmatpush.bf16.msra.mxu0 %v3464
        %4001 = vmatpush.bf16.msra.mxu0 %v3458
        %4002 = vmatpush.bf16.msra.mxu0 %v3452
        %4003 = vmatpush.bf16.msra.mxu0 %v3446
        %4004 = vmatpush.bf16.msra.mxu0 %v3440
        %4005 = vmatmul.bf16.gmra.mxu0 %v2508
        %v4006 = vpop.f32.mrf.mxu0
        %v4007 = vadd.f32 %v3993, %v4006
        %v4008 = vpop.f32.mrf.mxu0
        %v4009 = vadd.f32 %v3995, %v4008
        %4010 = vdwg.mxu0
        %v4011 = vxor.u32 %v3727, 2147483648
        %v4012 = vxor.u32 %v3783, 2147483648
        %v4013 = vxor.u32 %v3839, 2147483648
        %v4014 = vxor.u32 %v3895, 2147483648
        %v4015 = vxor.u32 %v3951, 2147483648
        %v4016 = vxor.u32 %v4007, 2147483648
        %v4017 = vxor.u32 %v3729, 2147483648
        %v4018 = vxor.u32 %v3785, 2147483648
        %v4019 = vxor.u32 %v3841, 2147483648
        %v4020 = vxor.u32 %v3897, 2147483648
        %v4021 = vxor.u32 %v3953, 2147483648
        %v4022 = vxor.u32 %v4009, 2147483648
        %v4023 = vmul.f32 %v4011, 1.442695
        %v4024 = vpow.pop %v4023
        %v4025 = vmul.f32 %v4012, 1.442695
        %v4026 = vpow.pop %v4025
        %v4027 = vmul.f32 %v4013, 1.442695
        %v4028 = vpow.pop %v4027
        %v4029 = vmul.f32 %v4014, 1.442695
        %v4030 = vpow.pop %v4029
        %v4031 = vmul.f32 %v4015, 1.442695
        %v4032 = vpow.pop %v4031
        %v4033 = vmul.f32 %v4016, 1.442695
        %v4034 = vpow.pop %v4033
        %v4035 = vmul.f32 %v4017, 1.442695
        %v4036 = vpow.pop %v4035
        %v4037 = vmul.f32 %v4018, 1.442695
        %v4038 = vpow.pop %v4037
        %v4039 = vmul.f32 %v4019, 1.442695
        %v4040 = vpow.pop %v4039
        %v4041 = vmul.f32 %v4020, 1.442695
        %v4042 = vpow.pop %v4041
        %v4043 = vmul.f32 %v4021, 1.442695
        %v4044 = vpow.pop %v4043
        %v4045 = vmul.f32 %v4022, 1.442695
        %v4046 = vpow.pop %v4045
        %v4047 = vadd.f32 %v4024, 1.0
        %v4048 = vadd.f32 %v4026, 1.0
        %v4049 = vadd.f32 %v4028, 1.0
        %v4050 = vadd.f32 %v4030, 1.0
        %v4051 = vadd.f32 %v4032, 1.0
        %v4052 = vadd.f32 %v4034, 1.0
        %v4053 = vadd.f32 %v4036, 1.0
        %v4054 = vadd.f32 %v4038, 1.0
        %v4055 = vadd.f32 %v4040, 1.0
        %v4056 = vadd.f32 %v4042, 1.0
        %v4057 = vadd.f32 %v4044, 1.0
        %v4058 = vadd.f32 %v4046, 1.0
        %v4059 = vrcp.pop %v4047
        %v4060 = vmul.f32 %v4047, %v4059
        %v4061 = vsub.f32 1.0, %v4060
        %v4062 = vmul.f32 %v4059, %v4061
        %v4063 = vadd.f32 %v4059, %v4062
        %vm4064 = vweird.f32 %v4047
        %vm4065 = vweird.f32 %v4059
        %vm4066 = vmor %vm4064, %vm4065
        %v4067 = vsel %vm4066, %v4059, %v4063
        %v4068 = vand.u32 2147483647, %v4047
        %vm4069 = vcmp.eq.f32.partialorder %v4068, 8.507059e+37
        %v4070 = vand.u32 %v4047, 2147483648
        %v4071 = vor.u32 1.1754944e-38, %v4070
        %v4072 = vsel %vm4069, %v4071, %v4067
        %v4073 = vmul.f32 1.0, %v4072
        %v4074 = vrcp.pop %v4048
        %v4075 = vmul.f32 %v4048, %v4074
        %v4076 = vsub.f32 1.0, %v4075
        %v4077 = vmul.f32 %v4074, %v4076
        %v4078 = vadd.f32 %v4074, %v4077
        %vm4079 = vweird.f32 %v4048
        %vm4080 = vweird.f32 %v4074
        %vm4081 = vmor %vm4079, %vm4080
        %v4082 = vsel %vm4081, %v4074, %v4078
        %v4083 = vand.u32 2147483647, %v4048
        %vm4084 = vcmp.eq.f32.partialorder %v4083, 8.507059e+37
        %v4085 = vand.u32 %v4048, 2147483648
        %v4086 = vor.u32 1.1754944e-38, %v4085
        %v4087 = vsel %vm4084, %v4086, %v4082
        %v4088 = vmul.f32 1.0, %v4087
        %v4089 = vrcp.pop %v4049
        %v4090 = vmul.f32 %v4049, %v4089
        %v4091 = vsub.f32 1.0, %v4090
        %v4092 = vmul.f32 %v4089, %v4091
        %v4093 = vadd.f32 %v4089, %v4092
        %vm4094 = vweird.f32 %v4049
        %vm4095 = vweird.f32 %v4089
        %vm4096 = vmor %vm4094, %vm4095
        %v4097 = vsel %vm4096, %v4089, %v4093
        %v4098 = vand.u32 2147483647, %v4049
        %vm4099 = vcmp.eq.f32.partialorder %v4098, 8.507059e+37
        %v4100 = vand.u32 %v4049, 2147483648
        %v4101 = vor.u32 1.1754944e-38, %v4100
        %v4102 = vsel %vm4099, %v4101, %v4097
        %v4103 = vmul.f32 1.0, %v4102
        %v4104 = vrcp.pop %v4050
        %v4105 = vmul.f32 %v4050, %v4104
        %v4106 = vsub.f32 1.0, %v4105
        %v4107 = vmul.f32 %v4104, %v4106
        %v4108 = vadd.f32 %v4104, %v4107
        %vm4109 = vweird.f32 %v4050
        %vm4110 = vweird.f32 %v4104
        %vm4111 = vmor %vm4109, %vm4110
        %v4112 = vsel %vm4111, %v4104, %v4108
        %v4113 = vand.u32 2147483647, %v4050
        %vm4114 = vcmp.eq.f32.partialorder %v4113, 8.507059e+37
        %v4115 = vand.u32 %v4050, 2147483648
        %v4116 = vor.u32 1.1754944e-38, %v4115
        %v4117 = vsel %vm4114, %v4116, %v4112
        %v4118 = vmul.f32 1.0, %v4117
        %v4119 = vrcp.pop %v4051
        %v4120 = vmul.f32 %v4051, %v4119
        %v4121 = vsub.f32 1.0, %v4120
        %v4122 = vmul.f32 %v4119, %v4121
        %v4123 = vadd.f32 %v4119, %v4122
        %vm4124 = vweird.f32 %v4051
        %vm4125 = vweird.f32 %v4119
        %vm4126 = vmor %vm4124, %vm4125
        %v4127 = vsel %vm4126, %v4119, %v4123
        %v4128 = vand.u32 2147483647, %v4051
        %vm4129 = vcmp.eq.f32.partialorder %v4128, 8.507059e+37
        %v4130 = vand.u32 %v4051, 2147483648
        %v4131 = vor.u32 1.1754944e-38, %v4130
        %v4132 = vsel %vm4129, %v4131, %v4127
        %v4133 = vmul.f32 1.0, %v4132
        %v4134 = vrcp.pop %v4052
        %v4135 = vmul.f32 %v4052, %v4134
        %v4136 = vsub.f32 1.0, %v4135
        %v4137 = vmul.f32 %v4134, %v4136
        %v4138 = vadd.f32 %v4134, %v4137
        %vm4139 = vweird.f32 %v4052
        %vm4140 = vweird.f32 %v4134
        %vm4141 = vmor %vm4139, %vm4140
        %v4142 = vsel %vm4141, %v4134, %v4138
        %v4143 = vand.u32 2147483647, %v4052
        %vm4144 = vcmp.eq.f32.partialorder %v4143, 8.507059e+37
        %v4145 = vand.u32 %v4052, 2147483648
        %v4146 = vor.u32 1.1754944e-38, %v4145
        %v4147 = vsel %vm4144, %v4146, %v4142
        %v4148 = vmul.f32 1.0, %v4147
        %v4149 = vrcp.pop %v4053
        %v4150 = vmul.f32 %v4053, %v4149
        %v4151 = vsub.f32 1.0, %v4150
        %v4152 = vmul.f32 %v4149, %v4151
        %v4153 = vadd.f32 %v4149, %v4152
        %vm4154 = vweird.f32 %v4053
        %vm4155 = vweird.f32 %v4149
        %vm4156 = vmor %vm4154, %vm4155
        %v4157 = vsel %vm4156, %v4149, %v4153
        %v4158 = vand.u32 2147483647, %v4053
        %vm4159 = vcmp.eq.f32.partialorder %v4158, 8.507059e+37
        %v4160 = vand.u32 %v4053, 2147483648
        %v4161 = vor.u32 1.1754944e-38, %v4160
        %v4162 = vsel %vm4159, %v4161, %v4157
        %v4163 = vmul.f32 1.0, %v4162
        %v4164 = vrcp.pop %v4054
        %v4165 = vmul.f32 %v4054, %v4164
        %v4166 = vsub.f32 1.0, %v4165
        %v4167 = vmul.f32 %v4164, %v4166
        %v4168 = vadd.f32 %v4164, %v4167
        %vm4169 = vweird.f32 %v4054
        %vm4170 = vweird.f32 %v4164
        %vm4171 = vmor %vm4169, %vm4170
        %v4172 = vsel %vm4171, %v4164, %v4168
        %v4173 = vand.u32 2147483647, %v4054
        %vm4174 = vcmp.eq.f32.partialorder %v4173, 8.507059e+37
        %v4175 = vand.u32 %v4054, 2147483648
        %v4176 = vor.u32 1.1754944e-38, %v4175
        %v4177 = vsel %vm4174, %v4176, %v4172
        %v4178 = vmul.f32 1.0, %v4177
        %v4179 = vrcp.pop %v4055
        %v4180 = vmul.f32 %v4055, %v4179
        %v4181 = vsub.f32 1.0, %v4180
        %v4182 = vmul.f32 %v4179, %v4181
        %v4183 = vadd.f32 %v4179, %v4182
        %vm4184 = vweird.f32 %v4055
        %vm4185 = vweird.f32 %v4179
        %vm4186 = vmor %vm4184, %vm4185
        %v4187 = vsel %vm4186, %v4179, %v4183
        %v4188 = vand.u32 2147483647, %v4055
        %vm4189 = vcmp.eq.f32.partialorder %v4188, 8.507059e+37
        %v4190 = vand.u32 %v4055, 2147483648
        %v4191 = vor.u32 1.1754944e-38, %v4190
        %v4192 = vsel %vm4189, %v4191, %v4187
        %v4193 = vmul.f32 1.0, %v4192
        %v4194 = vrcp.pop %v4056
        %v4195 = vmul.f32 %v4056, %v4194
        %v4196 = vsub.f32 1.0, %v4195
        %v4197 = vmul.f32 %v4194, %v4196
        %v4198 = vadd.f32 %v4194, %v4197
        %vm4199 = vweird.f32 %v4056
        %vm4200 = vweird.f32 %v4194
        %vm4201 = vmor %vm4199, %vm4200
        %v4202 = vsel %vm4201, %v4194, %v4198
        %v4203 = vand.u32 2147483647, %v4056
        %vm4204 = vcmp.eq.f32.partialorder %v4203, 8.507059e+37
        %v4205 = vand.u32 %v4056, 2147483648
        %v4206 = vor.u32 1.1754944e-38, %v4205
        %v4207 = vsel %vm4204, %v4206, %v4202
        %v4208 = vmul.f32 1.0, %v4207
        %v4209 = vrcp.pop %v4057
        %v4210 = vmul.f32 %v4057, %v4209
        %v4211 = vsub.f32 1.0, %v4210
        %v4212 = vmul.f32 %v4209, %v4211
        %v4213 = vadd.f32 %v4209, %v4212
        %vm4214 = vweird.f32 %v4057
        %vm4215 = vweird.f32 %v4209
        %vm4216 = vmor %vm4214, %vm4215
        %v4217 = vsel %vm4216, %v4209, %v4213
        %v4218 = vand.u32 2147483647, %v4057
        %vm4219 = vcmp.eq.f32.partialorder %v4218, 8.507059e+37
        %v4220 = vand.u32 %v4057, 2147483648
        %v4221 = vor.u32 1.1754944e-38, %v4220
        %v4222 = vsel %vm4219, %v4221, %v4217
        %v4223 = vmul.f32 1.0, %v4222
        %v4224 = vrcp.pop %v4058
        %v4225 = vmul.f32 %v4058, %v4224
        %v4226 = vsub.f32 1.0, %v4225
        %v4227 = vmul.f32 %v4224, %v4226
        %v4228 = vadd.f32 %v4224, %v4227
        %vm4229 = vweird.f32 %v4058
        %vm4230 = vweird.f32 %v4224
        %vm4231 = vmor %vm4229, %vm4230
        %v4232 = vsel %vm4231, %v4224, %v4228
        %v4233 = vand.u32 2147483647, %v4058
        %vm4234 = vcmp.eq.f32.partialorder %v4233, 8.507059e+37
        %v4235 = vand.u32 %v4058, 2147483648
        %v4236 = vor.u32 1.1754944e-38, %v4235
        %v4237 = vsel %vm4234, %v4236, %v4232
        %v4238 = vmul.f32 1.0, %v4237
        %4239 = vst [vmem:[%s436] sm:$0xff] %v4073
        %4240 = vst [vmem:[%s436 + $0x8] sm:$0xff] %v4088
        %4241 = vst [vmem:[%s436 + $0x10] sm:$0xff] %v4103
        %4242 = vst [vmem:[%s436 + $0x18] sm:$0xff] %v4118
        %4243 = vst [vmem:[%s436 + $0x20] sm:$0xff] %v4133
        %4244 = vst [vmem:[%s436 + $0x28] sm:$0xff] %v4148
        %4245 = vst [vmem:[%s436 + $0x30] sm:$0xff] %v4163
        %4246 = vst [vmem:[%s436 + $0x38] sm:$0xff] %v4178
        %4247 = vst [vmem:[%s436 + $0x40] sm:$0xff] %v4193
        %4248 = vst [vmem:[%s436 + $0x48] sm:$0xff] %v4208
        %4249 = vst [vmem:[%s436 + $0x50] sm:$0xff] %v4223
        %4250 = vst [vmem:[%s436 + $0x58] sm:$0xff] %v4238
        %s4251 = sand.u32 %s194, 1
        %s4252 = scalar_lea.sflag [#allocation4], %s4251
        %s4253 = sand.u32 %s194, 1
        %s4254 = smul.addr %s4253, 96
        %s4255 = scalar_lea.vmem [#allocation14], %s4254
        // Predicated region
        $region77: #{tpu_custom_call.1} parent=47 // pred_check
          %p4256 = pneg %p204
        $region78: #{tpu_custom_call.1} parent=47 // pred_check_branch
          %4258 = sbr.rel (%p4256) target = $region80
        $region79: #{tpu_custom_call.1} parent=47 // pred_region
          %s4259 = smul.u32 2, %s29
          %s4260 = ssub.s32 3, %s4259
          %p4261 = scmp.lt.s32.totalorder %s4260, 2
          %s4262 = scalar_select %p4261, %s4260, 2
          %s4263 = smul.u32 8, %s4262
          %s4264 = smul.u32 %s4263, 6
          %s4265 = ssub.s32 96, %s4264
          %s4266 = sshll.u32 %s4265, 4
          %4267 = vsyncadd %s4252, %s4266
          %p4268 = scmp.ne.s32.totalorder 0, %s4264
          %s4269 = smul.addr %s4259, 6
          %s4270 = smul.addr %s4269, 8
          %s4271 = scalar_lea.hbm %s7, %s4270
          %s4272 = smul.u32 48, %s4262
          %s4273 = sshll.u32 %s4255, 4
          %s4274 = int_to_ptr.vmem [resolvable:$true] %s4273
          %s4275 = sshll.u32 %s4271, 4
          %s4276 = int_to_ptr.hbm [resolvable:$true] %s4275
          %s4277 = sshll.u32 %s4272, 4
          %4281 = dma.vmem_to_hbm [thread:$0]  (%p4268), %s4274, %s4277, %s4276, %s4252, 768, 768, 48
        $region80: #{tpu_custom_call.1} parent=47 // pred_fallthru
          _
      $region48: #{tpu_custom_call.1} parent=5 // pred_fallthru
        _
      %p4282 = scmp.le.s32.totalorder 2, %s24
      // Predicated region
      $region81: #{tpu_custom_call.1} parent=5 // pred_check
        %p4283 = pneg %p4282
      $region82: #{tpu_custom_call.1} parent=5 // pred_check_branch
        %4285 = sbr.rel (%p4283) target = $region84
      $region83: #{tpu_custom_call.1} parent=5 // pred_region
        %s4286 = ssub.s32 %s24, 2
        // Predicated region
        $region85: #{tpu_custom_call.1} parent=83 // pred_check
          %p4287 = pneg %p210
        $region86: #{tpu_custom_call.1} parent=83 // pred_check_branch
          %4289 = sbr.rel (%p4287) target = $region88
        $region87: #{tpu_custom_call.1} parent=83 // pred_region
          %s4290 = sand.u32 %s195, 1
          %s4291 = scalar_lea.sflag [#allocation4], %s4290
          %s4292 = sand.u32 %s195, 1
          %s4293 = smul.addr %s4292, 96
          %s4294 = scalar_lea.vmem [#allocation14], %s4293
          %4296 = dma.done %s4291, 1536
        $region88: #{tpu_custom_call.1} parent=83 // pred_fallthru
          _
      $region84: #{tpu_custom_call.1} parent=5 // pred_fallthru
        _
    $region6: #{tpu_custom_call.1} parent=1 // loop_footer
      %s28 = sadd.s32 1, %s24
    $region7: #{tpu_custom_call.1} parent=1 // loop_footer_branch
      %23 = sbr.rel target = $region3
    $region8: #{tpu_custom_call.1} parent=1 // loop_exit
      _
    %4297 = vsyncpa [#allocation3], 1
    %s4298 = scalar_lea.sflag [#allocation3], 1
    %4299 = vsyncpa %s4298, 1
    %4300 = vsyncpa [#allocation6], 1
    %s4301 = scalar_lea.sflag [#allocation6], 1
    %4302 = vsyncpa %s4301, 1
    %4303 = vsyncpa [#allocation9], 1
    %4304 = vsyncpa [#allocation12], 1
    %4305 = vsyncpa [#allocation4], 1
    %s4306 = scalar_lea.sflag [#allocation4], 1
    %4307 = vsyncpa %s4306, 1

</llo_original>
